<compile_context>
chip_gen: v6e
topology: v6e:2x2x1
jax: 0.10.0
libtpu: 0.0.40
codegen_flags: <defaults>
</compile_context>

<pallas_src>
import jax
import jax.numpy as jnp
from jax.experimental import pallas as pl
from jax.experimental.pallas import tpu as pltpu


def ada_upsample_kernel(x_ref, wf_ref, b_ref, wd_ref, bd_ref, wu_ref, bu_ref,
                        o_ref, xp_ref):
    # x_ref : (H, W, C_in)  f32      original-resolution NHWC input tile
    # wf_ref: (2, 4*C_in, C_out) bf16 folded conv weights for this row parity,
    #                                 first axis = column parity b
    # b_ref : (1, C_out) f32          conv bias
    # wd_ref: (C_out, E) bf16, bd_ref: (1, E) f32      adapter down-proj
    # wu_ref: (E, C_out) bf16, bu_ref: (1, C_out) f32  adapter up-proj
    # o_ref : (H, W, 2*C_out)         output rows of parity `a`; lane dim packs
    #                                 (column parity, channel)
    # xp_ref: (H+2, W+2, C_in) bf16   scratch: zero-padded copy of the input
    H, W, C_in = x_ref.shape
    C_out = b_ref.shape[-1]
    a = pl.program_id(1)                     # output row parity for this step

    # 1-px zero pad of the input tile, done in VMEM (border stays zero,
    # interior overwritten every step -> safe under megacore grid sharding).
    xp_ref[...] = jnp.zeros_like(xp_ref)
    xp_ref[1:H + 1, 1:W + 1, :] = x_ref[...].astype(jnp.bfloat16)

    for b in range(2):                       # output column parity (static)
        # im2col patch for this phase: 2x2 folded taps -> K = 4*C_in
        taps = [xp_ref[pl.ds(a + u, H), pl.ds(b + v, W), :]
                for u in range(2) for v in range(2)]
        patch = jnp.concatenate(taps, axis=-1).reshape(H * W, 4 * C_in)

        # conv: single bf16 MXU matmul per phase, f32 accumulation, + bias
        h = jnp.dot(patch, wf_ref[b], preferred_element_type=jnp.float32)
        h = h + b_ref[...]

        # CNNAdapter bottleneck: 1x1 down -> act -> 1x1 up -> residual add
        down = jnp.dot(h.astype(jnp.bfloat16), wd_ref[...],
                       preferred_element_type=jnp.float32) + bd_ref[...]
        # TODO(synk): adapter_config.conv_adapter_act not given in source; ReLU assumed.
        act = jnp.maximum(down, 0.0)
        up = jnp.dot(act.astype(jnp.bfloat16), wu_ref[...],
                     preferred_element_type=jnp.float32) + bu_ref[...]
        out = (h + up).reshape(H, W, C_out)

        o_ref[:, :, b * C_out:(b + 1) * C_out] = out.astype(o_ref.dtype)


def ada_upsample2d(x_nchw, w_oihw, b, wd, bd, wu, bu):
    """Forward of AdaUpsample2D (use_conv=True, use_conv_transpose=False,
    name='conv', 'upsampler' in adapter modules).  Input/output are NCHW."""
    B, C_in, H, W = x_nchw.shape
    C_out = w_oihw.shape[0]
    E = wd.shape[1]

    # NCHW -> NHWC on the ORIGINAL-resolution tensor only (upsample / pad /
    # tap gather all happen inside the kernel).
    # TODO(synk): in an NHWC-native pipeline this transpose (and the output one)
    # would be dropped; kept to preserve the PyTorch module's NCHW API.
    x = jnp.transpose(x_nchw, (0, 2, 3, 1))

    # Fold the 2x nearest upsample into the 3x3 conv: output phase (a, b) is a
    # 2x2 conv over the 1-px zero-padded original with these pre-summed weights.
    w_hwio = jnp.transpose(w_oihw, (2, 3, 1, 0)).astype(jnp.float32)  # (3,3,Ci,Co)
    S = (((0,), (1, 2)),     # parity 0: tap 0 <- k0,      tap 1 <- k1 + k2
         ((0, 1), (2,)))     # parity 1: tap 0 <- k0 + k1, tap 1 <- k2
    wf_rows = []
    for a in range(2):
        per_b = []
        for bb in range(2):
            taps = []
            for u in range(2):
                for v in range(2):
                    w_sum = jnp.zeros((C_in, C_out), jnp.float32)
                    for kh in S[a][u]:
                        for kw in S[bb][v]:
                            w_sum = w_sum + w_hwio[kh, kw]
                    taps.append(w_sum)                        # (C_in, C_out)
            per_b.append(jnp.concatenate(taps, axis=0))       # (4*C_in, C_out)
        wf_rows.append(jnp.stack(per_b, axis=0))               # (2, 4*C_in, C_out)
    wf = jnp.stack(wf_rows, axis=0).astype(jnp.bfloat16)        # (2, 2, 4*Ci, Co)

    b2 = b.reshape(1, C_out).astype(jnp.float32)
    bd2 = bd.reshape(1, E).astype(jnp.float32)
    bu2 = bu.reshape(1, C_out).astype(jnp.float32)
    wd_b = wd.astype(jnp.bfloat16)
    wu_b = wu.astype(jnp.bfloat16)

    # TODO(synk): for production-size H/W add a row-block grid axis (halo rows
    # via manual DMA) so per-step blocks stay well under v7x's 64 MiB VMEM.
    out5 = pl.pallas_call(
        ada_upsample_kernel,
        out_shape=jax.ShapeDtypeStruct((B, H, 2, W, 2 * C_out), x_nchw.dtype),
        grid=(B, 2),
        in_specs=[
            pl.BlockSpec((None, H, W, C_in), lambda bi, a: (bi, 0, 0, 0)),
            pl.BlockSpec((None, 2, 4 * C_in, C_out), lambda bi, a: (a, 0, 0, 0)),
            pl.BlockSpec((1, C_out), lambda bi, a: (0, 0)),
            pl.BlockSpec((C_out, E), lambda bi, a: (0, 0)),
            pl.BlockSpec((1, E), lambda bi, a: (0, 0)),
            pl.BlockSpec((E, C_out), lambda bi, a: (0, 0)),
            pl.BlockSpec((1, C_out), lambda bi, a: (0, 0)),
        ],
        out_specs=pl.BlockSpec((None, H, None, W, 2 * C_out),
                               lambda bi, a: (bi, 0, a, 0, 0)),
        scratch_shapes=[pltpu.VMEM((H + 2, W + 2, C_in), jnp.bfloat16)],
        compiler_params=pltpu.CompilerParams(
            dimension_semantics=("parallel", "parallel"),
            vmem_limit_bytes=64 * 1024 * 1024),
    )(x, wf, b2, wd_b, bd2, wu_b, bu2)

    # (B, H, 2, W, 2*C_out) -> (B, 2H, 2W, C_out) is a free contiguous reshape.
    out_nhwc = out5.reshape(B, 2 * H, 2 * W, C_out)
    return jnp.transpose(out_nhwc, (0, 3, 1, 2))   # back to the module's NCHW


if __name__ == "__main__":
    key = jax.random.PRNGKey(0)
    ks = jax.random.split(key, 7)

    B, C, H, W = 2, 4, 16, 16
    # CNNAdapter bottleneck width: int(out_channels * adapter_emb_size_ratio), ratio=2.0
    E = 8

    x = jax.random.normal(ks[0], (B, C, H, W), jnp.float32)
    w = jax.random.normal(ks[1], (C, C, 3, 3), jnp.float32) * 0.1   # Conv2d(C, C, 3, pad=1)
    b = jax.random.normal(ks[2], (C,), jnp.float32) * 0.1
    wd = jax.random.normal(ks[3], (C, E), jnp.float32) * 0.1        # adapter down (1x1 conv)
    bd = jax.random.normal(ks[4], (E,), jnp.float32) * 0.1
    wu = jax.random.normal(ks[5], (E, C), jnp.float32) * 0.1        # adapter up (1x1 conv)
    bu = jax.random.normal(ks[6], (C,), jnp.float32) * 0.1

    out = jax.block_until_ready(ada_upsample2d(x, w, b, wd, bd, wu, bu))

    # pure-JAX f32 reference for verification
    up = jnp.repeat(jnp.repeat(x, 2, axis=2), 2, axis=3)
    conv = jax.lax.conv_general_dilated(
        up, w, window_strides=(1, 1), padding=((1, 1), (1, 1)),
        dimension_numbers=("NCHW", "OIHW", "NCHW")) + b[None, :, None, None]
    hh = jnp.transpose(conv, (0, 2, 3, 1))
    ref = hh + (jnp.maximum(hh @ wd + bd, 0.0) @ wu + bu)
    ref = jnp.transpose(ref, (0, 3, 1, 2))

    assert out.shape == (B, C, 2 * H, 2 * W), out.shape
    # bf16 MXU operands with f32 accumulation -> compare with a relative-norm check
    rel_err = jnp.linalg.norm(out - ref) / jnp.linalg.norm(ref)
    assert float(rel_err) < 2e-2, float(rel_err)
    print("KERNEL_OK")
</pallas_src>

<mosaic_0001>
module attributes {stable_mosaic.version = 11 : i64} {
  func.func @ada_upsample_kernel(%arg0: i32, %arg1: i32, %arg2: memref<1x16x16x4xf32, #tpu.memory_space<vmem>>, %arg3: memref<1x2x16x4xbf16, #tpu.memory_space<vmem>>, %arg4: memref<1x4xf32, #tpu.memory_space<vmem>>, %arg5: memref<4x8xbf16, #tpu.memory_space<vmem>>, %arg6: memref<1x8xf32, #tpu.memory_space<vmem>>, %arg7: memref<8x4xbf16, #tpu.memory_space<vmem>>, %arg8: memref<1x4xf32, #tpu.memory_space<vmem>>, %arg9: memref<1x16x1x16x8xf32, #tpu.memory_space<vmem>>, %arg10: memref<18x18x4xbf16, #tpu.memory_space<vmem>>) attributes {dimension_semantics = [#tpu.dimension_semantics<parallel>, #tpu.dimension_semantics<parallel>], iteration_bounds = array<i64: 2, 2>, scalar_prefetch = 0 : i64, scratch_operands = 1 : i64, tpu.core_type = #tpu.core_type<tc>, window_params = [{transform_indices = @transform_0, window_bounds = array<i64: 1, 16, 16, 4>}, {transform_indices = @transform_1, window_bounds = array<i64: 1, 2, 16, 4>}, {pipeline_mode = #tpu.pipeline_mode<synchronous>, transform_indices = @transform_2, window_bounds = array<i64: 1, 4>}, {pipeline_mode = #tpu.pipeline_mode<synchronous>, transform_indices = @transform_3, window_bounds = array<i64: 4, 8>}, {pipeline_mode = #tpu.pipeline_mode<synchronous>, transform_indices = @transform_4, window_bounds = array<i64: 1, 8>}, {pipeline_mode = #tpu.pipeline_mode<synchronous>, transform_indices = @transform_5, window_bounds = array<i64: 8, 4>}, {pipeline_mode = #tpu.pipeline_mode<synchronous>, transform_indices = @transform_6, window_bounds = array<i64: 1, 4>}, {transform_indices = @transform_7, window_bounds = array<i64: 1, 16, 1, 16, 8>}]} {
    %cst = arith.constant 0.000000e+00 : bf16
    %0 = vector.broadcast %cst : bf16 to vector<18x18x4xbf16>
    %c0 = arith.constant 0 : index
    %c0_0 = arith.constant 0 : index
    %c0_1 = arith.constant 0 : index
    %1 = vector.load %arg10[%c0, %c0_0, %c0_1] : memref<18x18x4xbf16, #tpu.memory_space<vmem>>, vector<18x18x4xbf16>
    tpu.vector_store %arg10[%c0, %c0_0, %c0_1], %0 {strides = array<i32>} : memref<18x18x4xbf16, #tpu.memory_space<vmem>>, vector<18x18x4xbf16>,
    %c0_2 = arith.constant 0 : index
    %c0_3 = arith.constant 0 : index
    %c0_4 = arith.constant 0 : index
    %c0_5 = arith.constant 0 : index
    %2 = vector.load %arg2[%c0_2, %c0_3, %c0_4, %c0_5] : memref<1x16x16x4xf32, #tpu.memory_space<vmem>>, vector<1x16x16x4xf32>
    %3 = vector.shape_cast %2 : vector<1x16x16x4xf32> to vector<16x16x4xf32>
    %4 = arith.truncf %3 : vector<16x16x4xf32> to vector<16x16x4xbf16>
    %c1 = arith.constant 1 : index
    %c1_6 = arith.constant 1 : index
    %c0_7 = arith.constant 0 : index
    %5 = vector.load %arg10[%c1, %c1_6, %c0_7] : memref<18x18x4xbf16, #tpu.memory_space<vmem>>, vector<16x16x4xbf16>
    tpu.vector_store %arg10[%c1, %c1_6, %c0_7], %4 {strides = array<i32>} : memref<18x18x4xbf16, #tpu.memory_space<vmem>>, vector<16x16x4xbf16>,
    %c0_i32 = arith.constant 0 : i32
    %6 = arith.addi %arg1, %c0_i32 : i32
    %7 = arith.index_cast %6 : i32 to index
    %c0_8 = arith.constant 0 : index
    %c0_9 = arith.constant 0 : index
    %8 = vector.load %arg10[%7, %c0_8, %c0_9] : memref<18x18x4xbf16, #tpu.memory_space<vmem>>, vector<16x16x4xbf16>
    %c0_i32_10 = arith.constant 0 : i32
    %9 = arith.addi %arg1, %c0_i32_10 : i32
    %10 = arith.index_cast %9 : i32 to index
    %c1_11 = arith.constant 1 : index
    %c0_12 = arith.constant 0 : index
    %11 = vector.load %arg10[%10, %c1_11, %c0_12] : memref<18x18x4xbf16, #tpu.memory_space<vmem>>, vector<16x16x4xbf16>
    %c1_i32 = arith.constant 1 : i32
    %12 = arith.addi %arg1, %c1_i32 : i32
    %13 = arith.index_cast %12 : i32 to index
    %c0_13 = arith.constant 0 : index
    %c0_14 = arith.constant 0 : index
    %14 = vector.load %arg10[%13, %c0_13, %c0_14] : memref<18x18x4xbf16, #tpu.memory_space<vmem>>, vector<16x16x4xbf16>
    %c1_i32_15 = arith.constant 1 : i32
    %15 = arith.addi %arg1, %c1_i32_15 : i32
    %16 = arith.index_cast %15 : i32 to index
    %c1_16 = arith.constant 1 : index
    %c0_17 = arith.constant 0 : index
    %17 = vector.load %arg10[%16, %c1_16, %c0_17] : memref<18x18x4xbf16, #tpu.memory_space<vmem>>, vector<16x16x4xbf16>
    %18 = tpu.concatenate %8, %11, %14, %17 in 2 : vector<16x16x4xbf16>, vector<16x16x4xbf16>, vector<16x16x4xbf16>, vector<16x16x4xbf16> -> vector<16x16x16xbf16>
    %19 = vector.shape_cast %18 : vector<16x16x16xbf16> to vector<256x16xbf16>
    %c0_18 = arith.constant 0 : index
    %c0_19 = arith.constant 0 : index
    %c0_20 = arith.constant 0 : index
    %c0_21 = arith.constant 0 : index
    %20 = vector.load %arg3[%c0_18, %c0_19, %c0_20, %c0_21] : memref<1x2x16x4xbf16, #tpu.memory_space<vmem>>, vector<1x1x16x4xbf16>
    %21 = vector.shape_cast %20 : vector<1x1x16x4xbf16> to vector<16x4xbf16>
    %cst_22 = arith.constant dense<0.000000e+00> : vector<256x4xf32>
    %22 = tpu.matmul %19, %21, %cst_22 {dimension_numbers = #tpu.dot_dimension_numbers<[1], [0], [0], [1], [0, 0, 1, 1], [], []>} : vector<256x16xbf16>, vector<16x4xbf16>, vector<256x4xf32> -> vector<256x4xf32>
    %c0_23 = arith.constant 0 : index
    %c0_24 = arith.constant 0 : index
    %23 = vector.load %arg4[%c0_23, %c0_24] : memref<1x4xf32, #tpu.memory_space<vmem>>, vector<1x4xf32>
    %24 = vector.broadcast %23 : vector<1x4xf32> to vector<256x4xf32>
    %25 = arith.addf %22, %24 : vector<256x4xf32>
    %26 = arith.truncf %25 : vector<256x4xf32> to vector<256x4xbf16>
    %c0_25 = arith.constant 0 : index
    %c0_26 = arith.constant 0 : index
    %27 = vector.load %arg5[%c0_25, %c0_26] : memref<4x8xbf16, #tpu.memory_space<vmem>>, vector<4x8xbf16>
    %cst_27 = arith.constant dense<0.000000e+00> : vector<256x8xf32>
    %28 = tpu.matmul %26, %27, %cst_27 {dimension_numbers = #tpu.dot_dimension_numbers<[1], [0], [0], [1], [0, 0, 1, 1], [], []>} : vector<256x4xbf16>, vector<4x8xbf16>, vector<256x8xf32> -> vector<256x8xf32>
    %c0_28 = arith.constant 0 : index
    %c0_29 = arith.constant 0 : index
    %29 = vector.load %arg6[%c0_28, %c0_29] : memref<1x8xf32, #tpu.memory_space<vmem>>, vector<1x8xf32>
    %30 = vector.broadcast %29 : vector<1x8xf32> to vector<256x8xf32>
    %31 = arith.addf %28, %30 : vector<256x8xf32>
    %cst_30 = arith.constant 0.000000e+00 : f32
    %32 = vector.broadcast %cst_30 : f32 to vector<256x8xf32>
    %33 = arith.maximumf %31, %32 : vector<256x8xf32>
    %34 = arith.truncf %33 : vector<256x8xf32> to vector<256x8xbf16>
    %c0_31 = arith.constant 0 : index
    %c0_32 = arith.constant 0 : index
    %35 = vector.load %arg7[%c0_31, %c0_32] : memref<8x4xbf16, #tpu.memory_space<vmem>>, vector<8x4xbf16>
    %cst_33 = arith.constant dense<0.000000e+00> : vector<256x4xf32>
    %36 = tpu.matmul %34, %35, %cst_33 {dimension_numbers = #tpu.dot_dimension_numbers<[1], [0], [0], [1], [0, 0, 1, 1], [], []>} : vector<256x8xbf16>, vector<8x4xbf16>, vector<256x4xf32> -> vector<256x4xf32>
    %c0_34 = arith.constant 0 : index
    %c0_35 = arith.constant 0 : index
    %37 = vector.load %arg8[%c0_34, %c0_35] : memref<1x4xf32, #tpu.memory_space<vmem>>, vector<1x4xf32>
    %38 = vector.broadcast %37 : vector<1x4xf32> to vector<256x4xf32>
    %39 = arith.addf %36, %38 : vector<256x4xf32>
    %40 = arith.addf %25, %39 : vector<256x4xf32>
    %41 = vector.shape_cast %40 : vector<256x4xf32> to vector<16x16x4xf32>
    %c0_36 = arith.constant 0 : index
    %c0_37 = arith.constant 0 : index
    %c0_38 = arith.constant 0 : index
    %c0_39 = arith.constant 0 : index
    %c0_40 = arith.constant 0 : index
    %42 = vector.load %arg9[%c0_36, %c0_37, %c0_38, %c0_39, %c0_40] : memref<1x16x1x16x8xf32, #tpu.memory_space<vmem>>, vector<1x16x1x16x4xf32>
    %43 = vector.shape_cast %42 : vector<1x16x1x16x4xf32> to vector<16x16x4xf32>
    %44 = vector.shape_cast %41 : vector<16x16x4xf32> to vector<1x16x1x16x4xf32>
    tpu.vector_store %arg9[%c0_36, %c0_37, %c0_38, %c0_39, %c0_40], %44 {strides = array<i32>} : memref<1x16x1x16x8xf32, #tpu.memory_space<vmem>>, vector<1x16x1x16x4xf32>,
    %c0_i32_41 = arith.constant 0 : i32
    %45 = arith.addi %arg1, %c0_i32_41 : i32
    %46 = arith.index_cast %45 : i32 to index
    %c1_42 = arith.constant 1 : index
    %c0_43 = arith.constant 0 : index
    %47 = vector.load %arg10[%46, %c1_42, %c0_43] : memref<18x18x4xbf16, #tpu.memory_space<vmem>>, vector<16x16x4xbf16>
    %c0_i32_44 = arith.constant 0 : i32
    %48 = arith.addi %arg1, %c0_i32_44 : i32
    %49 = arith.index_cast %48 : i32 to index
    %c2 = arith.constant 2 : index
    %c0_45 = arith.constant 0 : index
    %50 = vector.load %arg10[%49, %c2, %c0_45] : memref<18x18x4xbf16, #tpu.memory_space<vmem>>, vector<16x16x4xbf16>
    %c1_i32_46 = arith.constant 1 : i32
    %51 = arith.addi %arg1, %c1_i32_46 : i32
    %52 = arith.index_cast %51 : i32 to index
    %c1_47 = arith.constant 1 : index
    %c0_48 = arith.constant 0 : index
    %53 = vector.load %arg10[%52, %c1_47, %c0_48] : memref<18x18x4xbf16, #tpu.memory_space<vmem>>, vector<16x16x4xbf16>
    %c1_i32_49 = arith.constant 1 : i32
    %54 = arith.addi %arg1, %c1_i32_49 : i32
    %55 = arith.index_cast %54 : i32 to index
    %c2_50 = arith.constant 2 : index
    %c0_51 = arith.constant 0 : index
    %56 = vector.load %arg10[%55, %c2_50, %c0_51] : memref<18x18x4xbf16, #tpu.memory_space<vmem>>, vector<16x16x4xbf16>
    %57 = tpu.concatenate %47, %50, %53, %56 in 2 : vector<16x16x4xbf16>, vector<16x16x4xbf16>, vector<16x16x4xbf16>, vector<16x16x4xbf16> -> vector<16x16x16xbf16>
    %58 = vector.shape_cast %57 : vector<16x16x16xbf16> to vector<256x16xbf16>
    %c0_52 = arith.constant 0 : index
    %c1_53 = arith.constant 1 : index
    %c0_54 = arith.constant 0 : index
    %c0_55 = arith.constant 0 : index
    %59 = vector.load %arg3[%c0_52, %c1_53, %c0_54, %c0_55] : memref<1x2x16x4xbf16, #tpu.memory_space<vmem>>, vector<1x1x16x4xbf16>
    %60 = vector.shape_cast %59 : vector<1x1x16x4xbf16> to vector<16x4xbf16>
    %cst_56 = arith.constant dense<0.000000e+00> : vector<256x4xf32>
    %61 = tpu.matmul %58, %60, %cst_56 {dimension_numbers = #tpu.dot_dimension_numbers<[1], [0], [0], [1], [0, 0, 1, 1], [], []>} : vector<256x16xbf16>, vector<16x4xbf16>, vector<256x4xf32> -> vector<256x4xf32>
    %c0_57 = arith.constant 0 : index
    %c0_58 = arith.constant 0 : index
    %62 = vector.load %arg4[%c0_57, %c0_58] : memref<1x4xf32, #tpu.memory_space<vmem>>, vector<1x4xf32>
    %63 = vector.broadcast %62 : vector<1x4xf32> to vector<256x4xf32>
    %64 = arith.addf %61, %63 : vector<256x4xf32>
    %65 = arith.truncf %64 : vector<256x4xf32> to vector<256x4xbf16>
    %c0_59 = arith.constant 0 : index
    %c0_60 = arith.constant 0 : index
    %66 = vector.load %arg5[%c0_59, %c0_60] : memref<4x8xbf16, #tpu.memory_space<vmem>>, vector<4x8xbf16>
    %cst_61 = arith.constant dense<0.000000e+00> : vector<256x8xf32>
    %67 = tpu.matmul %65, %66, %cst_61 {dimension_numbers = #tpu.dot_dimension_numbers<[1], [0], [0], [1], [0, 0, 1, 1], [], []>} : vector<256x4xbf16>, vector<4x8xbf16>, vector<256x8xf32> -> vector<256x8xf32>
    %c0_62 = arith.constant 0 : index
    %c0_63 = arith.constant 0 : index
    %68 = vector.load %arg6[%c0_62, %c0_63] : memref<1x8xf32, #tpu.memory_space<vmem>>, vector<1x8xf32>
    %69 = vector.broadcast %68 : vector<1x8xf32> to vector<256x8xf32>
    %70 = arith.addf %67, %69 : vector<256x8xf32>
    %cst_64 = arith.constant 0.000000e+00 : f32
    %71 = vector.broadcast %cst_64 : f32 to vector<256x8xf32>
    %72 = arith.maximumf %70, %71 : vector<256x8xf32>
    %73 = arith.truncf %72 : vector<256x8xf32> to vector<256x8xbf16>
    %c0_65 = arith.constant 0 : index
    %c0_66 = arith.constant 0 : index
    %74 = vector.load %arg7[%c0_65, %c0_66] : memref<8x4xbf16, #tpu.memory_space<vmem>>, vector<8x4xbf16>
    %cst_67 = arith.constant dense<0.000000e+00> : vector<256x4xf32>
    %75 = tpu.matmul %73, %74, %cst_67 {dimension_numbers = #tpu.dot_dimension_numbers<[1], [0], [0], [1], [0, 0, 1, 1], [], []>} : vector<256x8xbf16>, vector<8x4xbf16>, vector<256x4xf32> -> vector<256x4xf32>
    %c0_68 = arith.constant 0 : index
    %c0_69 = arith.constant 0 : index
    %76 = vector.load %arg8[%c0_68, %c0_69] : memref<1x4xf32, #tpu.memory_space<vmem>>, vector<1x4xf32>
    %77 = vector.broadcast %76 : vector<1x4xf32> to vector<256x4xf32>
    %78 = arith.addf %75, %77 : vector<256x4xf32>
    %79 = arith.addf %64, %78 : vector<256x4xf32>
    %80 = vector.shape_cast %79 : vector<256x4xf32> to vector<16x16x4xf32>
    %c0_70 = arith.constant 0 : index
    %c0_71 = arith.constant 0 : index
    %c0_72 = arith.constant 0 : index
    %c0_73 = arith.constant 0 : index
    %c4 = arith.constant 4 : index
    %81 = vector.load %arg9[%c0_70, %c0_71, %c0_72, %c0_73, %c4] : memref<1x16x1x16x8xf32, #tpu.memory_space<vmem>>, vector<1x16x1x16x4xf32>
    %82 = vector.shape_cast %81 : vector<1x16x1x16x4xf32> to vector<16x16x4xf32>
    %83 = vector.shape_cast %80 : vector<16x16x4xf32> to vector<1x16x1x16x4xf32>
    tpu.vector_store %arg9[%c0_70, %c0_71, %c0_72, %c0_73, %c4], %83 {strides = array<i32>} : memref<1x16x1x16x8xf32, #tpu.memory_space<vmem>>, vector<1x16x1x16x4xf32>,
    return
  }
  func.func @transform_0(%arg0: i32, %arg1: i32) -> (i32, i32, i32, i32) {
    %c0_i32 = arith.constant 0 : i32
    %c0_i32_0 = arith.constant 0 : i32
    %c0_i32_1 = arith.constant 0 : i32
    %c0_i32_2 = arith.constant 0 : i32
    return %arg0, %c0_i32, %c0_i32_0, %c0_i32_1 : i32, i32, i32, i32
  }
  func.func @transform_1(%arg0: i32, %arg1: i32) -> (i32, i32, i32, i32) {
    %c0_i32 = arith.constant 0 : i32
    %c0_i32_0 = arith.constant 0 : i32
    %c0_i32_1 = arith.constant 0 : i32
    %c0_i32_2 = arith.constant 0 : i32
    return %arg1, %c0_i32, %c0_i32_0, %c0_i32_1 : i32, i32, i32, i32
  }
  func.func @transform_2(%arg0: i32, %arg1: i32) -> (i32, i32) {
    %c0_i32 = arith.constant 0 : i32
    %c0_i32_0 = arith.constant 0 : i32
    %c0_i32_1 = arith.constant 0 : i32
    return %c0_i32, %c0_i32_0 : i32, i32
  }
  func.func @transform_3(%arg0: i32, %arg1: i32) -> (i32, i32) {
    %c0_i32 = arith.constant 0 : i32
    %c0_i32_0 = arith.constant 0 : i32
    %c0_i32_1 = arith.constant 0 : i32
    return %c0_i32, %c0_i32_0 : i32, i32
  }
  func.func @transform_4(%arg0: i32, %arg1: i32) -> (i32, i32) {
    %c0_i32 = arith.constant 0 : i32
    %c0_i32_0 = arith.constant 0 : i32
    %c0_i32_1 = arith.constant 0 : i32
    return %c0_i32, %c0_i32_0 : i32, i32
  }
  func.func @transform_5(%arg0: i32, %arg1: i32) -> (i32, i32) {
    %c0_i32 = arith.constant 0 : i32
    %c0_i32_0 = arith.constant 0 : i32
    %c0_i32_1 = arith.constant 0 : i32
    return %c0_i32, %c0_i32_0 : i32, i32
  }
  func.func @transform_6(%arg0: i32, %arg1: i32) -> (i32, i32) {
    %c0_i32 = arith.constant 0 : i32
    %c0_i32_0 = arith.constant 0 : i32
    %c0_i32_1 = arith.constant 0 : i32
    return %c0_i32, %c0_i32_0 : i32, i32
  }
  func.func @transform_7(%arg0: i32, %arg1: i32) -> (i32, i32, i32, i32, i32) {
    %c0_i32 = arith.constant 0 : i32
    %c0_i32_0 = arith.constant 0 : i32
    %c0_i32_1 = arith.constant 0 : i32
    %c0_i32_2 = arith.constant 0 : i32
    return %arg0, %c0_i32, %arg1, %c0_i32_0, %c0_i32_1 : i32, i32, i32, i32, i32
  }
}

</mosaic_0001>

<llo_original>
// kernel: tpu_custom_call.1
$region0: #{tpu_custom_call.1}
  #allocation0 [shape = 'u32[]', space=smem, size = 0x4, offset = 0x4, fixed_abs, tag = 'smem constant byte address 0x4 - core index']
  #allocation1 [shape = 'u32[144,128]{1,0:T(1,128)}', space=vmem, size = 0x12000, scoped, tag = 'internal scratch']
  #allocation2 [shape = 'bf16[18,18,4]{2,1,0:T(8,128)(2,1)}', space=vmem, size = 0x1b000, scoped, tag = 'scratch operand']
  %s0 = inlined_call_operand.vmem [shape: f32[2,16,16,4], index: 0, kind: input, shape index: {}]
  %s1 = inlined_call_operand.vmem [shape: bf16[2,2,16,4], index: 1, kind: input, shape index: {}]
  %s2 = inlined_call_operand.vmem [shape: f32[1,4], index: 2, kind: input, shape index: {}]
  %s3 = inlined_call_operand.vmem [shape: bf16[4,8], index: 3, kind: input, shape index: {}]
  %s4 = inlined_call_operand.vmem [shape: f32[1,8], index: 4, kind: input, shape index: {}]
  %s5 = inlined_call_operand.vmem [shape: bf16[8,4], index: 5, kind: input, shape index: {}]
  %s6 = inlined_call_operand.vmem [shape: f32[1,4], index: 6, kind: input, shape index: {}]
  %s7 = inlined_call_operand.vmem [shape: f32[2,16,2,16,8], index: 7, kind: output, shape index: {}]
  %s8 = sld [smem:[#allocation0]]
  $region95: #{tpu_custom_call.1} parent=0
    _
  %s10 = ssub.s32 1, %s8
  %s11 = scalar_select 0, %s10, %s8
  $region1: #{tpu_custom_call.1} parent=0
    #allocation3 [shape = 'u8[262144]{0}', space=vmem, size = 0x40000, scoped, tag = 'output window, operand 0']
    loop: start=0, step=1, limit=6
    $region2: #{tpu_custom_call.1} parent=1 // loop_pre_header
      _
    $region3: #{tpu_custom_call.1} parent=1 // loop_header
      %s13 = sphi 0, %s17
      %p14 = scmp.ge.s32.totalorder %s13, 6
      %s20 = sphi 0, %s32
      %s21 = sphi 0, %s28
      %s22 = sphi 0, %s20
      %s23 = sphi 0, %s21
      %s24 = sphi 0, %s22
      %s25 = sphi 0, %s23
      %s35 = sphi 0, %s37
      %s38 = sphi 0, %s35
      %s39 = sphi 0, %s38
      %s55 = sphi 0, %s39
      %s61 = sphi 0, %s63
      %s64 = sphi 0, %s61
      %s65 = sphi 0, %s64
      %s81 = sphi 0, %s65
      %s85 = sphi 0, %s85
      %s87 = sphi 0, %s85
      %s88 = sphi 0, %s87
      %s102 = sphi 0, %s88
      %s106 = sphi 0, %s106
      %s108 = sphi 0, %s106
      %s109 = sphi 0, %s108
      %s123 = sphi 0, %s109
      %s127 = sphi 0, %s127
      %s129 = sphi 0, %s127
      %s130 = sphi 0, %s129
      %s144 = sphi 0, %s130
      %s148 = sphi 0, %s148
      %s150 = sphi 0, %s148
      %s151 = sphi 0, %s150
      %s165 = sphi 0, %s151
      %s169 = sphi 0, %s169
      %s171 = sphi 0, %s169
      %s172 = sphi 0, %s171
      %s186 = sphi 0, %s172
      %s194 = sphi 0, %s196
      %s197 = sphi 0, %s194
      %s198 = sphi 0, %s197
      %s214 = sphi 0, %s198
    $region4: #{tpu_custom_call.1} parent=1 // loop_header_branch
      %16 = sbr.rel (%p14) target = $region8
    $region5: #{tpu_custom_call.1} parent=1 // loop_body
      %s18 = ssub.s32 %s13, 1
      %s19 = ssub.s32 %s13, 2
      %s26 = sadd.s32 1, %s21
      %p27 = scmp.ge.s32.totalorder %s26, 2
      %s28 = scalar_select %p27, 0, %s26
      %s29 = sadd.s32 1, %s20
      %s30 = scalar_select %p27, %s29, %s20
      %p31 = scmp.ge.s32.totalorder %s30, 2
      %s32 = scalar_select %p31, 0, %s30
      %s33 = ssub.s32 %s20, %s32
      %p34 = scmp.eq.s32.totalorder %s33, 0
      %s36 = sadd.s32 %s35, 1
      %s37 = scalar_select %p34, %s35, %s36
      %p40 = pneg %p34
      %p41 = scmp.eq.s32.totalorder %s13, 3
      %p42 = por %p40, %p41
      %p43 = scmp.ne.s32.totalorder %s35, %s38
      %p44 = scmp.eq.s32.totalorder %s13, 0
      %p45 = por %p43, %p44
      %p46 = scmp.ne.s32.totalorder %s35, %s38
      %p47 = scmp.eq.s32.totalorder %s18, 3
      %p48 = por %p46, %p47
      %p49 = scmp.ne.s32.totalorder %s38, %s39
      %p50 = scmp.eq.s32.totalorder %s18, 0
      %p51 = por %p49, %p50
      %p52 = scmp.ne.s32.totalorder %s38, %s39
      %p53 = scmp.eq.s32.totalorder %s19, 3
      %p54 = por %p52, %p53
      %p56 = scmp.ne.s32.totalorder %s39, %s55
      %p57 = scmp.eq.s32.totalorder %s19, 0
      %p58 = por %p56, %p57
      %s59 = ssub.s32 %s21, %s28
      %p60 = scmp.eq.s32.totalorder %s59, 0
      %s62 = sadd.s32 %s61, 1
      %s63 = scalar_select %p60, %s61, %s62
      %p66 = pneg %p60
      %p67 = scmp.eq.s32.totalorder %s13, 3
      %p68 = por %p66, %p67
      %p69 = scmp.ne.s32.totalorder %s61, %s64
      %p70 = scmp.eq.s32.totalorder %s13, 0
      %p71 = por %p69, %p70
      %p72 = scmp.ne.s32.totalorder %s61, %s64
      %p73 = scmp.eq.s32.totalorder %s18, 3
      %p74 = por %p72, %p73
      %p75 = scmp.ne.s32.totalorder %s64, %s65
      %p76 = scmp.eq.s32.totalorder %s18, 0
      %p77 = por %p75, %p76
      %p78 = scmp.ne.s32.totalorder %s64, %s65
      %p79 = scmp.eq.s32.totalorder %s19, 3
      %p80 = por %p78, %p79
      %p82 = scmp.ne.s32.totalorder %s65, %s81
      %p83 = scmp.eq.s32.totalorder %s19, 0
      %p84 = por %p82, %p83
      %s86 = sadd.s32 %s85, 1
      %p89 = scmp.eq.s32.totalorder %s13, 3
      %p90 = scmp.ne.s32.totalorder %s85, %s87
      %p91 = scmp.eq.s32.totalorder %s13, 0
      %p92 = por %p90, %p91
      %p93 = scmp.ne.s32.totalorder %s85, %s87
      %p94 = scmp.eq.s32.totalorder %s18, 3
      %p95 = por %p93, %p94
      %p96 = scmp.ne.s32.totalorder %s87, %s88
      %p97 = scmp.eq.s32.totalorder %s18, 0
      %p98 = por %p96, %p97
      %p99 = scmp.ne.s32.totalorder %s87, %s88
      %p100 = scmp.eq.s32.totalorder %s19, 3
      %p101 = por %p99, %p100
      %p103 = scmp.ne.s32.totalorder %s88, %s102
      %p104 = scmp.eq.s32.totalorder %s19, 0
      %p105 = por %p103, %p104
      %s107 = sadd.s32 %s106, 1
      %p110 = scmp.eq.s32.totalorder %s13, 3
      %p111 = scmp.ne.s32.totalorder %s106, %s108
      %p112 = scmp.eq.s32.totalorder %s13, 0
      %p113 = por %p111, %p112
      %p114 = scmp.ne.s32.totalorder %s106, %s108
      %p115 = scmp.eq.s32.totalorder %s18, 3
      %p116 = por %p114, %p115
      %p117 = scmp.ne.s32.totalorder %s108, %s109
      %p118 = scmp.eq.s32.totalorder %s18, 0
      %p119 = por %p117, %p118
      %p120 = scmp.ne.s32.totalorder %s108, %s109
      %p121 = scmp.eq.s32.totalorder %s19, 3
      %p122 = por %p120, %p121
      %p124 = scmp.ne.s32.totalorder %s109, %s123
      %p125 = scmp.eq.s32.totalorder %s19, 0
      %p126 = por %p124, %p125
      %s128 = sadd.s32 %s127, 1
      %p131 = scmp.eq.s32.totalorder %s13, 3
      %p132 = scmp.ne.s32.totalorder %s127, %s129
      %p133 = scmp.eq.s32.totalorder %s13, 0
      %p134 = por %p132, %p133
      %p135 = scmp.ne.s32.totalorder %s127, %s129
      %p136 = scmp.eq.s32.totalorder %s18, 3
      %p137 = por %p135, %p136
      %p138 = scmp.ne.s32.totalorder %s129, %s130
      %p139 = scmp.eq.s32.totalorder %s18, 0
      %p140 = por %p138, %p139
      %p141 = scmp.ne.s32.totalorder %s129, %s130
      %p142 = scmp.eq.s32.totalorder %s19, 3
      %p143 = por %p141, %p142
      %p145 = scmp.ne.s32.totalorder %s130, %s144
      %p146 = scmp.eq.s32.totalorder %s19, 0
      %p147 = por %p145, %p146
      %s149 = sadd.s32 %s148, 1
      %p152 = scmp.eq.s32.totalorder %s13, 3
      %p153 = scmp.ne.s32.totalorder %s148, %s150
      %p154 = scmp.eq.s32.totalorder %s13, 0
      %p155 = por %p153, %p154
      %p156 = scmp.ne.s32.totalorder %s148, %s150
      %p157 = scmp.eq.s32.totalorder %s18, 3
      %p158 = por %p156, %p157
      %p159 = scmp.ne.s32.totalorder %s150, %s151
      %p160 = scmp.eq.s32.totalorder %s18, 0
      %p161 = por %p159, %p160
      %p162 = scmp.ne.s32.totalorder %s150, %s151
      %p163 = scmp.eq.s32.totalorder %s19, 3
      %p164 = por %p162, %p163
      %p166 = scmp.ne.s32.totalorder %s151, %s165
      %p167 = scmp.eq.s32.totalorder %s19, 0
      %p168 = por %p166, %p167
      %s170 = sadd.s32 %s169, 1
      %p173 = scmp.eq.s32.totalorder %s13, 3
      %p174 = scmp.ne.s32.totalorder %s169, %s171
      %p175 = scmp.eq.s32.totalorder %s13, 0
      %p176 = por %p174, %p175
      %p177 = scmp.ne.s32.totalorder %s169, %s171
      %p178 = scmp.eq.s32.totalorder %s18, 3
      %p179 = por %p177, %p178
      %p180 = scmp.ne.s32.totalorder %s171, %s172
      %p181 = scmp.eq.s32.totalorder %s18, 0
      %p182 = por %p180, %p181
      %p183 = scmp.ne.s32.totalorder %s171, %s172
      %p184 = scmp.eq.s32.totalorder %s19, 3
      %p185 = por %p183, %p184
      %p187 = scmp.ne.s32.totalorder %s172, %s186
      %p188 = scmp.eq.s32.totalorder %s19, 0
      %p189 = por %p187, %p188
      %s190 = ssub.s32 %s20, %s32
      %s191 = ssub.s32 %s21, %s28
      %s192 = sor.u32 %s190, %s191
      %p193 = scmp.eq.s32.totalorder %s192, 0
      %s195 = sadd.s32 %s194, 1
      %s196 = scalar_select %p193, %s194, %s195
      %p199 = pneg %p193
      %p200 = scmp.eq.s32.totalorder %s13, 3
      %p201 = por %p199, %p200
      %p202 = scmp.ne.s32.totalorder %s194, %s197
      %p203 = scmp.eq.s32.totalorder %s13, 0
      %p204 = por %p202, %p203
      %p205 = scmp.ne.s32.totalorder %s194, %s197
      %p206 = scmp.eq.s32.totalorder %s18, 3
      %p207 = por %p205, %p206
      %p208 = scmp.ne.s32.totalorder %s197, %s198
      %p209 = scmp.eq.s32.totalorder %s18, 0
      %p210 = por %p208, %p209
      %p211 = scmp.ne.s32.totalorder %s197, %s198
      %p212 = scmp.eq.s32.totalorder %s19, 3
      %p213 = por %p211, %p212
      %p215 = scmp.ne.s32.totalorder %s198, %s214
      %p216 = scmp.eq.s32.totalorder %s19, 0
      %p217 = por %p215, %p216
      %p218 = scmp.le.s32.totalorder 1, %s13
      %p219 = scmp.lt.s32.totalorder %s13, 5
      %p220 = pnand %p218, %p219
      %p221 = pneg %p220
      // Predicated region
      $region9: #{tpu_custom_call.1} parent=5 // pred_check
        _
      $region10: #{tpu_custom_call.1} parent=5 // pred_check_branch
        %223 = sbr.rel (%p220) target = $region12
      $region11: #{tpu_custom_call.1} parent=5 // pred_region
        %s224 = ssub.s32 %s13, 1
        // Predicated region
        $region13: #{tpu_custom_call.1} parent=11 // pred_check
          %p225 = pneg %p98
        $region14: #{tpu_custom_call.1} parent=11 // pred_check_branch
          %227 = sbr.rel (%p225) target = $region16
        $region15: #{tpu_custom_call.1} parent=11 // pred_region
          _
        $region16: #{tpu_custom_call.1} parent=11 // pred_fallthru
          _
        // Predicated region
        $region17: #{tpu_custom_call.1} parent=11 // pred_check
          %p228 = pneg %p119
        $region18: #{tpu_custom_call.1} parent=11 // pred_check_branch
          %230 = sbr.rel (%p228) target = $region20
        $region19: #{tpu_custom_call.1} parent=11 // pred_region
          _
        $region20: #{tpu_custom_call.1} parent=11 // pred_fallthru
          _
        // Predicated region
        $region21: #{tpu_custom_call.1} parent=11 // pred_check
          %p231 = pneg %p140
        $region22: #{tpu_custom_call.1} parent=11 // pred_check_branch
          %233 = sbr.rel (%p231) target = $region24
        $region23: #{tpu_custom_call.1} parent=11 // pred_region
          _
        $region24: #{tpu_custom_call.1} parent=11 // pred_fallthru
          _
        // Predicated region
        $region25: #{tpu_custom_call.1} parent=11 // pred_check
          %p234 = pneg %p161
        $region26: #{tpu_custom_call.1} parent=11 // pred_check_branch
          %236 = sbr.rel (%p234) target = $region28
        $region27: #{tpu_custom_call.1} parent=11 // pred_region
          _
        $region28: #{tpu_custom_call.1} parent=11 // pred_fallthru
          _
        // Predicated region
        $region29: #{tpu_custom_call.1} parent=11 // pred_check
          %p237 = pneg %p182
        $region30: #{tpu_custom_call.1} parent=11 // pred_check_branch
          %239 = sbr.rel (%p237) target = $region32
        $region31: #{tpu_custom_call.1} parent=11 // pred_region
          _
        $region32: #{tpu_custom_call.1} parent=11 // pred_fallthru
          _
      $region12: #{tpu_custom_call.1} parent=5 // pred_fallthru
        _
      %p240 = scmp.lt.s32.totalorder %s13, 4
      // Predicated region
      $region33: #{tpu_custom_call.1} parent=5 // pred_check
        %p241 = pneg %p240
      $region34: #{tpu_custom_call.1} parent=5 // pred_check_branch
        %243 = sbr.rel (%p241) target = $region36
      $region35: #{tpu_custom_call.1} parent=5 // pred_region
        // Predicated region
        $region37: #{tpu_custom_call.1} parent=35 // pred_check
          %p244 = pneg %p45
        $region38: #{tpu_custom_call.1} parent=35 // pred_check_branch
          %246 = sbr.rel (%p244) target = $region40
        $region39: #{tpu_custom_call.1} parent=35 // pred_region
          %p247 = scmp.lt.s32.totalorder %s20, 1
          %s248 = scalar_select %p247, %s20, 1
          %s249 = smul.addr %s248, 32
          %s250 = smul.addr %s249, 8
          %s251 = scalar_lea.vmem %s0, %s250
        $region40: #{tpu_custom_call.1} parent=35 // pred_fallthru
          _
        // Predicated region
        $region41: #{tpu_custom_call.1} parent=35 // pred_check
          %p252 = pneg %p71
        $region42: #{tpu_custom_call.1} parent=35 // pred_check_branch
          %254 = sbr.rel (%p252) target = $region44
        $region43: #{tpu_custom_call.1} parent=35 // pred_region
          %p255 = scmp.lt.s32.totalorder %s21, 1
          %s256 = scalar_select %p255, %s21, 1
          %s257 = smul.addr %s256, 4
          %s258 = smul.addr %s257, 4
          %s259 = scalar_lea.vmem %s1, %s258
        $region44: #{tpu_custom_call.1} parent=35 // pred_fallthru
          _
      $region36: #{tpu_custom_call.1} parent=5 // pred_fallthru
        _
      %p260 = scmp.le.s32.totalorder 1, %s13
      %p261 = scmp.lt.s32.totalorder %s13, 5
      %p262 = pnand %p260, %p261
      %p263 = pneg %p262
      // Predicated region
      $region45: #{tpu_custom_call.1} parent=5 // pred_check
        _
      $region46: #{tpu_custom_call.1} parent=5 // pred_check_branch
        %265 = sbr.rel (%p262) target = $region48
      $region47: #{tpu_custom_call.1} parent=5 // pred_region
        %s266 = ssub.s32 %s13, 1
        %p267 = scmp.lt.s32.totalorder %s22, 1
        %s268 = scalar_select %p267, %s22, 1
        %s269 = smul.addr %s268, 32
        %s270 = smul.addr %s269, 8
        %s271 = scalar_lea.vmem %s0, %s270
        %p272 = pneg %p51
        %p273 = pneg %p48
        %p274 = scmp.lt.s32.totalorder %s23, 1
        %s275 = scalar_select %p274, %s23, 1
        %s276 = smul.addr %s275, 4
        %s277 = smul.addr %s276, 4
        %s278 = scalar_lea.vmem %s1, %s277
        %p279 = pneg %p77
        %p280 = pneg %p74
        %p281 = pneg %p98
        %p282 = pneg %p95
        %p283 = pneg %p119
        %p284 = pneg %p116
        %p285 = pneg %p140
        %p286 = pneg %p137
        %p287 = pneg %p161
        %p288 = pneg %p158
        %p289 = pneg %p182
        %p290 = pneg %p179
        %p291 = pneg %p210
        %p292 = pneg %p207
        %s293 = sand.u32 %s197, 1
        %s294 = sand.u32 %s197, 1
        %s295 = smul.addr %s294, 256
        %s296 = scalar_lea.vmem [#allocation3], %s295
        %p297 = scmp.lt.s32.totalorder %s22, 1
        %s298 = scalar_select %p297, %s22, 1
        %s299 = smul.addr %s298, 32
        %s300 = smul.addr %s299, 8
        %s301 = scalar_lea.vmem %s0, %s300
        %p302 = scmp.lt.s32.totalorder %s23, 1
        %s303 = scalar_select %p302, %s23, 1
        %s304 = smul.addr %s303, 4
        %s305 = smul.addr %s304, 4
        %s306 = scalar_lea.vmem %s1, %s305
        %vm308 = vcmask 27648
        %309 = vst.msk [vmem:[#allocation2] sm:$0xf] %vm308, 0
        %310 = vst.msk [vmem:[#allocation2 + $0x4] sm:$0xf] %vm308, 0
        %vm311 = vcmask 24576
        %312 = vst.msk [vmem:[#allocation2 + $0x8] sm:$0x1] %vm311, 0
        %313 = vst.msk [vmem:[#allocation2 + $0xc] sm:$0xf] %vm308, 0
        %314 = vst.msk [vmem:[#allocation2 + $0x10] sm:$0xf] %vm308, 0
        %315 = vst.msk [vmem:[#allocation2 + $0x14] sm:$0x1] %vm311, 0
        %316 = vst.msk [vmem:[#allocation2 + $0x18] sm:$0xf] %vm308, 0
        %317 = vst.msk [vmem:[#allocation2 + $0x1c] sm:$0xf] %vm308, 0
        %318 = vst.msk [vmem:[#allocation2 + $0x20] sm:$0x1] %vm311, 0
        %319 = vst.msk [vmem:[#allocation2 + $0x24] sm:$0xf] %vm308, 0
        %320 = vst.msk [vmem:[#allocation2 + $0x28] sm:$0xf] %vm308, 0
        %321 = vst.msk [vmem:[#allocation2 + $0x2c] sm:$0x1] %vm311, 0
        %322 = vst.msk [vmem:[#allocation2 + $0x30] sm:$0xf] %vm308, 0
        %323 = vst.msk [vmem:[#allocation2 + $0x34] sm:$0xf] %vm308, 0
        %324 = vst.msk [vmem:[#allocation2 + $0x38] sm:$0x1] %vm311, 0
        %325 = vst.msk [vmem:[#allocation2 + $0x3c] sm:$0xf] %vm308, 0
        %326 = vst.msk [vmem:[#allocation2 + $0x40] sm:$0xf] %vm308, 0
        %327 = vst.msk [vmem:[#allocation2 + $0x44] sm:$0x1] %vm311, 0
        %328 = vst.msk [vmem:[#allocation2 + $0x48] sm:$0xf] %vm308, 0
        %329 = vst.msk [vmem:[#allocation2 + $0x4c] sm:$0xf] %vm308, 0
        %330 = vst.msk [vmem:[#allocation2 + $0x50] sm:$0x1] %vm311, 0
        %331 = vst.msk [vmem:[#allocation2 + $0x54] sm:$0xf] %vm308, 0
        %332 = vst.msk [vmem:[#allocation2 + $0x58] sm:$0xf] %vm308, 0
        %333 = vst.msk [vmem:[#allocation2 + $0x5c] sm:$0x1] %vm311, 0
        %334 = vst.msk [vmem:[#allocation2 + $0x60] sm:$0xf] %vm308, 0
        %335 = vst.msk [vmem:[#allocation2 + $0x64] sm:$0xf] %vm308, 0
        %336 = vst.msk [vmem:[#allocation2 + $0x68] sm:$0x1] %vm311, 0
        %337 = vst.msk [vmem:[#allocation2 + $0x6c] sm:$0xf] %vm308, 0
        %338 = vst.msk [vmem:[#allocation2 + $0x70] sm:$0xf] %vm308, 0
        %339 = vst.msk [vmem:[#allocation2 + $0x74] sm:$0x1] %vm311, 0
        %340 = vst.msk [vmem:[#allocation2 + $0x78] sm:$0xf] %vm308, 0
        %341 = vst.msk [vmem:[#allocation2 + $0x7c] sm:$0xf] %vm308, 0
        %342 = vst.msk [vmem:[#allocation2 + $0x80] sm:$0x1] %vm311, 0
        %343 = vst.msk [vmem:[#allocation2 + $0x84] sm:$0xf] %vm308, 0
        %344 = vst.msk [vmem:[#allocation2 + $0x88] sm:$0xf] %vm308, 0
        %345 = vst.msk [vmem:[#allocation2 + $0x8c] sm:$0x1] %vm311, 0
        %346 = vst.msk [vmem:[#allocation2 + $0x90] sm:$0xf] %vm308, 0
        %347 = vst.msk [vmem:[#allocation2 + $0x94] sm:$0xf] %vm308, 0
        %348 = vst.msk [vmem:[#allocation2 + $0x98] sm:$0x1] %vm311, 0
        %349 = vst.msk [vmem:[#allocation2 + $0x9c] sm:$0xf] %vm308, 0
        %350 = vst.msk [vmem:[#allocation2 + $0xa0] sm:$0xf] %vm308, 0
        %351 = vst.msk [vmem:[#allocation2 + $0xa4] sm:$0x1] %vm311, 0
        %352 = vst.msk [vmem:[#allocation2 + $0xa8] sm:$0xf] %vm308, 0
        %353 = vst.msk [vmem:[#allocation2 + $0xac] sm:$0xf] %vm308, 0
        %354 = vst.msk [vmem:[#allocation2 + $0xb0] sm:$0x1] %vm311, 0
        %355 = vst.msk [vmem:[#allocation2 + $0xb4] sm:$0xf] %vm308, 0
        %356 = vst.msk [vmem:[#allocation2 + $0xb8] sm:$0xf] %vm308, 0
        %357 = vst.msk [vmem:[#allocation2 + $0xbc] sm:$0x1] %vm311, 0
        %358 = vst.msk [vmem:[#allocation2 + $0xc0] sm:$0xf] %vm308, 0
        %359 = vst.msk [vmem:[#allocation2 + $0xc4] sm:$0xf] %vm308, 0
        %360 = vst.msk [vmem:[#allocation2 + $0xc8] sm:$0x1] %vm311, 0
        %361 = vst.msk [vmem:[#allocation2 + $0xcc] sm:$0xf] %vm308, 0
        %362 = vst.msk [vmem:[#allocation2 + $0xd0] sm:$0xf] %vm308, 0
        %363 = vst.msk [vmem:[#allocation2 + $0xd4] sm:$0x1] %vm311, 0
        %v364 = vld [vmem:[%s301] sm:$0xff]
        %v365 = vld [vmem:[%s301 + $0x8] sm:$0xff]
        %v366 = vld [vmem:[%s301 + $0x10] sm:$0xff]
        %v367 = vld [vmem:[%s301 + $0x18] sm:$0xff]
        %v368 = vld [vmem:[%s301 + $0x20] sm:$0xff]
        %v369 = vld [vmem:[%s301 + $0x28] sm:$0xff]
        %v370 = vld [vmem:[%s301 + $0x30] sm:$0xff]
        %v371 = vld [vmem:[%s301 + $0x38] sm:$0xff]
        %v372 = vld [vmem:[%s301 + $0x40] sm:$0xff]
        %v373 = vld [vmem:[%s301 + $0x48] sm:$0xff]
        %v374 = vld [vmem:[%s301 + $0x50] sm:$0xff]
        %v375 = vld [vmem:[%s301 + $0x58] sm:$0xff]
        %v376 = vld [vmem:[%s301 + $0x60] sm:$0xff]
        %v377 = vld [vmem:[%s301 + $0x68] sm:$0xff]
        %v378 = vld [vmem:[%s301 + $0x70] sm:$0xff]
        %v379 = vld [vmem:[%s301 + $0x78] sm:$0xff]
        %v380 = vld [vmem:[%s301 + $0x80] sm:$0xff]
        %v381 = vld [vmem:[%s301 + $0x88] sm:$0xff]
        %v382 = vld [vmem:[%s301 + $0x90] sm:$0xff]
        %v383 = vld [vmem:[%s301 + $0x98] sm:$0xff]
        %v384 = vld [vmem:[%s301 + $0xa0] sm:$0xff]
        %v385 = vld [vmem:[%s301 + $0xa8] sm:$0xff]
        %v386 = vld [vmem:[%s301 + $0xb0] sm:$0xff]
        %v387 = vld [vmem:[%s301 + $0xb8] sm:$0xff]
        %v388 = vld [vmem:[%s301 + $0xc0] sm:$0xff]
        %v389 = vld [vmem:[%s301 + $0xc8] sm:$0xff]
        %v390 = vld [vmem:[%s301 + $0xd0] sm:$0xff]
        %v391 = vld [vmem:[%s301 + $0xd8] sm:$0xff]
        %v392 = vld [vmem:[%s301 + $0xe0] sm:$0xff]
        %v393 = vld [vmem:[%s301 + $0xe8] sm:$0xff]
        %v394 = vld [vmem:[%s301 + $0xf0] sm:$0xff]
        %v395 = vld [vmem:[%s301 + $0xf8] sm:$0xff]
        %v396 = vpack.c.bf16 %v365, %v364
        %v397 = vpack.c.bf16 %v367, %v366
        %v398 = vpack.c.bf16 %v369, %v368
        %v399 = vpack.c.bf16 %v371, %v370
        %v400 = vpack.c.bf16 %v373, %v372
        %v401 = vpack.c.bf16 %v375, %v374
        %v402 = vpack.c.bf16 %v377, %v376
        %v403 = vpack.c.bf16 %v379, %v378
        %v404 = vpack.c.bf16 %v381, %v380
        %v405 = vpack.c.bf16 %v383, %v382
        %v406 = vpack.c.bf16 %v385, %v384
        %v407 = vpack.c.bf16 %v387, %v386
        %v408 = vpack.c.bf16 %v389, %v388
        %v409 = vpack.c.bf16 %v391, %v390
        %v410 = vpack.c.bf16 %v393, %v392
        %v411 = vpack.c.bf16 %v395, %v394
        %v428 = vunpack.c.l.b16 %v396
        %v429 = vunpack.c.h.b16 %v396
        %v430 = vunpack.c.l.b16 %v397
        %v431 = vunpack.c.h.b16 %v397
        %v432 = vunpack.c.l.b16 %v398
        %v433 = vunpack.c.h.b16 %v398
        %v434 = vunpack.c.l.b16 %v399
        %v435 = vunpack.c.h.b16 %v399
        %v436 = vunpack.c.l.b16 %v400
        %v437 = vunpack.c.h.b16 %v400
        %v438 = vunpack.c.l.b16 %v401
        %v439 = vunpack.c.h.b16 %v401
        %v440 = vunpack.c.l.b16 %v402
        %v441 = vunpack.c.h.b16 %v402
        %v442 = vunpack.c.l.b16 %v403
        %v443 = vunpack.c.h.b16 %v403
        %v444 = vunpack.c.l.b16 %v404
        %v445 = vunpack.c.h.b16 %v404
        %v446 = vunpack.c.l.b16 %v405
        %v447 = vunpack.c.h.b16 %v405
        %v448 = vunpack.c.l.b16 %v406
        %v449 = vunpack.c.h.b16 %v406
        %v450 = vunpack.c.l.b16 %v407
        %v451 = vunpack.c.h.b16 %v407
        %v452 = vunpack.c.l.b16 %v408
        %v453 = vunpack.c.h.b16 %v408
        %v454 = vunpack.c.l.b16 %v409
        %v455 = vunpack.c.h.b16 %v409
        %v456 = vunpack.c.l.b16 %v410
        %v457 = vunpack.c.h.b16 %v410
        %v458 = vunpack.c.l.b16 %v411
        %v459 = vunpack.c.h.b16 %v411
        %v460 = vpack.c.b16 %v428, %v428
        %v461 = vpack.c.b16 %v429, %v429
        %v462 = vpack.c.b16 %v430, %v430
        %v463 = vpack.c.b16 %v431, %v431
        %v464 = vpack.c.b16 %v432, %v432
        %v465 = vpack.c.b16 %v433, %v433
        %v466 = vpack.c.b16 %v434, %v434
        %v467 = vpack.c.b16 %v435, %v435
        %v468 = vpack.c.b16 %v436, %v436
        %v469 = vpack.c.b16 %v437, %v437
        %v470 = vpack.c.b16 %v438, %v438
        %v471 = vpack.c.b16 %v439, %v439
        %v472 = vpack.c.b16 %v440, %v440
        %v473 = vpack.c.b16 %v441, %v441
        %v474 = vpack.c.b16 %v442, %v442
        %v475 = vpack.c.b16 %v443, %v443
        %v476 = vpack.c.b16 %v444, %v444
        %v477 = vpack.c.b16 %v445, %v445
        %v478 = vpack.c.b16 %v446, %v446
        %v479 = vpack.c.b16 %v447, %v447
        %v480 = vpack.c.b16 %v448, %v448
        %v481 = vpack.c.b16 %v449, %v449
        %v482 = vpack.c.b16 %v450, %v450
        %v483 = vpack.c.b16 %v451, %v451
        %v484 = vpack.c.b16 %v452, %v452
        %v485 = vpack.c.b16 %v453, %v453
        %v486 = vpack.c.b16 %v454, %v454
        %v487 = vpack.c.b16 %v455, %v455
        %v488 = vpack.c.b16 %v456, %v456
        %v489 = vpack.c.b16 %v457, %v457
        %v490 = vpack.c.b16 %v458, %v458
        %v491 = vpack.c.b16 %v459, %v459
        %vm492 = vsmask.f32 256
        %vm493 = vsmask.f32 4368
        %vm494 = vmor %vm492, %vm493
        %v496 = vshrl.u32 %v460, 16
        %v498 = vrot.slane %v496, 7
        %v499 = vshll.u32 %v460, 16
        %v501 = vor.u32 %v498, %v499
        %v502 = vrot.slane %v498, 4
        %v504 = vshrl.u32 %v461, 16
        %v506 = vrot.slane %v504, 7
        %v507 = vshll.u32 %v461, 16
        %v509 = vor.u32 %v506, %v507
        %v510 = vsel %vm494, %v502, %v509
        %v511 = vrot.slane %v506, 4
        %v513 = vshrl.u32 %v462, 16
        %v515 = vrot.slane %v513, 7
        %v516 = vshll.u32 %v462, 16
        %v518 = vor.u32 %v515, %v516
        %v519 = vrot.slane %v515, 4
        %v521 = vshrl.u32 %v463, 16
        %v523 = vrot.slane %v521, 7
        %v524 = vshll.u32 %v463, 16
        %v526 = vor.u32 %v523, %v524
        %v527 = vsel %vm494, %v519, %v526
        %v528 = vrot.slane %v523, 4
        %v530 = vshrl.u32 %v464, 16
        %v532 = vrot.slane %v530, 7
        %v533 = vshll.u32 %v464, 16
        %v535 = vor.u32 %v532, %v533
        %v536 = vrot.slane %v532, 4
        %v538 = vshrl.u32 %v465, 16
        %v540 = vrot.slane %v538, 7
        %v541 = vshll.u32 %v465, 16
        %v543 = vor.u32 %v540, %v541
        %v544 = vsel %vm494, %v536, %v543
        %v545 = vrot.slane %v540, 4
        %v547 = vshrl.u32 %v466, 16
        %v549 = vrot.slane %v547, 7
        %v550 = vshll.u32 %v466, 16
        %v552 = vor.u32 %v549, %v550
        %v553 = vrot.slane %v549, 4
        %v555 = vshrl.u32 %v467, 16
        %v557 = vrot.slane %v555, 7
        %v558 = vshll.u32 %v467, 16
        %v560 = vor.u32 %v557, %v558
        %v561 = vsel %vm494, %v553, %v560
        %v562 = vrot.slane %v557, 4
        %v564 = vshrl.u32 %v468, 16
        %v566 = vrot.slane %v564, 7
        %v567 = vshll.u32 %v468, 16
        %v569 = vor.u32 %v566, %v567
        %v570 = vrot.slane %v566, 4
        %v572 = vshrl.u32 %v469, 16
        %v574 = vrot.slane %v572, 7
        %v575 = vshll.u32 %v469, 16
        %v577 = vor.u32 %v574, %v575
        %v578 = vsel %vm494, %v570, %v577
        %v579 = vrot.slane %v574, 4
        %v581 = vshrl.u32 %v470, 16
        %v583 = vrot.slane %v581, 7
        %v584 = vshll.u32 %v470, 16
        %v586 = vor.u32 %v583, %v584
        %v587 = vrot.slane %v583, 4
        %v589 = vshrl.u32 %v471, 16
        %v591 = vrot.slane %v589, 7
        %v592 = vshll.u32 %v471, 16
        %v594 = vor.u32 %v591, %v592
        %v595 = vsel %vm494, %v587, %v594
        %v596 = vrot.slane %v591, 4
        %v598 = vshrl.u32 %v472, 16
        %v600 = vrot.slane %v598, 7
        %v601 = vshll.u32 %v472, 16
        %v603 = vor.u32 %v600, %v601
        %v604 = vrot.slane %v600, 4
        %v606 = vshrl.u32 %v473, 16
        %v608 = vrot.slane %v606, 7
        %v609 = vshll.u32 %v473, 16
        %v611 = vor.u32 %v608, %v609
        %v612 = vsel %vm494, %v604, %v611
        %v613 = vrot.slane %v608, 4
        %v615 = vshrl.u32 %v474, 16
        %v617 = vrot.slane %v615, 7
        %v618 = vshll.u32 %v474, 16
        %v620 = vor.u32 %v617, %v618
        %v621 = vrot.slane %v617, 4
        %v623 = vshrl.u32 %v475, 16
        %v625 = vrot.slane %v623, 7
        %v626 = vshll.u32 %v475, 16
        %v628 = vor.u32 %v625, %v626
        %v629 = vsel %vm494, %v621, %v628
        %v630 = vrot.slane %v625, 4
        %v632 = vshrl.u32 %v476, 16
        %v634 = vrot.slane %v632, 7
        %v635 = vshll.u32 %v476, 16
        %v637 = vor.u32 %v634, %v635
        %v638 = vrot.slane %v634, 4
        %v640 = vshrl.u32 %v477, 16
        %v642 = vrot.slane %v640, 7
        %v643 = vshll.u32 %v477, 16
        %v645 = vor.u32 %v642, %v643
        %v646 = vsel %vm494, %v638, %v645
        %v647 = vrot.slane %v642, 4
        %v649 = vshrl.u32 %v478, 16
        %v651 = vrot.slane %v649, 7
        %v652 = vshll.u32 %v478, 16
        %v654 = vor.u32 %v651, %v652
        %v655 = vrot.slane %v651, 4
        %v657 = vshrl.u32 %v479, 16
        %v659 = vrot.slane %v657, 7
        %v660 = vshll.u32 %v479, 16
        %v662 = vor.u32 %v659, %v660
        %v663 = vsel %vm494, %v655, %v662
        %v664 = vrot.slane %v659, 4
        %v666 = vshrl.u32 %v480, 16
        %v668 = vrot.slane %v666, 7
        %v669 = vshll.u32 %v480, 16
        %v671 = vor.u32 %v668, %v669
        %v672 = vrot.slane %v668, 4
        %v674 = vshrl.u32 %v481, 16
        %v676 = vrot.slane %v674, 7
        %v677 = vshll.u32 %v481, 16
        %v679 = vor.u32 %v676, %v677
        %v680 = vsel %vm494, %v672, %v679
        %v681 = vrot.slane %v676, 4
        %v683 = vshrl.u32 %v482, 16
        %v685 = vrot.slane %v683, 7
        %v686 = vshll.u32 %v482, 16
        %v688 = vor.u32 %v685, %v686
        %v689 = vrot.slane %v685, 4
        %v691 = vshrl.u32 %v483, 16
        %v693 = vrot.slane %v691, 7
        %v694 = vshll.u32 %v483, 16
        %v696 = vor.u32 %v693, %v694
        %v697 = vsel %vm494, %v689, %v696
        %v698 = vrot.slane %v693, 4
        %v700 = vshrl.u32 %v484, 16
        %v702 = vrot.slane %v700, 7
        %v703 = vshll.u32 %v484, 16
        %v705 = vor.u32 %v702, %v703
        %v706 = vrot.slane %v702, 4
        %v708 = vshrl.u32 %v485, 16
        %v710 = vrot.slane %v708, 7
        %v711 = vshll.u32 %v485, 16
        %v713 = vor.u32 %v710, %v711
        %v714 = vsel %vm494, %v706, %v713
        %v715 = vrot.slane %v710, 4
        %v717 = vshrl.u32 %v486, 16
        %v719 = vrot.slane %v717, 7
        %v720 = vshll.u32 %v486, 16
        %v722 = vor.u32 %v719, %v720
        %v723 = vrot.slane %v719, 4
        %v725 = vshrl.u32 %v487, 16
        %v727 = vrot.slane %v725, 7
        %v728 = vshll.u32 %v487, 16
        %v730 = vor.u32 %v727, %v728
        %v731 = vsel %vm494, %v723, %v730
        %v732 = vrot.slane %v727, 4
        %v734 = vshrl.u32 %v488, 16
        %v736 = vrot.slane %v734, 7
        %v737 = vshll.u32 %v488, 16
        %v739 = vor.u32 %v736, %v737
        %v740 = vrot.slane %v736, 4
        %v742 = vshrl.u32 %v489, 16
        %v744 = vrot.slane %v742, 7
        %v745 = vshll.u32 %v489, 16
        %v747 = vor.u32 %v744, %v745
        %v748 = vsel %vm494, %v740, %v747
        %v749 = vrot.slane %v744, 4
        %v751 = vshrl.u32 %v490, 16
        %v753 = vrot.slane %v751, 7
        %v754 = vshll.u32 %v490, 16
        %v756 = vor.u32 %v753, %v754
        %v757 = vrot.slane %v753, 4
        %v759 = vshrl.u32 %v491, 16
        %v761 = vrot.slane %v759, 7
        %v762 = vshll.u32 %v491, 16
        %v764 = vor.u32 %v761, %v762
        %v765 = vsel %vm494, %v757, %v764
        %v766 = vrot.slane %v761, 4
        %s815 = scalar_lea.vmem [#allocation2], 12
        %vm816 = vcmask 27648
        %vm817 = vsmask.f32 7938
        %vm818 = vmand %vm816, %vm817
        %v819 = vld [vmem:[%s815] sm:$0xf]
        %v820 = vsel %vm818, %v501, %v819
        %821 = vst [vmem:[%s815] sm:$0xf] %v820
        %822 = vst.msk [vmem:[%s815 + $0x4] sm:$0xf] %vm308, %v510
        %vm823 = vcmask 24576
        %vm824 = vmand %vm823, %vm492
        %v825 = vld [vmem:[%s815 + $0x8] sm:$0x1]
        %v826 = vsel %vm824, %v511, %v825
        %827 = vst [vmem:[%s815 + $0x8] sm:$0x1] %v826
        %v828 = vld [vmem:[%s815 + $0xc] sm:$0xf]
        %v829 = vsel %vm818, %v518, %v828
        %830 = vst [vmem:[%s815 + $0xc] sm:$0xf] %v829
        %831 = vst.msk [vmem:[%s815 + $0x10] sm:$0xf] %vm308, %v527
        %v832 = vld [vmem:[%s815 + $0x14] sm:$0x1]
        %v833 = vsel %vm824, %v528, %v832
        %834 = vst [vmem:[%s815 + $0x14] sm:$0x1] %v833
        %v835 = vld [vmem:[%s815 + $0x18] sm:$0xf]
        %v836 = vsel %vm818, %v535, %v835
        %837 = vst [vmem:[%s815 + $0x18] sm:$0xf] %v836
        %838 = vst.msk [vmem:[%s815 + $0x1c] sm:$0xf] %vm308, %v544
        %v839 = vld [vmem:[%s815 + $0x20] sm:$0x1]
        %v840 = vsel %vm824, %v545, %v839
        %841 = vst [vmem:[%s815 + $0x20] sm:$0x1] %v840
        %v842 = vld [vmem:[%s815 + $0x24] sm:$0xf]
        %v843 = vsel %vm818, %v552, %v842
        %844 = vst [vmem:[%s815 + $0x24] sm:$0xf] %v843
        %845 = vst.msk [vmem:[%s815 + $0x28] sm:$0xf] %vm308, %v561
        %v846 = vld [vmem:[%s815 + $0x2c] sm:$0x1]
        %v847 = vsel %vm824, %v562, %v846
        %848 = vst [vmem:[%s815 + $0x2c] sm:$0x1] %v847
        %v849 = vld [vmem:[%s815 + $0x30] sm:$0xf]
        %v850 = vsel %vm818, %v569, %v849
        %851 = vst [vmem:[%s815 + $0x30] sm:$0xf] %v850
        %852 = vst.msk [vmem:[%s815 + $0x34] sm:$0xf] %vm308, %v578
        %v853 = vld [vmem:[%s815 + $0x38] sm:$0x1]
        %v854 = vsel %vm824, %v579, %v853
        %855 = vst [vmem:[%s815 + $0x38] sm:$0x1] %v854
        %v856 = vld [vmem:[%s815 + $0x3c] sm:$0xf]
        %v857 = vsel %vm818, %v586, %v856
        %858 = vst [vmem:[%s815 + $0x3c] sm:$0xf] %v857
        %859 = vst.msk [vmem:[%s815 + $0x40] sm:$0xf] %vm308, %v595
        %v860 = vld [vmem:[%s815 + $0x44] sm:$0x1]
        %v861 = vsel %vm824, %v596, %v860
        %862 = vst [vmem:[%s815 + $0x44] sm:$0x1] %v861
        %v863 = vld [vmem:[%s815 + $0x48] sm:$0xf]
        %v864 = vsel %vm818, %v603, %v863
        %865 = vst [vmem:[%s815 + $0x48] sm:$0xf] %v864
        %866 = vst.msk [vmem:[%s815 + $0x4c] sm:$0xf] %vm308, %v612
        %v867 = vld [vmem:[%s815 + $0x50] sm:$0x1]
        %v868 = vsel %vm824, %v613, %v867
        %869 = vst [vmem:[%s815 + $0x50] sm:$0x1] %v868
        %v870 = vld [vmem:[%s815 + $0x54] sm:$0xf]
        %v871 = vsel %vm818, %v620, %v870
        %872 = vst [vmem:[%s815 + $0x54] sm:$0xf] %v871
        %873 = vst.msk [vmem:[%s815 + $0x58] sm:$0xf] %vm308, %v629
        %v874 = vld [vmem:[%s815 + $0x5c] sm:$0x1]
        %v875 = vsel %vm824, %v630, %v874
        %876 = vst [vmem:[%s815 + $0x5c] sm:$0x1] %v875
        %v877 = vld [vmem:[%s815 + $0x60] sm:$0xf]
        %v878 = vsel %vm818, %v637, %v877
        %879 = vst [vmem:[%s815 + $0x60] sm:$0xf] %v878
        %880 = vst.msk [vmem:[%s815 + $0x64] sm:$0xf] %vm308, %v646
        %v881 = vld [vmem:[%s815 + $0x68] sm:$0x1]
        %v882 = vsel %vm824, %v647, %v881
        %883 = vst [vmem:[%s815 + $0x68] sm:$0x1] %v882
        %v884 = vld [vmem:[%s815 + $0x6c] sm:$0xf]
        %v885 = vsel %vm818, %v654, %v884
        %886 = vst [vmem:[%s815 + $0x6c] sm:$0xf] %v885
        %887 = vst.msk [vmem:[%s815 + $0x70] sm:$0xf] %vm308, %v663
        %v888 = vld [vmem:[%s815 + $0x74] sm:$0x1]
        %v889 = vsel %vm824, %v664, %v888
        %890 = vst [vmem:[%s815 + $0x74] sm:$0x1] %v889
        %v891 = vld [vmem:[%s815 + $0x78] sm:$0xf]
        %v892 = vsel %vm818, %v671, %v891
        %893 = vst [vmem:[%s815 + $0x78] sm:$0xf] %v892
        %894 = vst.msk [vmem:[%s815 + $0x7c] sm:$0xf] %vm308, %v680
        %v895 = vld [vmem:[%s815 + $0x80] sm:$0x1]
        %v896 = vsel %vm824, %v681, %v895
        %897 = vst [vmem:[%s815 + $0x80] sm:$0x1] %v896
        %v898 = vld [vmem:[%s815 + $0x84] sm:$0xf]
        %v899 = vsel %vm818, %v688, %v898
        %900 = vst [vmem:[%s815 + $0x84] sm:$0xf] %v899
        %901 = vst.msk [vmem:[%s815 + $0x88] sm:$0xf] %vm308, %v697
        %v902 = vld [vmem:[%s815 + $0x8c] sm:$0x1]
        %v903 = vsel %vm824, %v698, %v902
        %904 = vst [vmem:[%s815 + $0x8c] sm:$0x1] %v903
        %v905 = vld [vmem:[%s815 + $0x90] sm:$0xf]
        %v906 = vsel %vm818, %v705, %v905
        %907 = vst [vmem:[%s815 + $0x90] sm:$0xf] %v906
        %908 = vst.msk [vmem:[%s815 + $0x94] sm:$0xf] %vm308, %v714
        %v909 = vld [vmem:[%s815 + $0x98] sm:$0x1]
        %v910 = vsel %vm824, %v715, %v909
        %911 = vst [vmem:[%s815 + $0x98] sm:$0x1] %v910
        %v912 = vld [vmem:[%s815 + $0x9c] sm:$0xf]
        %v913 = vsel %vm818, %v722, %v912
        %914 = vst [vmem:[%s815 + $0x9c] sm:$0xf] %v913
        %915 = vst.msk [vmem:[%s815 + $0xa0] sm:$0xf] %vm308, %v731
        %v916 = vld [vmem:[%s815 + $0xa4] sm:$0x1]
        %v917 = vsel %vm824, %v732, %v916
        %918 = vst [vmem:[%s815 + $0xa4] sm:$0x1] %v917
        %v919 = vld [vmem:[%s815 + $0xa8] sm:$0xf]
        %v920 = vsel %vm818, %v739, %v919
        %921 = vst [vmem:[%s815 + $0xa8] sm:$0xf] %v920
        %922 = vst.msk [vmem:[%s815 + $0xac] sm:$0xf] %vm308, %v748
        %v923 = vld [vmem:[%s815 + $0xb0] sm:$0x1]
        %v924 = vsel %vm824, %v749, %v923
        %925 = vst [vmem:[%s815 + $0xb0] sm:$0x1] %v924
        %v926 = vld [vmem:[%s815 + $0xb4] sm:$0xf]
        %v927 = vsel %vm818, %v756, %v926
        %928 = vst [vmem:[%s815 + $0xb4] sm:$0xf] %v927
        %929 = vst.msk [vmem:[%s815 + $0xb8] sm:$0xf] %vm308, %v765
        %v930 = vld [vmem:[%s815 + $0xbc] sm:$0x1]
        %v931 = vsel %vm824, %v766, %v930
        %932 = vst [vmem:[%s815 + $0xbc] sm:$0x1] %v931
        %s933 = smul.u32 %s23, 3
        %s934 = smul.addr %s933, 4
        %s935 = scalar_lea.vmem [#allocation2], %s934
        %v936 = vld [vmem:[%s935] sm:$0xf]
        %v937 = vld [vmem:[%s935 + $0x4] sm:$0xf]
        %v938 = vld [vmem:[%s935 + $0xc] sm:$0xf]
        %v939 = vld [vmem:[%s935 + $0x10] sm:$0xf]
        %v940 = vld [vmem:[%s935 + $0x18] sm:$0xf]
        %v941 = vld [vmem:[%s935 + $0x1c] sm:$0xf]
        %v942 = vld [vmem:[%s935 + $0x24] sm:$0xf]
        %v943 = vld [vmem:[%s935 + $0x28] sm:$0xf]
        %v944 = vld [vmem:[%s935 + $0x30] sm:$0xf]
        %v945 = vld [vmem:[%s935 + $0x34] sm:$0xf]
        %v946 = vld [vmem:[%s935 + $0x3c] sm:$0xf]
        %v947 = vld [vmem:[%s935 + $0x40] sm:$0xf]
        %v948 = vld [vmem:[%s935 + $0x48] sm:$0xf]
        %v949 = vld [vmem:[%s935 + $0x4c] sm:$0xf]
        %v950 = vld [vmem:[%s935 + $0x54] sm:$0xf]
        %v951 = vld [vmem:[%s935 + $0x58] sm:$0xf]
        %v952 = vld [vmem:[%s935 + $0x60] sm:$0xf]
        %v953 = vld [vmem:[%s935 + $0x64] sm:$0xf]
        %v954 = vld [vmem:[%s935 + $0x6c] sm:$0xf]
        %v955 = vld [vmem:[%s935 + $0x70] sm:$0xf]
        %v956 = vld [vmem:[%s935 + $0x78] sm:$0xf]
        %v957 = vld [vmem:[%s935 + $0x7c] sm:$0xf]
        %v958 = vld [vmem:[%s935 + $0x84] sm:$0xf]
        %v959 = vld [vmem:[%s935 + $0x88] sm:$0xf]
        %v960 = vld [vmem:[%s935 + $0x90] sm:$0xf]
        %v961 = vld [vmem:[%s935 + $0x94] sm:$0xf]
        %v962 = vld [vmem:[%s935 + $0x9c] sm:$0xf]
        %v963 = vld [vmem:[%s935 + $0xa0] sm:$0xf]
        %v964 = vld [vmem:[%s935 + $0xa8] sm:$0xf]
        %v965 = vld [vmem:[%s935 + $0xac] sm:$0xf]
        %v966 = vld [vmem:[%s935 + $0xb4] sm:$0xf]
        %v967 = vld [vmem:[%s935 + $0xb8] sm:$0xf]
        %v968 = vld [vmem:[%s935 + $0x8] sm:$0x1]
        %v969 = vld [vmem:[%s935 + $0x14] sm:$0x1]
        %v970 = vld [vmem:[%s935 + $0x20] sm:$0x1]
        %v971 = vld [vmem:[%s935 + $0x2c] sm:$0x1]
        %v972 = vld [vmem:[%s935 + $0x38] sm:$0x1]
        %v973 = vld [vmem:[%s935 + $0x44] sm:$0x1]
        %v974 = vld [vmem:[%s935 + $0x50] sm:$0x1]
        %v975 = vld [vmem:[%s935 + $0x5c] sm:$0x1]
        %v976 = vld [vmem:[%s935 + $0x68] sm:$0x1]
        %v977 = vld [vmem:[%s935 + $0x74] sm:$0x1]
        %v978 = vld [vmem:[%s935 + $0x80] sm:$0x1]
        %v979 = vld [vmem:[%s935 + $0x8c] sm:$0x1]
        %v980 = vld [vmem:[%s935 + $0x98] sm:$0x1]
        %v981 = vld [vmem:[%s935 + $0xa4] sm:$0x1]
        %v982 = vld [vmem:[%s935 + $0xb0] sm:$0x1]
        %v983 = vld [vmem:[%s935 + $0xbc] sm:$0x1]
        %s984 = sadd.s32 %s23, 1
        %s985 = smul.u32 %s984, 3
        %s986 = smul.addr %s985, 4
        %s987 = scalar_lea.vmem [#allocation2], %s986
        %v988 = vld [vmem:[%s987] sm:$0xf]
        %v989 = vld [vmem:[%s987 + $0x4] sm:$0xf]
        %v990 = vld [vmem:[%s987 + $0xc] sm:$0xf]
        %v991 = vld [vmem:[%s987 + $0x10] sm:$0xf]
        %v992 = vld [vmem:[%s987 + $0x18] sm:$0xf]
        %v993 = vld [vmem:[%s987 + $0x1c] sm:$0xf]
        %v994 = vld [vmem:[%s987 + $0x24] sm:$0xf]
        %v995 = vld [vmem:[%s987 + $0x28] sm:$0xf]
        %v996 = vld [vmem:[%s987 + $0x30] sm:$0xf]
        %v997 = vld [vmem:[%s987 + $0x34] sm:$0xf]
        %v998 = vld [vmem:[%s987 + $0x3c] sm:$0xf]
        %v999 = vld [vmem:[%s987 + $0x40] sm:$0xf]
        %v1000 = vld [vmem:[%s987 + $0x48] sm:$0xf]
        %v1001 = vld [vmem:[%s987 + $0x4c] sm:$0xf]
        %v1002 = vld [vmem:[%s987 + $0x54] sm:$0xf]
        %v1003 = vld [vmem:[%s987 + $0x58] sm:$0xf]
        %v1004 = vld [vmem:[%s987 + $0x60] sm:$0xf]
        %v1005 = vld [vmem:[%s987 + $0x64] sm:$0xf]
        %v1006 = vld [vmem:[%s987 + $0x6c] sm:$0xf]
        %v1007 = vld [vmem:[%s987 + $0x70] sm:$0xf]
        %v1008 = vld [vmem:[%s987 + $0x78] sm:$0xf]
        %v1009 = vld [vmem:[%s987 + $0x7c] sm:$0xf]
        %v1010 = vld [vmem:[%s987 + $0x84] sm:$0xf]
        %v1011 = vld [vmem:[%s987 + $0x88] sm:$0xf]
        %v1012 = vld [vmem:[%s987 + $0x90] sm:$0xf]
        %v1013 = vld [vmem:[%s987 + $0x94] sm:$0xf]
        %v1014 = vld [vmem:[%s987 + $0x9c] sm:$0xf]
        %v1015 = vld [vmem:[%s987 + $0xa0] sm:$0xf]
        %v1016 = vld [vmem:[%s987 + $0xa8] sm:$0xf]
        %v1017 = vld [vmem:[%s987 + $0xac] sm:$0xf]
        %v1018 = vld [vmem:[%s987 + $0xb4] sm:$0xf]
        %v1019 = vld [vmem:[%s987 + $0xb8] sm:$0xf]
        %v1020 = vld [vmem:[%s987 + $0x8] sm:$0x1]
        %v1021 = vld [vmem:[%s987 + $0x14] sm:$0x1]
        %v1022 = vld [vmem:[%s987 + $0x20] sm:$0x1]
        %v1023 = vld [vmem:[%s987 + $0x2c] sm:$0x1]
        %v1024 = vld [vmem:[%s987 + $0x38] sm:$0x1]
        %v1025 = vld [vmem:[%s987 + $0x44] sm:$0x1]
        %v1026 = vld [vmem:[%s987 + $0x50] sm:$0x1]
        %v1027 = vld [vmem:[%s987 + $0x5c] sm:$0x1]
        %v1028 = vld [vmem:[%s987 + $0x68] sm:$0x1]
        %v1029 = vld [vmem:[%s987 + $0x74] sm:$0x1]
        %v1030 = vld [vmem:[%s987 + $0x80] sm:$0x1]
        %v1031 = vld [vmem:[%s987 + $0x8c] sm:$0x1]
        %v1032 = vld [vmem:[%s987 + $0x98] sm:$0x1]
        %v1033 = vld [vmem:[%s987 + $0xa4] sm:$0x1]
        %v1034 = vld [vmem:[%s987 + $0xb0] sm:$0x1]
        %v1035 = vld [vmem:[%s987 + $0xbc] sm:$0x1]
        %v1068 = vunpack.c.l.b16 %v936
        %v1069 = vunpack.c.l.b16 %v937
        %v1070 = vunpack.c.l.b16 %v938
        %v1071 = vunpack.c.l.b16 %v939
        %v1072 = vunpack.c.l.b16 %v940
        %v1073 = vunpack.c.l.b16 %v941
        %v1074 = vunpack.c.l.b16 %v942
        %v1075 = vunpack.c.l.b16 %v943
        %v1076 = vunpack.c.l.b16 %v944
        %v1077 = vunpack.c.l.b16 %v945
        %v1078 = vunpack.c.l.b16 %v946
        %v1079 = vunpack.c.l.b16 %v947
        %v1080 = vunpack.c.l.b16 %v948
        %v1081 = vunpack.c.l.b16 %v949
        %v1082 = vunpack.c.l.b16 %v950
        %v1083 = vunpack.c.l.b16 %v951
        %v1084 = vunpack.c.l.b16 %v952
        %v1085 = vunpack.c.l.b16 %v953
        %v1086 = vunpack.c.l.b16 %v954
        %v1087 = vunpack.c.l.b16 %v955
        %v1088 = vunpack.c.l.b16 %v956
        %v1089 = vunpack.c.l.b16 %v957
        %v1090 = vunpack.c.l.b16 %v958
        %v1091 = vunpack.c.l.b16 %v959
        %v1092 = vunpack.c.l.b16 %v960
        %v1093 = vunpack.c.l.b16 %v961
        %v1094 = vunpack.c.l.b16 %v962
        %v1095 = vunpack.c.l.b16 %v963
        %v1096 = vunpack.c.l.b16 %v964
        %v1097 = vunpack.c.l.b16 %v965
        %v1098 = vunpack.c.l.b16 %v966
        %v1099 = vunpack.c.l.b16 %v967
        %v1100 = vpack.c.b16 %v1069, %v1068
        %v1101 = vpack.c.b16 %v1071, %v1070
        %v1102 = vpack.c.b16 %v1073, %v1072
        %v1103 = vpack.c.b16 %v1075, %v1074
        %v1104 = vpack.c.b16 %v1077, %v1076
        %v1105 = vpack.c.b16 %v1079, %v1078
        %v1106 = vpack.c.b16 %v1081, %v1080
        %v1107 = vpack.c.b16 %v1083, %v1082
        %v1108 = vpack.c.b16 %v1085, %v1084
        %v1109 = vpack.c.b16 %v1087, %v1086
        %v1110 = vpack.c.b16 %v1089, %v1088
        %v1111 = vpack.c.b16 %v1091, %v1090
        %v1112 = vpack.c.b16 %v1093, %v1092
        %v1113 = vpack.c.b16 %v1095, %v1094
        %v1114 = vpack.c.b16 %v1097, %v1096
        %v1115 = vpack.c.b16 %v1099, %v1098
        %v1132 = vunpack.c.l.b16 %v968
        %v1133 = vunpack.c.l.b16 %v969
        %v1134 = vunpack.c.l.b16 %v970
        %v1135 = vunpack.c.l.b16 %v971
        %v1136 = vunpack.c.l.b16 %v972
        %v1137 = vunpack.c.l.b16 %v973
        %v1138 = vunpack.c.l.b16 %v974
        %v1139 = vunpack.c.l.b16 %v975
        %v1140 = vunpack.c.l.b16 %v976
        %v1141 = vunpack.c.l.b16 %v977
        %v1142 = vunpack.c.l.b16 %v978
        %v1143 = vunpack.c.l.b16 %v979
        %v1144 = vunpack.c.l.b16 %v980
        %v1145 = vunpack.c.l.b16 %v981
        %v1146 = vunpack.c.l.b16 %v982
        %v1147 = vunpack.c.l.b16 %v983
        %v1148 = vpack.c.b16 %v1132, %v1132
        %v1149 = vpack.c.b16 %v1133, %v1133
        %v1150 = vpack.c.b16 %v1134, %v1134
        %v1151 = vpack.c.b16 %v1135, %v1135
        %v1152 = vpack.c.b16 %v1136, %v1136
        %v1153 = vpack.c.b16 %v1137, %v1137
        %v1154 = vpack.c.b16 %v1138, %v1138
        %v1155 = vpack.c.b16 %v1139, %v1139
        %v1156 = vpack.c.b16 %v1140, %v1140
        %v1157 = vpack.c.b16 %v1141, %v1141
        %v1158 = vpack.c.b16 %v1142, %v1142
        %v1159 = vpack.c.b16 %v1143, %v1143
        %v1160 = vpack.c.b16 %v1144, %v1144
        %v1161 = vpack.c.b16 %v1145, %v1145
        %v1162 = vpack.c.b16 %v1146, %v1146
        %v1163 = vpack.c.b16 %v1147, %v1147
        %vm1164 = vsmask.f32 7424
        %v1166 = vshrl.u32 %v1100, 16
        %v1168 = vshll.u32 %v1100, 16
        %v1170 = vrot.slane %v1168, 1
        %v1171 = vor.u32 %v1166, %v1170
        %v1173 = vshll.u32 %v1148, 16
        %v1175 = vrot.slane %v1173, 1
        %v1176 = vsel %vm1164, %v1171, %v1175
        %v1178 = vshrl.u32 %v1101, 16
        %v1180 = vshll.u32 %v1101, 16
        %v1182 = vrot.slane %v1180, 1
        %v1183 = vor.u32 %v1178, %v1182
        %v1185 = vshll.u32 %v1149, 16
        %v1187 = vrot.slane %v1185, 1
        %v1188 = vsel %vm1164, %v1183, %v1187
        %v1190 = vshrl.u32 %v1102, 16
        %v1192 = vshll.u32 %v1102, 16
        %v1194 = vrot.slane %v1192, 1
        %v1195 = vor.u32 %v1190, %v1194
        %v1197 = vshll.u32 %v1150, 16
        %v1199 = vrot.slane %v1197, 1
        %v1200 = vsel %vm1164, %v1195, %v1199
        %v1202 = vshrl.u32 %v1103, 16
        %v1204 = vshll.u32 %v1103, 16
        %v1206 = vrot.slane %v1204, 1
        %v1207 = vor.u32 %v1202, %v1206
        %v1209 = vshll.u32 %v1151, 16
        %v1211 = vrot.slane %v1209, 1
        %v1212 = vsel %vm1164, %v1207, %v1211
        %v1214 = vshrl.u32 %v1104, 16
        %v1216 = vshll.u32 %v1104, 16
        %v1218 = vrot.slane %v1216, 1
        %v1219 = vor.u32 %v1214, %v1218
        %v1221 = vshll.u32 %v1152, 16
        %v1223 = vrot.slane %v1221, 1
        %v1224 = vsel %vm1164, %v1219, %v1223
        %v1226 = vshrl.u32 %v1105, 16
        %v1228 = vshll.u32 %v1105, 16
        %v1230 = vrot.slane %v1228, 1
        %v1231 = vor.u32 %v1226, %v1230
        %v1233 = vshll.u32 %v1153, 16
        %v1235 = vrot.slane %v1233, 1
        %v1236 = vsel %vm1164, %v1231, %v1235
        %v1238 = vshrl.u32 %v1106, 16
        %v1240 = vshll.u32 %v1106, 16
        %v1242 = vrot.slane %v1240, 1
        %v1243 = vor.u32 %v1238, %v1242
        %v1245 = vshll.u32 %v1154, 16
        %v1247 = vrot.slane %v1245, 1
        %v1248 = vsel %vm1164, %v1243, %v1247
        %v1250 = vshrl.u32 %v1107, 16
        %v1252 = vshll.u32 %v1107, 16
        %v1254 = vrot.slane %v1252, 1
        %v1255 = vor.u32 %v1250, %v1254
        %v1257 = vshll.u32 %v1155, 16
        %v1259 = vrot.slane %v1257, 1
        %v1260 = vsel %vm1164, %v1255, %v1259
        %v1262 = vshrl.u32 %v1108, 16
        %v1264 = vshll.u32 %v1108, 16
        %v1266 = vrot.slane %v1264, 1
        %v1267 = vor.u32 %v1262, %v1266
        %v1269 = vshll.u32 %v1156, 16
        %v1271 = vrot.slane %v1269, 1
        %v1272 = vsel %vm1164, %v1267, %v1271
        %v1274 = vshrl.u32 %v1109, 16
        %v1276 = vshll.u32 %v1109, 16
        %v1278 = vrot.slane %v1276, 1
        %v1279 = vor.u32 %v1274, %v1278
        %v1281 = vshll.u32 %v1157, 16
        %v1283 = vrot.slane %v1281, 1
        %v1284 = vsel %vm1164, %v1279, %v1283
        %v1286 = vshrl.u32 %v1110, 16
        %v1288 = vshll.u32 %v1110, 16
        %v1290 = vrot.slane %v1288, 1
        %v1291 = vor.u32 %v1286, %v1290
        %v1293 = vshll.u32 %v1158, 16
        %v1295 = vrot.slane %v1293, 1
        %v1296 = vsel %vm1164, %v1291, %v1295
        %v1298 = vshrl.u32 %v1111, 16
        %v1300 = vshll.u32 %v1111, 16
        %v1302 = vrot.slane %v1300, 1
        %v1303 = vor.u32 %v1298, %v1302
        %v1305 = vshll.u32 %v1159, 16
        %v1307 = vrot.slane %v1305, 1
        %v1308 = vsel %vm1164, %v1303, %v1307
        %v1310 = vshrl.u32 %v1112, 16
        %v1312 = vshll.u32 %v1112, 16
        %v1314 = vrot.slane %v1312, 1
        %v1315 = vor.u32 %v1310, %v1314
        %v1317 = vshll.u32 %v1160, 16
        %v1319 = vrot.slane %v1317, 1
        %v1320 = vsel %vm1164, %v1315, %v1319
        %v1322 = vshrl.u32 %v1113, 16
        %v1324 = vshll.u32 %v1113, 16
        %v1326 = vrot.slane %v1324, 1
        %v1327 = vor.u32 %v1322, %v1326
        %v1329 = vshll.u32 %v1161, 16
        %v1331 = vrot.slane %v1329, 1
        %v1332 = vsel %vm1164, %v1327, %v1331
        %v1334 = vshrl.u32 %v1114, 16
        %v1336 = vshll.u32 %v1114, 16
        %v1338 = vrot.slane %v1336, 1
        %v1339 = vor.u32 %v1334, %v1338
        %v1341 = vshll.u32 %v1162, 16
        %v1343 = vrot.slane %v1341, 1
        %v1344 = vsel %vm1164, %v1339, %v1343
        %v1346 = vshrl.u32 %v1115, 16
        %v1348 = vshll.u32 %v1115, 16
        %v1350 = vrot.slane %v1348, 1
        %v1351 = vor.u32 %v1346, %v1350
        %v1353 = vshll.u32 %v1163, 16
        %v1355 = vrot.slane %v1353, 1
        %v1356 = vsel %vm1164, %v1351, %v1355
        %1357 = vrot.lane.b32.xlu0 %v1176, 4
        %v1358 = vpop.permute.xlu0 %1357
        %1359 = vrot.lane.b32.xlu0 %v1188, 4
        %v1360 = vpop.permute.xlu0 %1359
        %1361 = vrot.lane.b32.xlu0 %v1200, 4
        %v1362 = vpop.permute.xlu0 %1361
        %1363 = vrot.lane.b32.xlu0 %v1212, 4
        %v1364 = vpop.permute.xlu0 %1363
        %1365 = vrot.lane.b32.xlu0 %v1224, 4
        %v1366 = vpop.permute.xlu0 %1365
        %1367 = vrot.lane.b32.xlu0 %v1236, 4
        %v1368 = vpop.permute.xlu0 %1367
        %1369 = vrot.lane.b32.xlu0 %v1248, 4
        %v1370 = vpop.permute.xlu0 %1369
        %1371 = vrot.lane.b32.xlu0 %v1260, 4
        %v1372 = vpop.permute.xlu0 %1371
        %1373 = vrot.lane.b32.xlu0 %v1272, 4
        %v1374 = vpop.permute.xlu0 %1373
        %1375 = vrot.lane.b32.xlu0 %v1284, 4
        %v1376 = vpop.permute.xlu0 %1375
        %1377 = vrot.lane.b32.xlu0 %v1296, 4
        %v1378 = vpop.permute.xlu0 %1377
        %1379 = vrot.lane.b32.xlu0 %v1308, 4
        %v1380 = vpop.permute.xlu0 %1379
        %1381 = vrot.lane.b32.xlu0 %v1320, 4
        %v1382 = vpop.permute.xlu0 %1381
        %1383 = vrot.lane.b32.xlu0 %v1332, 4
        %v1384 = vpop.permute.xlu0 %1383
        %1385 = vrot.lane.b32.xlu0 %v1344, 4
        %v1386 = vpop.permute.xlu0 %1385
        %1387 = vrot.lane.b32.xlu0 %v1356, 4
        %v1388 = vpop.permute.xlu0 %1387
        %v1421 = vunpack.c.l.b16 %v988
        %v1422 = vunpack.c.l.b16 %v989
        %v1423 = vunpack.c.l.b16 %v990
        %v1424 = vunpack.c.l.b16 %v991
        %v1425 = vunpack.c.l.b16 %v992
        %v1426 = vunpack.c.l.b16 %v993
        %v1427 = vunpack.c.l.b16 %v994
        %v1428 = vunpack.c.l.b16 %v995
        %v1429 = vunpack.c.l.b16 %v996
        %v1430 = vunpack.c.l.b16 %v997
        %v1431 = vunpack.c.l.b16 %v998
        %v1432 = vunpack.c.l.b16 %v999
        %v1433 = vunpack.c.l.b16 %v1000
        %v1434 = vunpack.c.l.b16 %v1001
        %v1435 = vunpack.c.l.b16 %v1002
        %v1436 = vunpack.c.l.b16 %v1003
        %v1437 = vunpack.c.l.b16 %v1004
        %v1438 = vunpack.c.l.b16 %v1005
        %v1439 = vunpack.c.l.b16 %v1006
        %v1440 = vunpack.c.l.b16 %v1007
        %v1441 = vunpack.c.l.b16 %v1008
        %v1442 = vunpack.c.l.b16 %v1009
        %v1443 = vunpack.c.l.b16 %v1010
        %v1444 = vunpack.c.l.b16 %v1011
        %v1445 = vunpack.c.l.b16 %v1012
        %v1446 = vunpack.c.l.b16 %v1013
        %v1447 = vunpack.c.l.b16 %v1014
        %v1448 = vunpack.c.l.b16 %v1015
        %v1449 = vunpack.c.l.b16 %v1016
        %v1450 = vunpack.c.l.b16 %v1017
        %v1451 = vunpack.c.l.b16 %v1018
        %v1452 = vunpack.c.l.b16 %v1019
        %v1453 = vpack.c.b16 %v1422, %v1421
        %v1454 = vpack.c.b16 %v1424, %v1423
        %v1455 = vpack.c.b16 %v1426, %v1425
        %v1456 = vpack.c.b16 %v1428, %v1427
        %v1457 = vpack.c.b16 %v1430, %v1429
        %v1458 = vpack.c.b16 %v1432, %v1431
        %v1459 = vpack.c.b16 %v1434, %v1433
        %v1460 = vpack.c.b16 %v1436, %v1435
        %v1461 = vpack.c.b16 %v1438, %v1437
        %v1462 = vpack.c.b16 %v1440, %v1439
        %v1463 = vpack.c.b16 %v1442, %v1441
        %v1464 = vpack.c.b16 %v1444, %v1443
        %v1465 = vpack.c.b16 %v1446, %v1445
        %v1466 = vpack.c.b16 %v1448, %v1447
        %v1467 = vpack.c.b16 %v1450, %v1449
        %v1468 = vpack.c.b16 %v1452, %v1451
        %1469 = vrot.lane.b32.xlu0 %v1453, 8
        %v1470 = vpop.permute.xlu0 %1469
        %1471 = vrot.lane.b32.xlu0 %v1454, 8
        %v1472 = vpop.permute.xlu0 %1471
        %1473 = vrot.lane.b32.xlu0 %v1455, 8
        %v1474 = vpop.permute.xlu0 %1473
        %1475 = vrot.lane.b32.xlu0 %v1456, 8
        %v1476 = vpop.permute.xlu0 %1475
        %1477 = vrot.lane.b32.xlu0 %v1457, 8
        %v1478 = vpop.permute.xlu0 %1477
        %1479 = vrot.lane.b32.xlu0 %v1458, 8
        %v1480 = vpop.permute.xlu0 %1479
        %1481 = vrot.lane.b32.xlu0 %v1459, 8
        %v1482 = vpop.permute.xlu0 %1481
        %1483 = vrot.lane.b32.xlu0 %v1460, 8
        %v1484 = vpop.permute.xlu0 %1483
        %1485 = vrot.lane.b32.xlu0 %v1461, 8
        %v1486 = vpop.permute.xlu0 %1485
        %1487 = vrot.lane.b32.xlu0 %v1462, 8
        %v1488 = vpop.permute.xlu0 %1487
        %1489 = vrot.lane.b32.xlu0 %v1463, 8
        %v1490 = vpop.permute.xlu0 %1489
        %1491 = vrot.lane.b32.xlu0 %v1464, 8
        %v1492 = vpop.permute.xlu0 %1491
        %1493 = vrot.lane.b32.xlu0 %v1465, 8
        %v1494 = vpop.permute.xlu0 %1493
        %1495 = vrot.lane.b32.xlu0 %v1466, 8
        %v1496 = vpop.permute.xlu0 %1495
        %1497 = vrot.lane.b32.xlu0 %v1467, 8
        %v1498 = vpop.permute.xlu0 %1497
        %1499 = vrot.lane.b32.xlu0 %v1468, 8
        %v1500 = vpop.permute.xlu0 %1499
        %v1517 = vunpack.c.l.b16 %v1020
        %v1518 = vunpack.c.l.b16 %v1021
        %v1519 = vunpack.c.l.b16 %v1022
        %v1520 = vunpack.c.l.b16 %v1023
        %v1521 = vunpack.c.l.b16 %v1024
        %v1522 = vunpack.c.l.b16 %v1025
        %v1523 = vunpack.c.l.b16 %v1026
        %v1524 = vunpack.c.l.b16 %v1027
        %v1525 = vunpack.c.l.b16 %v1028
        %v1526 = vunpack.c.l.b16 %v1029
        %v1527 = vunpack.c.l.b16 %v1030
        %v1528 = vunpack.c.l.b16 %v1031
        %v1529 = vunpack.c.l.b16 %v1032
        %v1530 = vunpack.c.l.b16 %v1033
        %v1531 = vunpack.c.l.b16 %v1034
        %v1532 = vunpack.c.l.b16 %v1035
        %v1533 = vpack.c.b16 %v1517, %v1517
        %v1534 = vpack.c.b16 %v1518, %v1518
        %v1535 = vpack.c.b16 %v1519, %v1519
        %v1536 = vpack.c.b16 %v1520, %v1520
        %v1537 = vpack.c.b16 %v1521, %v1521
        %v1538 = vpack.c.b16 %v1522, %v1522
        %v1539 = vpack.c.b16 %v1523, %v1523
        %v1540 = vpack.c.b16 %v1524, %v1524
        %v1541 = vpack.c.b16 %v1525, %v1525
        %v1542 = vpack.c.b16 %v1526, %v1526
        %v1543 = vpack.c.b16 %v1527, %v1527
        %v1544 = vpack.c.b16 %v1528, %v1528
        %v1545 = vpack.c.b16 %v1529, %v1529
        %v1546 = vpack.c.b16 %v1530, %v1530
        %v1547 = vpack.c.b16 %v1531, %v1531
        %v1548 = vpack.c.b16 %v1532, %v1532
        %v1550 = vshrl.u32 %v1453, 16
        %v1552 = vshll.u32 %v1453, 16
        %v1554 = vrot.slane %v1552, 1
        %v1555 = vor.u32 %v1550, %v1554
        %v1557 = vshll.u32 %v1533, 16
        %v1559 = vrot.slane %v1557, 1
        %v1560 = vsel %vm1164, %v1555, %v1559
        %v1562 = vshrl.u32 %v1454, 16
        %v1564 = vshll.u32 %v1454, 16
        %v1566 = vrot.slane %v1564, 1
        %v1567 = vor.u32 %v1562, %v1566
        %v1569 = vshll.u32 %v1534, 16
        %v1571 = vrot.slane %v1569, 1
        %v1572 = vsel %vm1164, %v1567, %v1571
        %v1574 = vshrl.u32 %v1455, 16
        %v1576 = vshll.u32 %v1455, 16
        %v1578 = vrot.slane %v1576, 1
        %v1579 = vor.u32 %v1574, %v1578
        %v1581 = vshll.u32 %v1535, 16
        %v1583 = vrot.slane %v1581, 1
        %v1584 = vsel %vm1164, %v1579, %v1583
        %v1586 = vshrl.u32 %v1456, 16
        %v1588 = vshll.u32 %v1456, 16
        %v1590 = vrot.slane %v1588, 1
        %v1591 = vor.u32 %v1586, %v1590
        %v1593 = vshll.u32 %v1536, 16
        %v1595 = vrot.slane %v1593, 1
        %v1596 = vsel %vm1164, %v1591, %v1595
        %v1598 = vshrl.u32 %v1457, 16
        %v1600 = vshll.u32 %v1457, 16
        %v1602 = vrot.slane %v1600, 1
        %v1603 = vor.u32 %v1598, %v1602
        %v1605 = vshll.u32 %v1537, 16
        %v1607 = vrot.slane %v1605, 1
        %v1608 = vsel %vm1164, %v1603, %v1607
        %v1610 = vshrl.u32 %v1458, 16
        %v1612 = vshll.u32 %v1458, 16
        %v1614 = vrot.slane %v1612, 1
        %v1615 = vor.u32 %v1610, %v1614
        %v1617 = vshll.u32 %v1538, 16
        %v1619 = vrot.slane %v1617, 1
        %v1620 = vsel %vm1164, %v1615, %v1619
        %v1622 = vshrl.u32 %v1459, 16
        %v1624 = vshll.u32 %v1459, 16
        %v1626 = vrot.slane %v1624, 1
        %v1627 = vor.u32 %v1622, %v1626
        %v1629 = vshll.u32 %v1539, 16
        %v1631 = vrot.slane %v1629, 1
        %v1632 = vsel %vm1164, %v1627, %v1631
        %v1634 = vshrl.u32 %v1460, 16
        %v1636 = vshll.u32 %v1460, 16
        %v1638 = vrot.slane %v1636, 1
        %v1639 = vor.u32 %v1634, %v1638
        %v1641 = vshll.u32 %v1540, 16
        %v1643 = vrot.slane %v1641, 1
        %v1644 = vsel %vm1164, %v1639, %v1643
        %v1646 = vshrl.u32 %v1461, 16
        %v1648 = vshll.u32 %v1461, 16
        %v1650 = vrot.slane %v1648, 1
        %v1651 = vor.u32 %v1646, %v1650
        %v1653 = vshll.u32 %v1541, 16
        %v1655 = vrot.slane %v1653, 1
        %v1656 = vsel %vm1164, %v1651, %v1655
        %v1658 = vshrl.u32 %v1462, 16
        %v1660 = vshll.u32 %v1462, 16
        %v1662 = vrot.slane %v1660, 1
        %v1663 = vor.u32 %v1658, %v1662
        %v1665 = vshll.u32 %v1542, 16
        %v1667 = vrot.slane %v1665, 1
        %v1668 = vsel %vm1164, %v1663, %v1667
        %v1670 = vshrl.u32 %v1463, 16
        %v1672 = vshll.u32 %v1463, 16
        %v1674 = vrot.slane %v1672, 1
        %v1675 = vor.u32 %v1670, %v1674
        %v1677 = vshll.u32 %v1543, 16
        %v1679 = vrot.slane %v1677, 1
        %v1680 = vsel %vm1164, %v1675, %v1679
        %v1682 = vshrl.u32 %v1464, 16
        %v1684 = vshll.u32 %v1464, 16
        %v1686 = vrot.slane %v1684, 1
        %v1687 = vor.u32 %v1682, %v1686
        %v1689 = vshll.u32 %v1544, 16
        %v1691 = vrot.slane %v1689, 1
        %v1692 = vsel %vm1164, %v1687, %v1691
        %v1694 = vshrl.u32 %v1465, 16
        %v1696 = vshll.u32 %v1465, 16
        %v1698 = vrot.slane %v1696, 1
        %v1699 = vor.u32 %v1694, %v1698
        %v1701 = vshll.u32 %v1545, 16
        %v1703 = vrot.slane %v1701, 1
        %v1704 = vsel %vm1164, %v1699, %v1703
        %v1706 = vshrl.u32 %v1466, 16
        %v1708 = vshll.u32 %v1466, 16
        %v1710 = vrot.slane %v1708, 1
        %v1711 = vor.u32 %v1706, %v1710
        %v1713 = vshll.u32 %v1546, 16
        %v1715 = vrot.slane %v1713, 1
        %v1716 = vsel %vm1164, %v1711, %v1715
        %v1718 = vshrl.u32 %v1467, 16
        %v1720 = vshll.u32 %v1467, 16
        %v1722 = vrot.slane %v1720, 1
        %v1723 = vor.u32 %v1718, %v1722
        %v1725 = vshll.u32 %v1547, 16
        %v1727 = vrot.slane %v1725, 1
        %v1728 = vsel %vm1164, %v1723, %v1727
        %v1730 = vshrl.u32 %v1468, 16
        %v1732 = vshll.u32 %v1468, 16
        %v1734 = vrot.slane %v1732, 1
        %v1735 = vor.u32 %v1730, %v1734
        %v1737 = vshll.u32 %v1548, 16
        %v1739 = vrot.slane %v1737, 1
        %v1740 = vsel %vm1164, %v1735, %v1739
        %1741 = vrot.lane.b32.xlu0 %v1560, 12
        %v1742 = vpop.permute.xlu0 %1741
        %1743 = vrot.lane.b32.xlu0 %v1572, 12
        %v1744 = vpop.permute.xlu0 %1743
        %1745 = vrot.lane.b32.xlu0 %v1584, 12
        %v1746 = vpop.permute.xlu0 %1745
        %1747 = vrot.lane.b32.xlu0 %v1596, 12
        %v1748 = vpop.permute.xlu0 %1747
        %1749 = vrot.lane.b32.xlu0 %v1608, 12
        %v1750 = vpop.permute.xlu0 %1749
        %1751 = vrot.lane.b32.xlu0 %v1620, 12
        %v1752 = vpop.permute.xlu0 %1751
        %1753 = vrot.lane.b32.xlu0 %v1632, 12
        %v1754 = vpop.permute.xlu0 %1753
        %1755 = vrot.lane.b32.xlu0 %v1644, 12
        %v1756 = vpop.permute.xlu0 %1755
        %1757 = vrot.lane.b32.xlu0 %v1656, 12
        %v1758 = vpop.permute.xlu0 %1757
        %1759 = vrot.lane.b32.xlu0 %v1668, 12
        %v1760 = vpop.permute.xlu0 %1759
        %1761 = vrot.lane.b32.xlu0 %v1680, 12
        %v1762 = vpop.permute.xlu0 %1761
        %1763 = vrot.lane.b32.xlu0 %v1692, 12
        %v1764 = vpop.permute.xlu0 %1763
        %1765 = vrot.lane.b32.xlu0 %v1704, 12
        %v1766 = vpop.permute.xlu0 %1765
        %1767 = vrot.lane.b32.xlu0 %v1716, 12
        %v1768 = vpop.permute.xlu0 %1767
        %1769 = vrot.lane.b32.xlu0 %v1728, 12
        %v1770 = vpop.permute.xlu0 %1769
        %1771 = vrot.lane.b32.xlu0 %v1740, 12
        %v1772 = vpop.permute.xlu0 %1771
        %vm1773 = vcmask 31744
        %v1775 = vsel %vm1773, %v1100, %v1358
        %v1777 = vsel %vm1773, %v1101, %v1360
        %v1779 = vsel %vm1773, %v1102, %v1362
        %v1781 = vsel %vm1773, %v1103, %v1364
        %v1783 = vsel %vm1773, %v1104, %v1366
        %v1785 = vsel %vm1773, %v1105, %v1368
        %v1787 = vsel %vm1773, %v1106, %v1370
        %v1789 = vsel %vm1773, %v1107, %v1372
        %v1791 = vsel %vm1773, %v1108, %v1374
        %v1793 = vsel %vm1773, %v1109, %v1376
        %v1795 = vsel %vm1773, %v1110, %v1378
        %v1797 = vsel %vm1773, %v1111, %v1380
        %v1799 = vsel %vm1773, %v1112, %v1382
        %v1801 = vsel %vm1773, %v1113, %v1384
        %v1803 = vsel %vm1773, %v1114, %v1386
        %v1805 = vsel %vm1773, %v1115, %v1388
        %vm1806 = vcmask 64512
        %v1808 = vsel %vm1806, %v1775, %v1470
        %v1810 = vsel %vm1806, %v1777, %v1472
        %v1812 = vsel %vm1806, %v1779, %v1474
        %v1814 = vsel %vm1806, %v1781, %v1476
        %v1816 = vsel %vm1806, %v1783, %v1478
        %v1818 = vsel %vm1806, %v1785, %v1480
        %v1820 = vsel %vm1806, %v1787, %v1482
        %v1822 = vsel %vm1806, %v1789, %v1484
        %v1824 = vsel %vm1806, %v1791, %v1486
        %v1826 = vsel %vm1806, %v1793, %v1488
        %v1828 = vsel %vm1806, %v1795, %v1490
        %v1830 = vsel %vm1806, %v1797, %v1492
        %v1832 = vsel %vm1806, %v1799, %v1494
        %v1834 = vsel %vm1806, %v1801, %v1496
        %v1836 = vsel %vm1806, %v1803, %v1498
        %v1838 = vsel %vm1806, %v1805, %v1500
        %vm1839 = vcmask 97280
        %v1841 = vsel %vm1839, %v1808, %v1742
        %v1843 = vsel %vm1839, %v1810, %v1744
        %v1845 = vsel %vm1839, %v1812, %v1746
        %v1847 = vsel %vm1839, %v1814, %v1748
        %v1849 = vsel %vm1839, %v1816, %v1750
        %v1851 = vsel %vm1839, %v1818, %v1752
        %v1853 = vsel %vm1839, %v1820, %v1754
        %v1855 = vsel %vm1839, %v1822, %v1756
        %v1857 = vsel %vm1839, %v1824, %v1758
        %v1859 = vsel %vm1839, %v1826, %v1760
        %v1861 = vsel %vm1839, %v1828, %v1762
        %v1863 = vsel %vm1839, %v1830, %v1764
        %v1865 = vsel %vm1839, %v1832, %v1766
        %v1867 = vsel %vm1839, %v1834, %v1768
        %v1869 = vsel %vm1839, %v1836, %v1770
        %v1871 = vsel %vm1839, %v1838, %v1772
        %v1872 = vld [vmem:[%s306] sm:$0xf]
        %v1873 = vld [vmem:[%s306 + $0x4] sm:$0xf]
        %v1874 = vld [vmem:[%s2] sm:$0x1]
        %v1876 = vlaneseq
        %v1877 = vshrl.u32 %v1876, 7
        %v1878 = vsub.s32 0, %v1877
        %v1879 = vrot.slane %v1874, %v1878
        %v1883 = vunpack.c.l.b16 %v1872
        %v1884 = vunpack.c.l.b16 %v1873
        %v1885 = vpack.c.b16 %v1884, %v1883
        %vm1887 = vcmask 130048
        %v1888 = vsel %vm1887, %v1841, 0
        %v1890 = vsel %vm1887, %v1843, 0
        %v1892 = vsel %vm1887, %v1845, 0
        %v1894 = vsel %vm1887, %v1847, 0
        %v1896 = vsel %vm1887, %v1849, 0
        %v1898 = vsel %vm1887, %v1851, 0
        %v1900 = vsel %vm1887, %v1853, 0
        %v1902 = vsel %vm1887, %v1855, 0
        %v1904 = vsel %vm1887, %v1857, 0
        %v1906 = vsel %vm1887, %v1859, 0
        %v1908 = vsel %vm1887, %v1861, 0
        %v1910 = vsel %vm1887, %v1863, 0
        %v1912 = vsel %vm1887, %v1865, 0
        %v1914 = vsel %vm1887, %v1867, 0
        %v1916 = vsel %vm1887, %v1869, 0
        %v1918 = vsel %vm1887, %v1871, 0
        %1920 = vmatprep.subr.bf16.mxu0 0
        %1921 = vmatpush1.bf16.msra.mxu0 0
        %1922 = vmatprep.subr.bf16.mxu0 0
        %1923 = vmatpush1.bf16.msra.mxu0 0
        %1924 = vmatprep.subr.bf16.mxu0 0
        %1925 = vmatpush1.bf16.msra.mxu0 0
        %1926 = vmatprep.subr.bf16.mxu0 0
        %1927 = vmatpush1.bf16.msra.mxu0 0
        %1928 = vmatprep.subr.bf16.mxu0 0
        %1929 = vmatpush1.bf16.msra.mxu0 0
        %1930 = vmatprep.subr.bf16.mxu0 0
        %1931 = vmatpush1.bf16.msra.mxu0 0
        %1932 = vmatprep.subr.bf16.mxu0 0
        %1933 = vmatpush1.bf16.msra.mxu0 0
        %1934 = vmatprep.subr.bf16.mxu0 0
        %1935 = vmatpush1.bf16.msra.mxu0 %v1885
        %1936 = vmatprep.subr.bf16.mxu0 0
        %1937 = vmatpush2.bf16.msra.mxu0 0
        %1938 = vmatprep.subr.bf16.mxu0 0
        %1939 = vmatpush2.bf16.msra.mxu0 0
        %1940 = vmatprep.subr.bf16.mxu0 0
        %1941 = vmatpush2.bf16.msra.mxu0 0
        %1942 = vmatprep.subr.bf16.mxu0 0
        %1943 = vmatpush2.bf16.msra.mxu0 0
        %1944 = vmatprep.subr.bf16.mxu0 0
        %1945 = vmatpush2.bf16.msra.mxu0 0
        %1946 = vmatprep.subr.bf16.mxu0 0
        %1947 = vmatpush2.bf16.msra.mxu0 0
        %1948 = vmatprep.subr.bf16.mxu0 0
        %1949 = vmatpush2.bf16.msra.mxu0 0
        %1950 = vmatprep.subr.bf16.mxu0 0
        %1951 = vmatpush2.bf16.msra.mxu0 0
        %1952 = vmatprep.mubr.bf16.mxu0 0
        %1953 = vmatmul.mubr.bf16.gmra.mxu0 %v1888
        %v1954 = vpop.f32.mrf.mxu0
        %v1955 = vadd.f32 %v1879, %v1954
        %v1956 = vpop.f32.mrf.mxu0
        %v1957 = vpop.f32.mrf.mxu0
        %v1958 = vadd.f32 %v1879, %v1957
        %v1959 = vpop.f32.mrf.mxu0
        %1960 = vmatprep.mubr.bf16.mxu0 0
        %1961 = vmatmul.mubr.bf16.gmra.mxu0 %v1890
        %v1962 = vpop.f32.mrf.mxu0
        %v1963 = vadd.f32 %v1879, %v1962
        %v1964 = vpop.f32.mrf.mxu0
        %v1965 = vpop.f32.mrf.mxu0
        %v1966 = vadd.f32 %v1879, %v1965
        %v1967 = vpop.f32.mrf.mxu0
        %1968 = vmatprep.mubr.bf16.mxu0 0
        %1969 = vmatmul.mubr.bf16.gmra.mxu0 %v1892
        %v1970 = vpop.f32.mrf.mxu0
        %v1971 = vadd.f32 %v1879, %v1970
        %v1972 = vpop.f32.mrf.mxu0
        %v1973 = vpop.f32.mrf.mxu0
        %v1974 = vadd.f32 %v1879, %v1973
        %v1975 = vpop.f32.mrf.mxu0
        %1976 = vmatprep.mubr.bf16.mxu0 0
        %1977 = vmatmul.mubr.bf16.gmra.mxu0 %v1894
        %v1978 = vpop.f32.mrf.mxu0
        %v1979 = vadd.f32 %v1879, %v1978
        %v1980 = vpop.f32.mrf.mxu0
        %v1981 = vpop.f32.mrf.mxu0
        %v1982 = vadd.f32 %v1879, %v1981
        %v1983 = vpop.f32.mrf.mxu0
        %1984 = vmatprep.mubr.bf16.mxu0 0
        %1985 = vmatmul.mubr.bf16.gmra.mxu0 %v1896
        %v1986 = vpop.f32.mrf.mxu0
        %v1987 = vadd.f32 %v1879, %v1986
        %v1988 = vpop.f32.mrf.mxu0
        %v1989 = vpop.f32.mrf.mxu0
        %v1990 = vadd.f32 %v1879, %v1989
        %v1991 = vpop.f32.mrf.mxu0
        %1992 = vmatprep.mubr.bf16.mxu0 0
        %1993 = vmatmul.mubr.bf16.gmra.mxu0 %v1898
        %v1994 = vpop.f32.mrf.mxu0
        %v1995 = vadd.f32 %v1879, %v1994
        %v1996 = vpop.f32.mrf.mxu0
        %v1997 = vpop.f32.mrf.mxu0
        %v1998 = vadd.f32 %v1879, %v1997
        %v1999 = vpop.f32.mrf.mxu0
        %2000 = vmatprep.mubr.bf16.mxu0 0
        %2001 = vmatmul.mubr.bf16.gmra.mxu0 %v1900
        %v2002 = vpop.f32.mrf.mxu0
        %v2003 = vadd.f32 %v1879, %v2002
        %v2004 = vpop.f32.mrf.mxu0
        %v2005 = vpop.f32.mrf.mxu0
        %v2006 = vadd.f32 %v1879, %v2005
        %v2007 = vpop.f32.mrf.mxu0
        %2008 = vmatprep.mubr.bf16.mxu0 0
        %2009 = vmatmul.mubr.bf16.gmra.mxu0 %v1902
        %v2010 = vpop.f32.mrf.mxu0
        %v2011 = vadd.f32 %v1879, %v2010
        %v2012 = vpop.f32.mrf.mxu0
        %v2013 = vpop.f32.mrf.mxu0
        %v2014 = vadd.f32 %v1879, %v2013
        %v2015 = vpop.f32.mrf.mxu0
        %2016 = vmatprep.mubr.bf16.mxu0 0
        %2017 = vmatmul.mubr.bf16.gmra.mxu0 %v1904
        %v2018 = vpop.f32.mrf.mxu0
        %v2019 = vadd.f32 %v1879, %v2018
        %v2020 = vpop.f32.mrf.mxu0
        %v2021 = vpop.f32.mrf.mxu0
        %v2022 = vadd.f32 %v1879, %v2021
        %v2023 = vpop.f32.mrf.mxu0
        %2024 = vmatprep.mubr.bf16.mxu0 0
        %2025 = vmatmul.mubr.bf16.gmra.mxu0 %v1906
        %v2026 = vpop.f32.mrf.mxu0
        %v2027 = vadd.f32 %v1879, %v2026
        %v2028 = vpop.f32.mrf.mxu0
        %v2029 = vpop.f32.mrf.mxu0
        %v2030 = vadd.f32 %v1879, %v2029
        %v2031 = vpop.f32.mrf.mxu0
        %2032 = vmatprep.mubr.bf16.mxu0 0
        %2033 = vmatmul.mubr.bf16.gmra.mxu0 %v1908
        %v2034 = vpop.f32.mrf.mxu0
        %v2035 = vadd.f32 %v1879, %v2034
        %v2036 = vpop.f32.mrf.mxu0
        %v2037 = vpop.f32.mrf.mxu0
        %v2038 = vadd.f32 %v1879, %v2037
        %v2039 = vpop.f32.mrf.mxu0
        %2040 = vmatprep.mubr.bf16.mxu0 0
        %2041 = vmatmul.mubr.bf16.gmra.mxu0 %v1910
        %v2042 = vpop.f32.mrf.mxu0
        %v2043 = vadd.f32 %v1879, %v2042
        %v2044 = vpop.f32.mrf.mxu0
        %v2045 = vpop.f32.mrf.mxu0
        %v2046 = vadd.f32 %v1879, %v2045
        %v2047 = vpop.f32.mrf.mxu0
        %2048 = vmatprep.mubr.bf16.mxu0 0
        %2049 = vmatmul.mubr.bf16.gmra.mxu0 %v1912
        %v2050 = vpop.f32.mrf.mxu0
        %v2051 = vadd.f32 %v1879, %v2050
        %v2052 = vpop.f32.mrf.mxu0
        %v2053 = vpop.f32.mrf.mxu0
        %v2054 = vadd.f32 %v1879, %v2053
        %v2055 = vpop.f32.mrf.mxu0
        %2056 = vmatprep.mubr.bf16.mxu0 0
        %2057 = vmatmul.mubr.bf16.gmra.mxu0 %v1914
        %v2058 = vpop.f32.mrf.mxu0
        %v2059 = vadd.f32 %v1879, %v2058
        %v2060 = vpop.f32.mrf.mxu0
        %v2061 = vpop.f32.mrf.mxu0
        %v2062 = vadd.f32 %v1879, %v2061
        %v2063 = vpop.f32.mrf.mxu0
        %2064 = vmatprep.mubr.bf16.mxu0 0
        %2065 = vmatmul.mubr.bf16.gmra.mxu0 %v1916
        %v2066 = vpop.f32.mrf.mxu0
        %v2067 = vadd.f32 %v1879, %v2066
        %v2068 = vpop.f32.mrf.mxu0
        %v2069 = vpop.f32.mrf.mxu0
        %v2070 = vadd.f32 %v1879, %v2069
        %v2071 = vpop.f32.mrf.mxu0
        %2072 = vmatprep.mubr.bf16.mxu0 0
        %2073 = vmatmul.mubr.bf16.gmra.mxu0 %v1918
        %v2074 = vpop.f32.mrf.mxu0
        %v2075 = vadd.f32 %v1879, %v2074
        %v2076 = vpop.f32.mrf.mxu0
        %v2077 = vpop.f32.mrf.mxu0
        %v2078 = vadd.f32 %v1879, %v2077
        %v2079 = vpop.f32.mrf.mxu0
        %2080 = vdwg.mxu0
        %v2081 = vpack.c.bf16 %v1958, %v1955
        %v2082 = vpack.c.bf16 %v1966, %v1963
        %v2083 = vpack.c.bf16 %v1974, %v1971
        %v2084 = vpack.c.bf16 %v1982, %v1979
        %v2085 = vpack.c.bf16 %v1990, %v1987
        %v2086 = vpack.c.bf16 %v1998, %v1995
        %v2087 = vpack.c.bf16 %v2006, %v2003
        %v2088 = vpack.c.bf16 %v2014, %v2011
        %v2089 = vpack.c.bf16 %v2022, %v2019
        %v2090 = vpack.c.bf16 %v2030, %v2027
        %v2091 = vpack.c.bf16 %v2038, %v2035
        %v2092 = vpack.c.bf16 %v2046, %v2043
        %v2093 = vpack.c.bf16 %v2054, %v2051
        %v2094 = vpack.c.bf16 %v2062, %v2059
        %v2095 = vpack.c.bf16 %v2070, %v2067
        %v2096 = vpack.c.bf16 %v2078, %v2075
        %v2097 = vld [vmem:[%s3] sm:$0x3]
        %v2098 = vld [vmem:[%s4] sm:$0x1]
        %v2100 = vlaneseq
        %v2101 = vshrl.u32 %v2100, 7
        %v2102 = vsub.s32 0, %v2101
        %v2103 = vrot.slane %v2098, %v2102
        %v2106 = vsel %vm1773, %v2081, 0
        %v2109 = vsel %vm1773, %v2082, 0
        %v2112 = vsel %vm1773, %v2083, 0
        %v2115 = vsel %vm1773, %v2084, 0
        %v2118 = vsel %vm1773, %v2085, 0
        %v2121 = vsel %vm1773, %v2086, 0
        %v2124 = vsel %vm1773, %v2087, 0
        %v2127 = vsel %vm1773, %v2088, 0
        %v2130 = vsel %vm1773, %v2089, 0
        %v2133 = vsel %vm1773, %v2090, 0
        %v2136 = vsel %vm1773, %v2091, 0
        %v2139 = vsel %vm1773, %v2092, 0
        %v2142 = vsel %vm1773, %v2093, 0
        %v2145 = vsel %vm1773, %v2094, 0
        %v2148 = vsel %vm1773, %v2095, 0
        %v2151 = vsel %vm1773, %v2096, 0
        %vm2153 = vcmask 1041408
        %v2155 = vsel %vm2153, %v2097, 0
        %2157 = vmatprep.subr.bf16.mxu0 0
        %2158 = vmatpush1.bf16.msra.mxu0 0
        %2159 = vmatprep.subr.bf16.mxu0 0
        %2160 = vmatpush1.bf16.msra.mxu0 0
        %2161 = vmatprep.subr.bf16.mxu0 0
        %2162 = vmatpush1.bf16.msra.mxu0 0
        %2163 = vmatprep.subr.bf16.mxu0 0
        %2164 = vmatpush1.bf16.msra.mxu0 0
        %2165 = vmatprep.subr.bf16.mxu0 0
        %2166 = vmatpush1.bf16.msra.mxu0 0
        %2167 = vmatprep.subr.bf16.mxu0 0
        %2168 = vmatpush1.bf16.msra.mxu0 0
        %2169 = vmatprep.subr.bf16.mxu0 0
        %2170 = vmatpush1.bf16.msra.mxu0 0
        %2171 = vmatprep.subr.bf16.mxu0 0
        %2172 = vmatpush1.bf16.msra.mxu0 %v2155
        %2173 = vmatprep.subr.bf16.mxu0 0
        %2174 = vmatpush2.bf16.msra.mxu0 0
        %2175 = vmatprep.subr.bf16.mxu0 0
        %2176 = vmatpush2.bf16.msra.mxu0 0
        %2177 = vmatprep.subr.bf16.mxu0 0
        %2178 = vmatpush2.bf16.msra.mxu0 0
        %2179 = vmatprep.subr.bf16.mxu0 0
        %2180 = vmatpush2.bf16.msra.mxu0 0
        %2181 = vmatprep.subr.bf16.mxu0 0
        %2182 = vmatpush2.bf16.msra.mxu0 0
        %2183 = vmatprep.subr.bf16.mxu0 0
        %2184 = vmatpush2.bf16.msra.mxu0 0
        %2185 = vmatprep.subr.bf16.mxu0 0
        %2186 = vmatpush2.bf16.msra.mxu0 0
        %2187 = vmatprep.subr.bf16.mxu0 0
        %2188 = vmatpush2.bf16.msra.mxu0 0
        %2189 = vmatprep.mubr.bf16.mxu0 0
        %2190 = vmatmul.mubr.bf16.gmra.mxu0 %v2106
        %v2191 = vpop.f32.mrf.mxu0
        %v2192 = vadd.f32 %v2103, %v2191
        %v2193 = vpop.f32.mrf.mxu0
        %v2194 = vpop.f32.mrf.mxu0
        %v2195 = vadd.f32 %v2103, %v2194
        %v2196 = vpop.f32.mrf.mxu0
        %2197 = vmatprep.mubr.bf16.mxu0 0
        %2198 = vmatmul.mubr.bf16.gmra.mxu0 %v2109
        %v2199 = vpop.f32.mrf.mxu0
        %v2200 = vadd.f32 %v2103, %v2199
        %v2201 = vpop.f32.mrf.mxu0
        %v2202 = vpop.f32.mrf.mxu0
        %v2203 = vadd.f32 %v2103, %v2202
        %v2204 = vpop.f32.mrf.mxu0
        %2205 = vmatprep.mubr.bf16.mxu0 0
        %2206 = vmatmul.mubr.bf16.gmra.mxu0 %v2112
        %v2207 = vpop.f32.mrf.mxu0
        %v2208 = vadd.f32 %v2103, %v2207
        %v2209 = vpop.f32.mrf.mxu0
        %v2210 = vpop.f32.mrf.mxu0
        %v2211 = vadd.f32 %v2103, %v2210
        %v2212 = vpop.f32.mrf.mxu0
        %2213 = vmatprep.mubr.bf16.mxu0 0
        %2214 = vmatmul.mubr.bf16.gmra.mxu0 %v2115
        %v2215 = vpop.f32.mrf.mxu0
        %v2216 = vadd.f32 %v2103, %v2215
        %v2217 = vpop.f32.mrf.mxu0
        %v2218 = vpop.f32.mrf.mxu0
        %v2219 = vadd.f32 %v2103, %v2218
        %v2220 = vpop.f32.mrf.mxu0
        %2221 = vmatprep.mubr.bf16.mxu0 0
        %2222 = vmatmul.mubr.bf16.gmra.mxu0 %v2118
        %v2223 = vpop.f32.mrf.mxu0
        %v2224 = vadd.f32 %v2103, %v2223
        %v2225 = vpop.f32.mrf.mxu0
        %v2226 = vpop.f32.mrf.mxu0
        %v2227 = vadd.f32 %v2103, %v2226
        %v2228 = vpop.f32.mrf.mxu0
        %2229 = vmatprep.mubr.bf16.mxu0 0
        %2230 = vmatmul.mubr.bf16.gmra.mxu0 %v2121
        %v2231 = vpop.f32.mrf.mxu0
        %v2232 = vadd.f32 %v2103, %v2231
        %v2233 = vpop.f32.mrf.mxu0
        %v2234 = vpop.f32.mrf.mxu0
        %v2235 = vadd.f32 %v2103, %v2234
        %v2236 = vpop.f32.mrf.mxu0
        %2237 = vmatprep.mubr.bf16.mxu0 0
        %2238 = vmatmul.mubr.bf16.gmra.mxu0 %v2124
        %v2239 = vpop.f32.mrf.mxu0
        %v2240 = vadd.f32 %v2103, %v2239
        %v2241 = vpop.f32.mrf.mxu0
        %v2242 = vpop.f32.mrf.mxu0
        %v2243 = vadd.f32 %v2103, %v2242
        %v2244 = vpop.f32.mrf.mxu0
        %2245 = vmatprep.mubr.bf16.mxu0 0
        %2246 = vmatmul.mubr.bf16.gmra.mxu0 %v2127
        %v2247 = vpop.f32.mrf.mxu0
        %v2248 = vadd.f32 %v2103, %v2247
        %v2249 = vpop.f32.mrf.mxu0
        %v2250 = vpop.f32.mrf.mxu0
        %v2251 = vadd.f32 %v2103, %v2250
        %v2252 = vpop.f32.mrf.mxu0
        %2253 = vmatprep.mubr.bf16.mxu0 0
        %2254 = vmatmul.mubr.bf16.gmra.mxu0 %v2130
        %v2255 = vpop.f32.mrf.mxu0
        %v2256 = vadd.f32 %v2103, %v2255
        %v2257 = vpop.f32.mrf.mxu0
        %v2258 = vpop.f32.mrf.mxu0
        %v2259 = vadd.f32 %v2103, %v2258
        %v2260 = vpop.f32.mrf.mxu0
        %2261 = vmatprep.mubr.bf16.mxu0 0
        %2262 = vmatmul.mubr.bf16.gmra.mxu0 %v2133
        %v2263 = vpop.f32.mrf.mxu0
        %v2264 = vadd.f32 %v2103, %v2263
        %v2265 = vpop.f32.mrf.mxu0
        %v2266 = vpop.f32.mrf.mxu0
        %v2267 = vadd.f32 %v2103, %v2266
        %v2268 = vpop.f32.mrf.mxu0
        %2269 = vmatprep.mubr.bf16.mxu0 0
        %2270 = vmatmul.mubr.bf16.gmra.mxu0 %v2136
        %v2271 = vpop.f32.mrf.mxu0
        %v2272 = vadd.f32 %v2103, %v2271
        %v2273 = vpop.f32.mrf.mxu0
        %v2274 = vpop.f32.mrf.mxu0
        %v2275 = vadd.f32 %v2103, %v2274
        %v2276 = vpop.f32.mrf.mxu0
        %2277 = vmatprep.mubr.bf16.mxu0 0
        %2278 = vmatmul.mubr.bf16.gmra.mxu0 %v2139
        %v2279 = vpop.f32.mrf.mxu0
        %v2280 = vadd.f32 %v2103, %v2279
        %v2281 = vpop.f32.mrf.mxu0
        %v2282 = vpop.f32.mrf.mxu0
        %v2283 = vadd.f32 %v2103, %v2282
        %v2284 = vpop.f32.mrf.mxu0
        %2285 = vmatprep.mubr.bf16.mxu0 0
        %2286 = vmatmul.mubr.bf16.gmra.mxu0 %v2142
        %v2287 = vpop.f32.mrf.mxu0
        %v2288 = vadd.f32 %v2103, %v2287
        %v2289 = vpop.f32.mrf.mxu0
        %v2290 = vpop.f32.mrf.mxu0
        %v2291 = vadd.f32 %v2103, %v2290
        %v2292 = vpop.f32.mrf.mxu0
        %2293 = vmatprep.mubr.bf16.mxu0 0
        %2294 = vmatmul.mubr.bf16.gmra.mxu0 %v2145
        %v2295 = vpop.f32.mrf.mxu0
        %v2296 = vadd.f32 %v2103, %v2295
        %v2297 = vpop.f32.mrf.mxu0
        %v2298 = vpop.f32.mrf.mxu0
        %v2299 = vadd.f32 %v2103, %v2298
        %v2300 = vpop.f32.mrf.mxu0
        %2301 = vmatprep.mubr.bf16.mxu0 0
        %2302 = vmatmul.mubr.bf16.gmra.mxu0 %v2148
        %v2303 = vpop.f32.mrf.mxu0
        %v2304 = vadd.f32 %v2103, %v2303
        %v2305 = vpop.f32.mrf.mxu0
        %v2306 = vpop.f32.mrf.mxu0
        %v2307 = vadd.f32 %v2103, %v2306
        %v2308 = vpop.f32.mrf.mxu0
        %2309 = vmatprep.mubr.bf16.mxu0 0
        %2310 = vmatmul.mubr.bf16.gmra.mxu0 %v2151
        %v2311 = vpop.f32.mrf.mxu0
        %v2312 = vadd.f32 %v2103, %v2311
        %v2313 = vpop.f32.mrf.mxu0
        %v2314 = vpop.f32.mrf.mxu0
        %v2315 = vadd.f32 %v2103, %v2314
        %v2316 = vpop.f32.mrf.mxu0
        %2317 = vdwg.mxu0
        %v2318 = vmax.f32 %v2192, 0.0
        %v2319 = vmax.f32 %v2195, 0.0
        %v2320 = vmax.f32 %v2200, 0.0
        %v2321 = vmax.f32 %v2203, 0.0
        %v2322 = vmax.f32 %v2208, 0.0
        %v2323 = vmax.f32 %v2211, 0.0
        %v2324 = vmax.f32 %v2216, 0.0
        %v2325 = vmax.f32 %v2219, 0.0
        %v2326 = vmax.f32 %v2224, 0.0
        %v2327 = vmax.f32 %v2227, 0.0
        %v2328 = vmax.f32 %v2232, 0.0
        %v2329 = vmax.f32 %v2235, 0.0
        %v2330 = vmax.f32 %v2240, 0.0
        %v2331 = vmax.f32 %v2243, 0.0
        %v2332 = vmax.f32 %v2248, 0.0
        %v2333 = vmax.f32 %v2251, 0.0
        %v2334 = vmax.f32 %v2256, 0.0
        %v2335 = vmax.f32 %v2259, 0.0
        %v2336 = vmax.f32 %v2264, 0.0
        %v2337 = vmax.f32 %v2267, 0.0
        %v2338 = vmax.f32 %v2272, 0.0
        %v2339 = vmax.f32 %v2275, 0.0
        %v2340 = vmax.f32 %v2280, 0.0
        %v2341 = vmax.f32 %v2283, 0.0
        %v2342 = vmax.f32 %v2288, 0.0
        %v2343 = vmax.f32 %v2291, 0.0
        %v2344 = vmax.f32 %v2296, 0.0
        %v2345 = vmax.f32 %v2299, 0.0
        %v2346 = vmax.f32 %v2304, 0.0
        %v2347 = vmax.f32 %v2307, 0.0
        %v2348 = vmax.f32 %v2312, 0.0
        %v2349 = vmax.f32 %v2315, 0.0
        %v2350 = vpack.c.bf16 %v2319, %v2318
        %v2351 = vpack.c.bf16 %v2321, %v2320
        %v2352 = vpack.c.bf16 %v2323, %v2322
        %v2353 = vpack.c.bf16 %v2325, %v2324
        %v2354 = vpack.c.bf16 %v2327, %v2326
        %v2355 = vpack.c.bf16 %v2329, %v2328
        %v2356 = vpack.c.bf16 %v2331, %v2330
        %v2357 = vpack.c.bf16 %v2333, %v2332
        %v2358 = vpack.c.bf16 %v2335, %v2334
        %v2359 = vpack.c.bf16 %v2337, %v2336
        %v2360 = vpack.c.bf16 %v2339, %v2338
        %v2361 = vpack.c.bf16 %v2341, %v2340
        %v2362 = vpack.c.bf16 %v2343, %v2342
        %v2363 = vpack.c.bf16 %v2345, %v2344
        %v2364 = vpack.c.bf16 %v2347, %v2346
        %v2365 = vpack.c.bf16 %v2349, %v2348
        %v2366 = vld [vmem:[%s5] sm:$0xf]
        %v2367 = vld [vmem:[%s6] sm:$0x1]
        %v2369 = vlaneseq
        %v2370 = vshrl.u32 %v2369, 7
        %v2371 = vsub.s32 0, %v2370
        %v2372 = vrot.slane %v2367, %v2371
        %v2375 = vsel %vm1806, %v2350, 0
        %v2378 = vsel %vm1806, %v2351, 0
        %v2381 = vsel %vm1806, %v2352, 0
        %v2384 = vsel %vm1806, %v2353, 0
        %v2387 = vsel %vm1806, %v2354, 0
        %v2390 = vsel %vm1806, %v2355, 0
        %v2393 = vsel %vm1806, %v2356, 0
        %v2396 = vsel %vm1806, %v2357, 0
        %v2399 = vsel %vm1806, %v2358, 0
        %v2402 = vsel %vm1806, %v2359, 0
        %v2405 = vsel %vm1806, %v2360, 0
        %v2408 = vsel %vm1806, %v2361, 0
        %v2411 = vsel %vm1806, %v2362, 0
        %v2414 = vsel %vm1806, %v2363, 0
        %v2417 = vsel %vm1806, %v2364, 0
        %v2420 = vsel %vm1806, %v2365, 0
        %vm2422 = vcmask 1043456
        %v2424 = vsel %vm2422, %v2366, 0
        %2426 = vmatprep.subr.bf16.mxu0 0
        %2427 = vmatpush1.bf16.msra.mxu0 0
        %2428 = vmatprep.subr.bf16.mxu0 0
        %2429 = vmatpush1.bf16.msra.mxu0 0
        %2430 = vmatprep.subr.bf16.mxu0 0
        %2431 = vmatpush1.bf16.msra.mxu0 0
        %2432 = vmatprep.subr.bf16.mxu0 0
        %2433 = vmatpush1.bf16.msra.mxu0 0
        %2434 = vmatprep.subr.bf16.mxu0 0
        %2435 = vmatpush1.bf16.msra.mxu0 0
        %2436 = vmatprep.subr.bf16.mxu0 0
        %2437 = vmatpush1.bf16.msra.mxu0 0
        %2438 = vmatprep.subr.bf16.mxu0 0
        %2439 = vmatpush1.bf16.msra.mxu0 0
        %2440 = vmatprep.subr.bf16.mxu0 0
        %2441 = vmatpush1.bf16.msra.mxu0 %v2424
        %2442 = vmatprep.subr.bf16.mxu0 0
        %2443 = vmatpush2.bf16.msra.mxu0 0
        %2444 = vmatprep.subr.bf16.mxu0 0
        %2445 = vmatpush2.bf16.msra.mxu0 0
        %2446 = vmatprep.subr.bf16.mxu0 0
        %2447 = vmatpush2.bf16.msra.mxu0 0
        %2448 = vmatprep.subr.bf16.mxu0 0
        %2449 = vmatpush2.bf16.msra.mxu0 0
        %2450 = vmatprep.subr.bf16.mxu0 0
        %2451 = vmatpush2.bf16.msra.mxu0 0
        %2452 = vmatprep.subr.bf16.mxu0 0
        %2453 = vmatpush2.bf16.msra.mxu0 0
        %2454 = vmatprep.subr.bf16.mxu0 0
        %2455 = vmatpush2.bf16.msra.mxu0 0
        %2456 = vmatprep.subr.bf16.mxu0 0
        %2457 = vmatpush2.bf16.msra.mxu0 0
        %2458 = vmatprep.mubr.bf16.mxu0 0
        %2459 = vmatmul.mubr.bf16.gmra.mxu0 %v2375
        %v2460 = vpop.f32.mrf.mxu0
        %v2461 = vadd.f32 %v2372, %v2460
        %v2462 = vpop.f32.mrf.mxu0
        %v2463 = vpop.f32.mrf.mxu0
        %v2464 = vadd.f32 %v2372, %v2463
        %v2465 = vpop.f32.mrf.mxu0
        %2466 = vmatprep.mubr.bf16.mxu0 0
        %2467 = vmatmul.mubr.bf16.gmra.mxu0 %v2378
        %v2468 = vpop.f32.mrf.mxu0
        %v2469 = vadd.f32 %v2372, %v2468
        %v2470 = vpop.f32.mrf.mxu0
        %v2471 = vpop.f32.mrf.mxu0
        %v2472 = vadd.f32 %v2372, %v2471
        %v2473 = vpop.f32.mrf.mxu0
        %2474 = vmatprep.mubr.bf16.mxu0 0
        %2475 = vmatmul.mubr.bf16.gmra.mxu0 %v2381
        %v2476 = vpop.f32.mrf.mxu0
        %v2477 = vadd.f32 %v2372, %v2476
        %v2478 = vpop.f32.mrf.mxu0
        %v2479 = vpop.f32.mrf.mxu0
        %v2480 = vadd.f32 %v2372, %v2479
        %v2481 = vpop.f32.mrf.mxu0
        %2482 = vmatprep.mubr.bf16.mxu0 0
        %2483 = vmatmul.mubr.bf16.gmra.mxu0 %v2384
        %v2484 = vpop.f32.mrf.mxu0
        %v2485 = vadd.f32 %v2372, %v2484
        %v2486 = vpop.f32.mrf.mxu0
        %v2487 = vpop.f32.mrf.mxu0
        %v2488 = vadd.f32 %v2372, %v2487
        %v2489 = vpop.f32.mrf.mxu0
        %2490 = vmatprep.mubr.bf16.mxu0 0
        %2491 = vmatmul.mubr.bf16.gmra.mxu0 %v2387
        %v2492 = vpop.f32.mrf.mxu0
        %v2493 = vadd.f32 %v2372, %v2492
        %v2494 = vpop.f32.mrf.mxu0
        %v2495 = vpop.f32.mrf.mxu0
        %v2496 = vadd.f32 %v2372, %v2495
        %v2497 = vpop.f32.mrf.mxu0
        %2498 = vmatprep.mubr.bf16.mxu0 0
        %2499 = vmatmul.mubr.bf16.gmra.mxu0 %v2390
        %v2500 = vpop.f32.mrf.mxu0
        %v2501 = vadd.f32 %v2372, %v2500
        %v2502 = vpop.f32.mrf.mxu0
        %v2503 = vpop.f32.mrf.mxu0
        %v2504 = vadd.f32 %v2372, %v2503
        %v2505 = vpop.f32.mrf.mxu0
        %2506 = vmatprep.mubr.bf16.mxu0 0
        %2507 = vmatmul.mubr.bf16.gmra.mxu0 %v2393
        %v2508 = vpop.f32.mrf.mxu0
        %v2509 = vadd.f32 %v2372, %v2508
        %v2510 = vpop.f32.mrf.mxu0
        %v2511 = vpop.f32.mrf.mxu0
        %v2512 = vadd.f32 %v2372, %v2511
        %v2513 = vpop.f32.mrf.mxu0
        %2514 = vmatprep.mubr.bf16.mxu0 0
        %2515 = vmatmul.mubr.bf16.gmra.mxu0 %v2396
        %v2516 = vpop.f32.mrf.mxu0
        %v2517 = vadd.f32 %v2372, %v2516
        %v2518 = vpop.f32.mrf.mxu0
        %v2519 = vpop.f32.mrf.mxu0
        %v2520 = vadd.f32 %v2372, %v2519
        %v2521 = vpop.f32.mrf.mxu0
        %2522 = vmatprep.mubr.bf16.mxu0 0
        %2523 = vmatmul.mubr.bf16.gmra.mxu0 %v2399
        %v2524 = vpop.f32.mrf.mxu0
        %v2525 = vadd.f32 %v2372, %v2524
        %v2526 = vpop.f32.mrf.mxu0
        %v2527 = vpop.f32.mrf.mxu0
        %v2528 = vadd.f32 %v2372, %v2527
        %v2529 = vpop.f32.mrf.mxu0
        %2530 = vmatprep.mubr.bf16.mxu0 0
        %2531 = vmatmul.mubr.bf16.gmra.mxu0 %v2402
        %v2532 = vpop.f32.mrf.mxu0
        %v2533 = vadd.f32 %v2372, %v2532
        %v2534 = vpop.f32.mrf.mxu0
        %v2535 = vpop.f32.mrf.mxu0
        %v2536 = vadd.f32 %v2372, %v2535
        %v2537 = vpop.f32.mrf.mxu0
        %2538 = vmatprep.mubr.bf16.mxu0 0
        %2539 = vmatmul.mubr.bf16.gmra.mxu0 %v2405
        %v2540 = vpop.f32.mrf.mxu0
        %v2541 = vadd.f32 %v2372, %v2540
        %v2542 = vpop.f32.mrf.mxu0
        %v2543 = vpop.f32.mrf.mxu0
        %v2544 = vadd.f32 %v2372, %v2543
        %v2545 = vpop.f32.mrf.mxu0
        %2546 = vmatprep.mubr.bf16.mxu0 0
        %2547 = vmatmul.mubr.bf16.gmra.mxu0 %v2408
        %v2548 = vpop.f32.mrf.mxu0
        %v2549 = vadd.f32 %v2372, %v2548
        %v2550 = vpop.f32.mrf.mxu0
        %v2551 = vpop.f32.mrf.mxu0
        %v2552 = vadd.f32 %v2372, %v2551
        %v2553 = vpop.f32.mrf.mxu0
        %2554 = vmatprep.mubr.bf16.mxu0 0
        %2555 = vmatmul.mubr.bf16.gmra.mxu0 %v2411
        %v2556 = vpop.f32.mrf.mxu0
        %v2557 = vadd.f32 %v2372, %v2556
        %v2558 = vpop.f32.mrf.mxu0
        %v2559 = vpop.f32.mrf.mxu0
        %v2560 = vadd.f32 %v2372, %v2559
        %v2561 = vpop.f32.mrf.mxu0
        %2562 = vmatprep.mubr.bf16.mxu0 0
        %2563 = vmatmul.mubr.bf16.gmra.mxu0 %v2414
        %v2564 = vpop.f32.mrf.mxu0
        %v2565 = vadd.f32 %v2372, %v2564
        %v2566 = vpop.f32.mrf.mxu0
        %v2567 = vpop.f32.mrf.mxu0
        %v2568 = vadd.f32 %v2372, %v2567
        %v2569 = vpop.f32.mrf.mxu0
        %2570 = vmatprep.mubr.bf16.mxu0 0
        %2571 = vmatmul.mubr.bf16.gmra.mxu0 %v2417
        %v2572 = vpop.f32.mrf.mxu0
        %v2573 = vadd.f32 %v2372, %v2572
        %v2574 = vpop.f32.mrf.mxu0
        %v2575 = vpop.f32.mrf.mxu0
        %v2576 = vadd.f32 %v2372, %v2575
        %v2577 = vpop.f32.mrf.mxu0
        %2578 = vmatprep.mubr.bf16.mxu0 0
        %2579 = vmatmul.mubr.bf16.gmra.mxu0 %v2420
        %v2580 = vpop.f32.mrf.mxu0
        %v2581 = vadd.f32 %v2372, %v2580
        %v2582 = vpop.f32.mrf.mxu0
        %v2583 = vpop.f32.mrf.mxu0
        %v2584 = vadd.f32 %v2372, %v2583
        %v2585 = vpop.f32.mrf.mxu0
        %2586 = vdwg.mxu0
        %v2587 = vadd.f32 %v1955, %v2461
        %v2588 = vadd.f32 %v1958, %v2464
        %v2589 = vadd.f32 %v1963, %v2469
        %v2590 = vadd.f32 %v1966, %v2472
        %v2591 = vadd.f32 %v1971, %v2477
        %v2592 = vadd.f32 %v1974, %v2480
        %v2593 = vadd.f32 %v1979, %v2485
        %v2594 = vadd.f32 %v1982, %v2488
        %v2595 = vadd.f32 %v1987, %v2493
        %v2596 = vadd.f32 %v1990, %v2496
        %v2597 = vadd.f32 %v1995, %v2501
        %v2598 = vadd.f32 %v1998, %v2504
        %v2599 = vadd.f32 %v2003, %v2509
        %v2600 = vadd.f32 %v2006, %v2512
        %v2601 = vadd.f32 %v2011, %v2517
        %v2602 = vadd.f32 %v2014, %v2520
        %v2603 = vadd.f32 %v2019, %v2525
        %v2604 = vadd.f32 %v2022, %v2528
        %v2605 = vadd.f32 %v2027, %v2533
        %v2606 = vadd.f32 %v2030, %v2536
        %v2607 = vadd.f32 %v2035, %v2541
        %v2608 = vadd.f32 %v2038, %v2544
        %v2609 = vadd.f32 %v2043, %v2549
        %v2610 = vadd.f32 %v2046, %v2552
        %v2611 = vadd.f32 %v2051, %v2557
        %v2612 = vadd.f32 %v2054, %v2560
        %v2613 = vadd.f32 %v2059, %v2565
        %v2614 = vadd.f32 %v2062, %v2568
        %v2615 = vadd.f32 %v2067, %v2573
        %v2616 = vadd.f32 %v2070, %v2576
        %v2617 = vadd.f32 %v2075, %v2581
        %v2618 = vadd.f32 %v2078, %v2584
        %2619 = vst.msk [vmem:[%s296] sm:$0xff] %vm1773, %v2587
        %2620 = vst.msk [vmem:[%s296 + $0x8] sm:$0xff] %vm1773, %v2588
        %2621 = vst.msk [vmem:[%s296 + $0x10] sm:$0xff] %vm1773, %v2589
        %2622 = vst.msk [vmem:[%s296 + $0x18] sm:$0xff] %vm1773, %v2590
        %2623 = vst.msk [vmem:[%s296 + $0x20] sm:$0xff] %vm1773, %v2591
        %2624 = vst.msk [vmem:[%s296 + $0x28] sm:$0xff] %vm1773, %v2592
        %2625 = vst.msk [vmem:[%s296 + $0x30] sm:$0xff] %vm1773, %v2593
        %2626 = vst.msk [vmem:[%s296 + $0x38] sm:$0xff] %vm1773, %v2594
        %2627 = vst.msk [vmem:[%s296 + $0x40] sm:$0xff] %vm1773, %v2595
        %2628 = vst.msk [vmem:[%s296 + $0x48] sm:$0xff] %vm1773, %v2596
        %2629 = vst.msk [vmem:[%s296 + $0x50] sm:$0xff] %vm1773, %v2597
        %2630 = vst.msk [vmem:[%s296 + $0x58] sm:$0xff] %vm1773, %v2598
        %2631 = vst.msk [vmem:[%s296 + $0x60] sm:$0xff] %vm1773, %v2599
        %2632 = vst.msk [vmem:[%s296 + $0x68] sm:$0xff] %vm1773, %v2600
        %2633 = vst.msk [vmem:[%s296 + $0x70] sm:$0xff] %vm1773, %v2601
        %2634 = vst.msk [vmem:[%s296 + $0x78] sm:$0xff] %vm1773, %v2602
        %2635 = vst.msk [vmem:[%s296 + $0x80] sm:$0xff] %vm1773, %v2603
        %2636 = vst.msk [vmem:[%s296 + $0x88] sm:$0xff] %vm1773, %v2604
        %2637 = vst.msk [vmem:[%s296 + $0x90] sm:$0xff] %vm1773, %v2605
        %2638 = vst.msk [vmem:[%s296 + $0x98] sm:$0xff] %vm1773, %v2606
        %2639 = vst.msk [vmem:[%s296 + $0xa0] sm:$0xff] %vm1773, %v2607
        %2640 = vst.msk [vmem:[%s296 + $0xa8] sm:$0xff] %vm1773, %v2608
        %2641 = vst.msk [vmem:[%s296 + $0xb0] sm:$0xff] %vm1773, %v2609
        %2642 = vst.msk [vmem:[%s296 + $0xb8] sm:$0xff] %vm1773, %v2610
        %2643 = vst.msk [vmem:[%s296 + $0xc0] sm:$0xff] %vm1773, %v2611
        %2644 = vst.msk [vmem:[%s296 + $0xc8] sm:$0xff] %vm1773, %v2612
        %2645 = vst.msk [vmem:[%s296 + $0xd0] sm:$0xff] %vm1773, %v2613
        %2646 = vst.msk [vmem:[%s296 + $0xd8] sm:$0xff] %vm1773, %v2614
        %2647 = vst.msk [vmem:[%s296 + $0xe0] sm:$0xff] %vm1773, %v2615
        %2648 = vst.msk [vmem:[%s296 + $0xe8] sm:$0xff] %vm1773, %v2616
        %2649 = vst.msk [vmem:[%s296 + $0xf0] sm:$0xff] %vm1773, %v2617
        %2650 = vst.msk [vmem:[%s296 + $0xf8] sm:$0xff] %vm1773, %v2618
        %v2651 = vld [vmem:[%s935] sm:$0xf]
        %v2652 = vld [vmem:[%s935 + $0x4] sm:$0xf]
        %v2653 = vld [vmem:[%s935 + $0x8] sm:$0x1]
        %v2654 = vld [vmem:[%s935 + $0xc] sm:$0xf]
        %v2655 = vld [vmem:[%s935 + $0x10] sm:$0xf]
        %v2656 = vld [vmem:[%s935 + $0x14] sm:$0x1]
        %v2657 = vld [vmem:[%s935 + $0x18] sm:$0xf]
        %v2658 = vld [vmem:[%s935 + $0x1c] sm:$0xf]
        %v2659 = vld [vmem:[%s935 + $0x20] sm:$0x1]
        %v2660 = vld [vmem:[%s935 + $0x24] sm:$0xf]
        %v2661 = vld [vmem:[%s935 + $0x28] sm:$0xf]
        %v2662 = vld [vmem:[%s935 + $0x2c] sm:$0x1]
        %v2663 = vld [vmem:[%s935 + $0x30] sm:$0xf]
        %v2664 = vld [vmem:[%s935 + $0x34] sm:$0xf]
        %v2665 = vld [vmem:[%s935 + $0x38] sm:$0x1]
        %v2666 = vld [vmem:[%s935 + $0x3c] sm:$0xf]
        %v2667 = vld [vmem:[%s935 + $0x40] sm:$0xf]
        %v2668 = vld [vmem:[%s935 + $0x44] sm:$0x1]
        %v2669 = vld [vmem:[%s935 + $0x48] sm:$0xf]
        %v2670 = vld [vmem:[%s935 + $0x4c] sm:$0xf]
        %v2671 = vld [vmem:[%s935 + $0x50] sm:$0x1]
        %v2672 = vld [vmem:[%s935 + $0x54] sm:$0xf]
        %v2673 = vld [vmem:[%s935 + $0x58] sm:$0xf]
        %v2674 = vld [vmem:[%s935 + $0x5c] sm:$0x1]
        %v2675 = vld [vmem:[%s935 + $0x60] sm:$0xf]
        %v2676 = vld [vmem:[%s935 + $0x64] sm:$0xf]
        %v2677 = vld [vmem:[%s935 + $0x68] sm:$0x1]
        %v2678 = vld [vmem:[%s935 + $0x6c] sm:$0xf]
        %v2679 = vld [vmem:[%s935 + $0x70] sm:$0xf]
        %v2680 = vld [vmem:[%s935 + $0x74] sm:$0x1]
        %v2681 = vld [vmem:[%s935 + $0x78] sm:$0xf]
        %v2682 = vld [vmem:[%s935 + $0x7c] sm:$0xf]
        %v2683 = vld [vmem:[%s935 + $0x80] sm:$0x1]
        %v2684 = vld [vmem:[%s935 + $0x84] sm:$0xf]
        %v2685 = vld [vmem:[%s935 + $0x88] sm:$0xf]
        %v2686 = vld [vmem:[%s935 + $0x8c] sm:$0x1]
        %v2687 = vld [vmem:[%s935 + $0x90] sm:$0xf]
        %v2688 = vld [vmem:[%s935 + $0x94] sm:$0xf]
        %v2689 = vld [vmem:[%s935 + $0x98] sm:$0x1]
        %v2690 = vld [vmem:[%s935 + $0x9c] sm:$0xf]
        %v2691 = vld [vmem:[%s935 + $0xa0] sm:$0xf]
        %v2692 = vld [vmem:[%s935 + $0xa4] sm:$0x1]
        %v2693 = vld [vmem:[%s935 + $0xa8] sm:$0xf]
        %v2694 = vld [vmem:[%s935 + $0xac] sm:$0xf]
        %v2695 = vld [vmem:[%s935 + $0xb0] sm:$0x1]
        %v2696 = vld [vmem:[%s935 + $0xb4] sm:$0xf]
        %v2697 = vld [vmem:[%s935 + $0xb8] sm:$0xf]
        %v2698 = vld [vmem:[%s935 + $0xbc] sm:$0x1]
        %v2699 = vld [vmem:[%s935] sm:$0xe]
        %v2700 = vld [vmem:[%s935 + $0xc] sm:$0xe]
        %v2701 = vld [vmem:[%s935 + $0x18] sm:$0xe]
        %v2702 = vld [vmem:[%s935 + $0x24] sm:$0xe]
        %v2703 = vld [vmem:[%s935 + $0x30] sm:$0xe]
        %v2704 = vld [vmem:[%s935 + $0x3c] sm:$0xe]
        %v2705 = vld [vmem:[%s935 + $0x48] sm:$0xe]
        %v2706 = vld [vmem:[%s935 + $0x54] sm:$0xe]
        %v2707 = vld [vmem:[%s935 + $0x60] sm:$0xe]
        %v2708 = vld [vmem:[%s935 + $0x6c] sm:$0xe]
        %v2709 = vld [vmem:[%s935 + $0x78] sm:$0xe]
        %v2710 = vld [vmem:[%s935 + $0x84] sm:$0xe]
        %v2711 = vld [vmem:[%s935 + $0x90] sm:$0xe]
        %v2712 = vld [vmem:[%s935 + $0x9c] sm:$0xe]
        %v2713 = vld [vmem:[%s935 + $0xa8] sm:$0xe]
        %v2714 = vld [vmem:[%s935 + $0xb4] sm:$0xe]
        %v2715 = vld [vmem:[%s987] sm:$0xf]
        %v2716 = vld [vmem:[%s987 + $0x4] sm:$0xf]
        %v2717 = vld [vmem:[%s987 + $0x8] sm:$0x1]
        %v2718 = vld [vmem:[%s987 + $0xc] sm:$0xf]
        %v2719 = vld [vmem:[%s987 + $0x10] sm:$0xf]
        %v2720 = vld [vmem:[%s987 + $0x14] sm:$0x1]
        %v2721 = vld [vmem:[%s987 + $0x18] sm:$0xf]
        %v2722 = vld [vmem:[%s987 + $0x1c] sm:$0xf]
        %v2723 = vld [vmem:[%s987 + $0x20] sm:$0x1]
        %v2724 = vld [vmem:[%s987 + $0x24] sm:$0xf]
        %v2725 = vld [vmem:[%s987 + $0x28] sm:$0xf]
        %v2726 = vld [vmem:[%s987 + $0x2c] sm:$0x1]
        %v2727 = vld [vmem:[%s987 + $0x30] sm:$0xf]
        %v2728 = vld [vmem:[%s987 + $0x34] sm:$0xf]
        %v2729 = vld [vmem:[%s987 + $0x38] sm:$0x1]
        %v2730 = vld [vmem:[%s987 + $0x3c] sm:$0xf]
        %v2731 = vld [vmem:[%s987 + $0x40] sm:$0xf]
        %v2732 = vld [vmem:[%s987 + $0x44] sm:$0x1]
        %v2733 = vld [vmem:[%s987 + $0x48] sm:$0xf]
        %v2734 = vld [vmem:[%s987 + $0x4c] sm:$0xf]
        %v2735 = vld [vmem:[%s987 + $0x50] sm:$0x1]
        %v2736 = vld [vmem:[%s987 + $0x54] sm:$0xf]
        %v2737 = vld [vmem:[%s987 + $0x58] sm:$0xf]
        %v2738 = vld [vmem:[%s987 + $0x5c] sm:$0x1]
        %v2739 = vld [vmem:[%s987 + $0x60] sm:$0xf]
        %v2740 = vld [vmem:[%s987 + $0x64] sm:$0xf]
        %v2741 = vld [vmem:[%s987 + $0x68] sm:$0x1]
        %v2742 = vld [vmem:[%s987 + $0x6c] sm:$0xf]
        %v2743 = vld [vmem:[%s987 + $0x70] sm:$0xf]
        %v2744 = vld [vmem:[%s987 + $0x74] sm:$0x1]
        %v2745 = vld [vmem:[%s987 + $0x78] sm:$0xf]
        %v2746 = vld [vmem:[%s987 + $0x7c] sm:$0xf]
        %v2747 = vld [vmem:[%s987 + $0x80] sm:$0x1]
        %v2748 = vld [vmem:[%s987 + $0x84] sm:$0xf]
        %v2749 = vld [vmem:[%s987 + $0x88] sm:$0xf]
        %v2750 = vld [vmem:[%s987 + $0x8c] sm:$0x1]
        %v2751 = vld [vmem:[%s987 + $0x90] sm:$0xf]
        %v2752 = vld [vmem:[%s987 + $0x94] sm:$0xf]
        %v2753 = vld [vmem:[%s987 + $0x98] sm:$0x1]
        %v2754 = vld [vmem:[%s987 + $0x9c] sm:$0xf]
        %v2755 = vld [vmem:[%s987 + $0xa0] sm:$0xf]
        %v2756 = vld [vmem:[%s987 + $0xa4] sm:$0x1]
        %v2757 = vld [vmem:[%s987 + $0xa8] sm:$0xf]
        %v2758 = vld [vmem:[%s987 + $0xac] sm:$0xf]
        %v2759 = vld [vmem:[%s987 + $0xb0] sm:$0x1]
        %v2760 = vld [vmem:[%s987 + $0xb4] sm:$0xf]
        %v2761 = vld [vmem:[%s987 + $0xb8] sm:$0xf]
        %v2762 = vld [vmem:[%s987 + $0xbc] sm:$0x1]
        %v2763 = vld [vmem:[%s987] sm:$0xe]
        %v2764 = vld [vmem:[%s987 + $0xc] sm:$0xe]
        %v2765 = vld [vmem:[%s987 + $0x18] sm:$0xe]
        %v2766 = vld [vmem:[%s987 + $0x24] sm:$0xe]
        %v2767 = vld [vmem:[%s987 + $0x30] sm:$0xe]
        %v2768 = vld [vmem:[%s987 + $0x3c] sm:$0xe]
        %v2769 = vld [vmem:[%s987 + $0x48] sm:$0xe]
        %v2770 = vld [vmem:[%s987 + $0x54] sm:$0xe]
        %v2771 = vld [vmem:[%s987 + $0x60] sm:$0xe]
        %v2772 = vld [vmem:[%s987 + $0x6c] sm:$0xe]
        %v2773 = vld [vmem:[%s987 + $0x78] sm:$0xe]
        %v2774 = vld [vmem:[%s987 + $0x84] sm:$0xe]
        %v2775 = vld [vmem:[%s987 + $0x90] sm:$0xe]
        %v2776 = vld [vmem:[%s987 + $0x9c] sm:$0xe]
        %v2777 = vld [vmem:[%s987 + $0xa8] sm:$0xe]
        %v2778 = vld [vmem:[%s987 + $0xb4] sm:$0xe]
        %v2827 = vunpack.c.l.b16 %v2651
        %v2828 = vunpack.c.l.b16 %v2652
        %v2829 = vunpack.c.l.b16 %v2653
        %v2830 = vunpack.c.l.b16 %v2654
        %v2831 = vunpack.c.l.b16 %v2655
        %v2832 = vunpack.c.l.b16 %v2656
        %v2833 = vunpack.c.l.b16 %v2657
        %v2834 = vunpack.c.l.b16 %v2658
        %v2835 = vunpack.c.l.b16 %v2659
        %v2836 = vunpack.c.l.b16 %v2660
        %v2837 = vunpack.c.l.b16 %v2661
        %v2838 = vunpack.c.l.b16 %v2662
        %v2839 = vunpack.c.l.b16 %v2663
        %v2840 = vunpack.c.l.b16 %v2664
        %v2841 = vunpack.c.l.b16 %v2665
        %v2842 = vunpack.c.l.b16 %v2666
        %v2843 = vunpack.c.l.b16 %v2667
        %v2844 = vunpack.c.l.b16 %v2668
        %v2845 = vunpack.c.l.b16 %v2669
        %v2846 = vunpack.c.l.b16 %v2670
        %v2847 = vunpack.c.l.b16 %v2671
        %v2848 = vunpack.c.l.b16 %v2672
        %v2849 = vunpack.c.l.b16 %v2673
        %v2850 = vunpack.c.l.b16 %v2674
        %v2851 = vunpack.c.l.b16 %v2675
        %v2852 = vunpack.c.l.b16 %v2676
        %v2853 = vunpack.c.l.b16 %v2677
        %v2854 = vunpack.c.l.b16 %v2678
        %v2855 = vunpack.c.l.b16 %v2679
        %v2856 = vunpack.c.l.b16 %v2680
        %v2857 = vunpack.c.l.b16 %v2681
        %v2858 = vunpack.c.l.b16 %v2682
        %v2859 = vunpack.c.l.b16 %v2683
        %v2860 = vunpack.c.l.b16 %v2684
        %v2861 = vunpack.c.l.b16 %v2685
        %v2862 = vunpack.c.l.b16 %v2686
        %v2863 = vunpack.c.l.b16 %v2687
        %v2864 = vunpack.c.l.b16 %v2688
        %v2865 = vunpack.c.l.b16 %v2689
        %v2866 = vunpack.c.l.b16 %v2690
        %v2867 = vunpack.c.l.b16 %v2691
        %v2868 = vunpack.c.l.b16 %v2692
        %v2869 = vunpack.c.l.b16 %v2693
        %v2870 = vunpack.c.l.b16 %v2694
        %v2871 = vunpack.c.l.b16 %v2695
        %v2872 = vunpack.c.l.b16 %v2696
        %v2873 = vunpack.c.l.b16 %v2697
        %v2874 = vunpack.c.l.b16 %v2698
        %v2875 = vpack.c.b16 %v2828, %v2827
        %v2876 = vpack.c.b16 %v2829, %v2829
        %v2877 = vpack.c.b16 %v2831, %v2830
        %v2878 = vpack.c.b16 %v2832, %v2832
        %v2879 = vpack.c.b16 %v2834, %v2833
        %v2880 = vpack.c.b16 %v2835, %v2835
        %v2881 = vpack.c.b16 %v2837, %v2836
        %v2882 = vpack.c.b16 %v2838, %v2838
        %v2883 = vpack.c.b16 %v2840, %v2839
        %v2884 = vpack.c.b16 %v2841, %v2841
        %v2885 = vpack.c.b16 %v2843, %v2842
        %v2886 = vpack.c.b16 %v2844, %v2844
        %v2887 = vpack.c.b16 %v2846, %v2845
        %v2888 = vpack.c.b16 %v2847, %v2847
        %v2889 = vpack.c.b16 %v2849, %v2848
        %v2890 = vpack.c.b16 %v2850, %v2850
        %v2891 = vpack.c.b16 %v2852, %v2851
        %v2892 = vpack.c.b16 %v2853, %v2853
        %v2893 = vpack.c.b16 %v2855, %v2854
        %v2894 = vpack.c.b16 %v2856, %v2856
        %v2895 = vpack.c.b16 %v2858, %v2857
        %v2896 = vpack.c.b16 %v2859, %v2859
        %v2897 = vpack.c.b16 %v2861, %v2860
        %v2898 = vpack.c.b16 %v2862, %v2862
        %v2899 = vpack.c.b16 %v2864, %v2863
        %v2900 = vpack.c.b16 %v2865, %v2865
        %v2901 = vpack.c.b16 %v2867, %v2866
        %v2902 = vpack.c.b16 %v2868, %v2868
        %v2903 = vpack.c.b16 %v2870, %v2869
        %v2904 = vpack.c.b16 %v2871, %v2871
        %v2905 = vpack.c.b16 %v2873, %v2872
        %v2906 = vpack.c.b16 %v2874, %v2874
        %v2923 = vunpack.c.l.b16 %v2699
        %v2924 = vunpack.c.l.b16 %v2700
        %v2925 = vunpack.c.l.b16 %v2701
        %v2926 = vunpack.c.l.b16 %v2702
        %v2927 = vunpack.c.l.b16 %v2703
        %v2928 = vunpack.c.l.b16 %v2704
        %v2929 = vunpack.c.l.b16 %v2705
        %v2930 = vunpack.c.l.b16 %v2706
        %v2931 = vunpack.c.l.b16 %v2707
        %v2932 = vunpack.c.l.b16 %v2708
        %v2933 = vunpack.c.l.b16 %v2709
        %v2934 = vunpack.c.l.b16 %v2710
        %v2935 = vunpack.c.l.b16 %v2711
        %v2936 = vunpack.c.l.b16 %v2712
        %v2937 = vunpack.c.l.b16 %v2713
        %v2938 = vunpack.c.l.b16 %v2714
        %v2939 = vpack.c.b16 %v2828, %v2923
        %v2940 = vpack.c.b16 %v2831, %v2924
        %v2941 = vpack.c.b16 %v2834, %v2925
        %v2942 = vpack.c.b16 %v2837, %v2926
        %v2943 = vpack.c.b16 %v2840, %v2927
        %v2944 = vpack.c.b16 %v2843, %v2928
        %v2945 = vpack.c.b16 %v2846, %v2929
        %v2946 = vpack.c.b16 %v2849, %v2930
        %v2947 = vpack.c.b16 %v2852, %v2931
        %v2948 = vpack.c.b16 %v2855, %v2932
        %v2949 = vpack.c.b16 %v2858, %v2933
        %v2950 = vpack.c.b16 %v2861, %v2934
        %v2951 = vpack.c.b16 %v2864, %v2935
        %v2952 = vpack.c.b16 %v2867, %v2936
        %v2953 = vpack.c.b16 %v2870, %v2937
        %v2954 = vpack.c.b16 %v2873, %v2938
        %v2956 = vshrl.u32 %v2939, 16
        %v2958 = vshll.u32 %v2939, 16
        %v2960 = vrot.slane %v2958, 1
        %v2961 = vor.u32 %v2956, %v2960
        %v2963 = vshll.u32 %v2876, 16
        %v2965 = vrot.slane %v2963, 1
        %v2966 = vsel %vm1164, %v2961, %v2965
        %v2967 = vshrl.u32 %v2876, 16
        %v2970 = vshrl.u32 %v2940, 16
        %v2972 = vshll.u32 %v2940, 16
        %v2974 = vrot.slane %v2972, 1
        %v2975 = vor.u32 %v2970, %v2974
        %v2977 = vshll.u32 %v2878, 16
        %v2979 = vrot.slane %v2977, 1
        %v2980 = vsel %vm1164, %v2975, %v2979
        %v2981 = vshrl.u32 %v2878, 16
        %v2984 = vshrl.u32 %v2941, 16
        %v2986 = vshll.u32 %v2941, 16
        %v2988 = vrot.slane %v2986, 1
        %v2989 = vor.u32 %v2984, %v2988
        %v2991 = vshll.u32 %v2880, 16
        %v2993 = vrot.slane %v2991, 1
        %v2994 = vsel %vm1164, %v2989, %v2993
        %v2995 = vshrl.u32 %v2880, 16
        %v2998 = vshrl.u32 %v2942, 16
        %v3000 = vshll.u32 %v2942, 16
        %v3002 = vrot.slane %v3000, 1
        %v3003 = vor.u32 %v2998, %v3002
        %v3005 = vshll.u32 %v2882, 16
        %v3007 = vrot.slane %v3005, 1
        %v3008 = vsel %vm1164, %v3003, %v3007
        %v3009 = vshrl.u32 %v2882, 16
        %v3012 = vshrl.u32 %v2943, 16
        %v3014 = vshll.u32 %v2943, 16
        %v3016 = vrot.slane %v3014, 1
        %v3017 = vor.u32 %v3012, %v3016
        %v3019 = vshll.u32 %v2884, 16
        %v3021 = vrot.slane %v3019, 1
        %v3022 = vsel %vm1164, %v3017, %v3021
        %v3023 = vshrl.u32 %v2884, 16
        %v3026 = vshrl.u32 %v2944, 16
        %v3028 = vshll.u32 %v2944, 16
        %v3030 = vrot.slane %v3028, 1
        %v3031 = vor.u32 %v3026, %v3030
        %v3033 = vshll.u32 %v2886, 16
        %v3035 = vrot.slane %v3033, 1
        %v3036 = vsel %vm1164, %v3031, %v3035
        %v3037 = vshrl.u32 %v2886, 16
        %v3040 = vshrl.u32 %v2945, 16
        %v3042 = vshll.u32 %v2945, 16
        %v3044 = vrot.slane %v3042, 1
        %v3045 = vor.u32 %v3040, %v3044
        %v3047 = vshll.u32 %v2888, 16
        %v3049 = vrot.slane %v3047, 1
        %v3050 = vsel %vm1164, %v3045, %v3049
        %v3051 = vshrl.u32 %v2888, 16
        %v3054 = vshrl.u32 %v2946, 16
        %v3056 = vshll.u32 %v2946, 16
        %v3058 = vrot.slane %v3056, 1
        %v3059 = vor.u32 %v3054, %v3058
        %v3061 = vshll.u32 %v2890, 16
        %v3063 = vrot.slane %v3061, 1
        %v3064 = vsel %vm1164, %v3059, %v3063
        %v3065 = vshrl.u32 %v2890, 16
        %v3068 = vshrl.u32 %v2947, 16
        %v3070 = vshll.u32 %v2947, 16
        %v3072 = vrot.slane %v3070, 1
        %v3073 = vor.u32 %v3068, %v3072
        %v3075 = vshll.u32 %v2892, 16
        %v3077 = vrot.slane %v3075, 1
        %v3078 = vsel %vm1164, %v3073, %v3077
        %v3079 = vshrl.u32 %v2892, 16
        %v3082 = vshrl.u32 %v2948, 16
        %v3084 = vshll.u32 %v2948, 16
        %v3086 = vrot.slane %v3084, 1
        %v3087 = vor.u32 %v3082, %v3086
        %v3089 = vshll.u32 %v2894, 16
        %v3091 = vrot.slane %v3089, 1
        %v3092 = vsel %vm1164, %v3087, %v3091
        %v3093 = vshrl.u32 %v2894, 16
        %v3096 = vshrl.u32 %v2949, 16
        %v3098 = vshll.u32 %v2949, 16
        %v3100 = vrot.slane %v3098, 1
        %v3101 = vor.u32 %v3096, %v3100
        %v3103 = vshll.u32 %v2896, 16
        %v3105 = vrot.slane %v3103, 1
        %v3106 = vsel %vm1164, %v3101, %v3105
        %v3107 = vshrl.u32 %v2896, 16
        %v3110 = vshrl.u32 %v2950, 16
        %v3112 = vshll.u32 %v2950, 16
        %v3114 = vrot.slane %v3112, 1
        %v3115 = vor.u32 %v3110, %v3114
        %v3117 = vshll.u32 %v2898, 16
        %v3119 = vrot.slane %v3117, 1
        %v3120 = vsel %vm1164, %v3115, %v3119
        %v3121 = vshrl.u32 %v2898, 16
        %v3124 = vshrl.u32 %v2951, 16
        %v3126 = vshll.u32 %v2951, 16
        %v3128 = vrot.slane %v3126, 1
        %v3129 = vor.u32 %v3124, %v3128
        %v3131 = vshll.u32 %v2900, 16
        %v3133 = vrot.slane %v3131, 1
        %v3134 = vsel %vm1164, %v3129, %v3133
        %v3135 = vshrl.u32 %v2900, 16
        %v3138 = vshrl.u32 %v2952, 16
        %v3140 = vshll.u32 %v2952, 16
        %v3142 = vrot.slane %v3140, 1
        %v3143 = vor.u32 %v3138, %v3142
        %v3145 = vshll.u32 %v2902, 16
        %v3147 = vrot.slane %v3145, 1
        %v3148 = vsel %vm1164, %v3143, %v3147
        %v3149 = vshrl.u32 %v2902, 16
        %v3152 = vshrl.u32 %v2953, 16
        %v3154 = vshll.u32 %v2953, 16
        %v3156 = vrot.slane %v3154, 1
        %v3157 = vor.u32 %v3152, %v3156
        %v3159 = vshll.u32 %v2904, 16
        %v3161 = vrot.slane %v3159, 1
        %v3162 = vsel %vm1164, %v3157, %v3161
        %v3163 = vshrl.u32 %v2904, 16
        %v3166 = vshrl.u32 %v2954, 16
        %v3168 = vshll.u32 %v2954, 16
        %v3170 = vrot.slane %v3168, 1
        %v3171 = vor.u32 %v3166, %v3170
        %v3173 = vshll.u32 %v2906, 16
        %v3175 = vrot.slane %v3173, 1
        %v3176 = vsel %vm1164, %v3171, %v3175
        %v3177 = vshrl.u32 %v2906, 16
        %3179 = vrot.lane.b32.xlu0 %v2966, 4
        %v3180 = vpop.permute.xlu0 %3179
        %3181 = vrot.lane.b32.xlu0 %v2967, 4
        %v3182 = vpop.permute.xlu0 %3181
        %3183 = vrot.lane.b32.xlu0 %v2980, 4
        %v3184 = vpop.permute.xlu0 %3183
        %3185 = vrot.lane.b32.xlu0 %v2981, 4
        %v3186 = vpop.permute.xlu0 %3185
        %3187 = vrot.lane.b32.xlu0 %v2994, 4
        %v3188 = vpop.permute.xlu0 %3187
        %3189 = vrot.lane.b32.xlu0 %v2995, 4
        %v3190 = vpop.permute.xlu0 %3189
        %3191 = vrot.lane.b32.xlu0 %v3008, 4
        %v3192 = vpop.permute.xlu0 %3191
        %3193 = vrot.lane.b32.xlu0 %v3009, 4
        %v3194 = vpop.permute.xlu0 %3193
        %3195 = vrot.lane.b32.xlu0 %v3022, 4
        %v3196 = vpop.permute.xlu0 %3195
        %3197 = vrot.lane.b32.xlu0 %v3023, 4
        %v3198 = vpop.permute.xlu0 %3197
        %3199 = vrot.lane.b32.xlu0 %v3036, 4
        %v3200 = vpop.permute.xlu0 %3199
        %3201 = vrot.lane.b32.xlu0 %v3037, 4
        %v3202 = vpop.permute.xlu0 %3201
        %3203 = vrot.lane.b32.xlu0 %v3050, 4
        %v3204 = vpop.permute.xlu0 %3203
        %3205 = vrot.lane.b32.xlu0 %v3051, 4
        %v3206 = vpop.permute.xlu0 %3205
        %3207 = vrot.lane.b32.xlu0 %v3064, 4
        %v3208 = vpop.permute.xlu0 %3207
        %3209 = vrot.lane.b32.xlu0 %v3065, 4
        %v3210 = vpop.permute.xlu0 %3209
        %3211 = vrot.lane.b32.xlu0 %v3078, 4
        %v3212 = vpop.permute.xlu0 %3211
        %3213 = vrot.lane.b32.xlu0 %v3079, 4
        %v3214 = vpop.permute.xlu0 %3213
        %3215 = vrot.lane.b32.xlu0 %v3092, 4
        %v3216 = vpop.permute.xlu0 %3215
        %3217 = vrot.lane.b32.xlu0 %v3093, 4
        %v3218 = vpop.permute.xlu0 %3217
        %3219 = vrot.lane.b32.xlu0 %v3106, 4
        %v3220 = vpop.permute.xlu0 %3219
        %3221 = vrot.lane.b32.xlu0 %v3107, 4
        %v3222 = vpop.permute.xlu0 %3221
        %3223 = vrot.lane.b32.xlu0 %v3120, 4
        %v3224 = vpop.permute.xlu0 %3223
        %3225 = vrot.lane.b32.xlu0 %v3121, 4
        %v3226 = vpop.permute.xlu0 %3225
        %3227 = vrot.lane.b32.xlu0 %v3134, 4
        %v3228 = vpop.permute.xlu0 %3227
        %3229 = vrot.lane.b32.xlu0 %v3135, 4
        %v3230 = vpop.permute.xlu0 %3229
        %3231 = vrot.lane.b32.xlu0 %v3148, 4
        %v3232 = vpop.permute.xlu0 %3231
        %3233 = vrot.lane.b32.xlu0 %v3149, 4
        %v3234 = vpop.permute.xlu0 %3233
        %3235 = vrot.lane.b32.xlu0 %v3162, 4
        %v3236 = vpop.permute.xlu0 %3235
        %3237 = vrot.lane.b32.xlu0 %v3163, 4
        %v3238 = vpop.permute.xlu0 %3237
        %3239 = vrot.lane.b32.xlu0 %v3176, 4
        %v3240 = vpop.permute.xlu0 %3239
        %3241 = vrot.lane.b32.xlu0 %v3177, 4
        %v3242 = vpop.permute.xlu0 %3241
        %v3291 = vunpack.c.l.b16 %v2715
        %v3292 = vunpack.c.l.b16 %v2716
        %v3293 = vunpack.c.l.b16 %v2717
        %v3294 = vunpack.c.l.b16 %v2718
        %v3295 = vunpack.c.l.b16 %v2719
        %v3296 = vunpack.c.l.b16 %v2720
        %v3297 = vunpack.c.l.b16 %v2721
        %v3298 = vunpack.c.l.b16 %v2722
        %v3299 = vunpack.c.l.b16 %v2723
        %v3300 = vunpack.c.l.b16 %v2724
        %v3301 = vunpack.c.l.b16 %v2725
        %v3302 = vunpack.c.l.b16 %v2726
        %v3303 = vunpack.c.l.b16 %v2727
        %v3304 = vunpack.c.l.b16 %v2728
        %v3305 = vunpack.c.l.b16 %v2729
        %v3306 = vunpack.c.l.b16 %v2730
        %v3307 = vunpack.c.l.b16 %v2731
        %v3308 = vunpack.c.l.b16 %v2732
        %v3309 = vunpack.c.l.b16 %v2733
        %v3310 = vunpack.c.l.b16 %v2734
        %v3311 = vunpack.c.l.b16 %v2735
        %v3312 = vunpack.c.l.b16 %v2736
        %v3313 = vunpack.c.l.b16 %v2737
        %v3314 = vunpack.c.l.b16 %v2738
        %v3315 = vunpack.c.l.b16 %v2739
        %v3316 = vunpack.c.l.b16 %v2740
        %v3317 = vunpack.c.l.b16 %v2741
        %v3318 = vunpack.c.l.b16 %v2742
        %v3319 = vunpack.c.l.b16 %v2743
        %v3320 = vunpack.c.l.b16 %v2744
        %v3321 = vunpack.c.l.b16 %v2745
        %v3322 = vunpack.c.l.b16 %v2746
        %v3323 = vunpack.c.l.b16 %v2747
        %v3324 = vunpack.c.l.b16 %v2748
        %v3325 = vunpack.c.l.b16 %v2749
        %v3326 = vunpack.c.l.b16 %v2750
        %v3327 = vunpack.c.l.b16 %v2751
        %v3328 = vunpack.c.l.b16 %v2752
        %v3329 = vunpack.c.l.b16 %v2753
        %v3330 = vunpack.c.l.b16 %v2754
        %v3331 = vunpack.c.l.b16 %v2755
        %v3332 = vunpack.c.l.b16 %v2756
        %v3333 = vunpack.c.l.b16 %v2757
        %v3334 = vunpack.c.l.b16 %v2758
        %v3335 = vunpack.c.l.b16 %v2759
        %v3336 = vunpack.c.l.b16 %v2760
        %v3337 = vunpack.c.l.b16 %v2761
        %v3338 = vunpack.c.l.b16 %v2762
        %v3339 = vpack.c.b16 %v3292, %v3291
        %v3340 = vpack.c.b16 %v3293, %v3293
        %v3341 = vpack.c.b16 %v3295, %v3294
        %v3342 = vpack.c.b16 %v3296, %v3296
        %v3343 = vpack.c.b16 %v3298, %v3297
        %v3344 = vpack.c.b16 %v3299, %v3299
        %v3345 = vpack.c.b16 %v3301, %v3300
        %v3346 = vpack.c.b16 %v3302, %v3302
        %v3347 = vpack.c.b16 %v3304, %v3303
        %v3348 = vpack.c.b16 %v3305, %v3305
        %v3349 = vpack.c.b16 %v3307, %v3306
        %v3350 = vpack.c.b16 %v3308, %v3308
        %v3351 = vpack.c.b16 %v3310, %v3309
        %v3352 = vpack.c.b16 %v3311, %v3311
        %v3353 = vpack.c.b16 %v3313, %v3312
        %v3354 = vpack.c.b16 %v3314, %v3314
        %v3355 = vpack.c.b16 %v3316, %v3315
        %v3356 = vpack.c.b16 %v3317, %v3317
        %v3357 = vpack.c.b16 %v3319, %v3318
        %v3358 = vpack.c.b16 %v3320, %v3320
        %v3359 = vpack.c.b16 %v3322, %v3321
        %v3360 = vpack.c.b16 %v3323, %v3323
        %v3361 = vpack.c.b16 %v3325, %v3324
        %v3362 = vpack.c.b16 %v3326, %v3326
        %v3363 = vpack.c.b16 %v3328, %v3327
        %v3364 = vpack.c.b16 %v3329, %v3329
        %v3365 = vpack.c.b16 %v3331, %v3330
        %v3366 = vpack.c.b16 %v3332, %v3332
        %v3367 = vpack.c.b16 %v3334, %v3333
        %v3368 = vpack.c.b16 %v3335, %v3335
        %v3369 = vpack.c.b16 %v3337, %v3336
        %v3370 = vpack.c.b16 %v3338, %v3338
        %3371 = vrot.lane.b32.xlu0 %v3339, 8
        %v3372 = vpop.permute.xlu0 %3371
        %3373 = vrot.lane.b32.xlu0 %v3340, 8
        %v3374 = vpop.permute.xlu0 %3373
        %3375 = vrot.lane.b32.xlu0 %v3341, 8
        %v3376 = vpop.permute.xlu0 %3375
        %3377 = vrot.lane.b32.xlu0 %v3342, 8
        %v3378 = vpop.permute.xlu0 %3377
        %3379 = vrot.lane.b32.xlu0 %v3343, 8
        %v3380 = vpop.permute.xlu0 %3379
        %3381 = vrot.lane.b32.xlu0 %v3344, 8
        %v3382 = vpop.permute.xlu0 %3381
        %3383 = vrot.lane.b32.xlu0 %v3345, 8
        %v3384 = vpop.permute.xlu0 %3383
        %3385 = vrot.lane.b32.xlu0 %v3346, 8
        %v3386 = vpop.permute.xlu0 %3385
        %3387 = vrot.lane.b32.xlu0 %v3347, 8
        %v3388 = vpop.permute.xlu0 %3387
        %3389 = vrot.lane.b32.xlu0 %v3348, 8
        %v3390 = vpop.permute.xlu0 %3389
        %3391 = vrot.lane.b32.xlu0 %v3349, 8
        %v3392 = vpop.permute.xlu0 %3391
        %3393 = vrot.lane.b32.xlu0 %v3350, 8
        %v3394 = vpop.permute.xlu0 %3393
        %3395 = vrot.lane.b32.xlu0 %v3351, 8
        %v3396 = vpop.permute.xlu0 %3395
        %3397 = vrot.lane.b32.xlu0 %v3352, 8
        %v3398 = vpop.permute.xlu0 %3397
        %3399 = vrot.lane.b32.xlu0 %v3353, 8
        %v3400 = vpop.permute.xlu0 %3399
        %3401 = vrot.lane.b32.xlu0 %v3354, 8
        %v3402 = vpop.permute.xlu0 %3401
        %3403 = vrot.lane.b32.xlu0 %v3355, 8
        %v3404 = vpop.permute.xlu0 %3403
        %3405 = vrot.lane.b32.xlu0 %v3356, 8
        %v3406 = vpop.permute.xlu0 %3405
        %3407 = vrot.lane.b32.xlu0 %v3357, 8
        %v3408 = vpop.permute.xlu0 %3407
        %3409 = vrot.lane.b32.xlu0 %v3358, 8
        %v3410 = vpop.permute.xlu0 %3409
        %3411 = vrot.lane.b32.xlu0 %v3359, 8
        %v3412 = vpop.permute.xlu0 %3411
        %3413 = vrot.lane.b32.xlu0 %v3360, 8
        %v3414 = vpop.permute.xlu0 %3413
        %3415 = vrot.lane.b32.xlu0 %v3361, 8
        %v3416 = vpop.permute.xlu0 %3415
        %3417 = vrot.lane.b32.xlu0 %v3362, 8
        %v3418 = vpop.permute.xlu0 %3417
        %3419 = vrot.lane.b32.xlu0 %v3363, 8
        %v3420 = vpop.permute.xlu0 %3419
        %3421 = vrot.lane.b32.xlu0 %v3364, 8
        %v3422 = vpop.permute.xlu0 %3421
        %3423 = vrot.lane.b32.xlu0 %v3365, 8
        %v3424 = vpop.permute.xlu0 %3423
        %3425 = vrot.lane.b32.xlu0 %v3366, 8
        %v3426 = vpop.permute.xlu0 %3425
        %3427 = vrot.lane.b32.xlu0 %v3367, 8
        %v3428 = vpop.permute.xlu0 %3427
        %3429 = vrot.lane.b32.xlu0 %v3368, 8
        %v3430 = vpop.permute.xlu0 %3429
        %3431 = vrot.lane.b32.xlu0 %v3369, 8
        %v3432 = vpop.permute.xlu0 %3431
        %3433 = vrot.lane.b32.xlu0 %v3370, 8
        %v3434 = vpop.permute.xlu0 %3433
        %v3451 = vunpack.c.l.b16 %v2763
        %v3452 = vunpack.c.l.b16 %v2764
        %v3453 = vunpack.c.l.b16 %v2765
        %v3454 = vunpack.c.l.b16 %v2766
        %v3455 = vunpack.c.l.b16 %v2767
        %v3456 = vunpack.c.l.b16 %v2768
        %v3457 = vunpack.c.l.b16 %v2769
        %v3458 = vunpack.c.l.b16 %v2770
        %v3459 = vunpack.c.l.b16 %v2771
        %v3460 = vunpack.c.l.b16 %v2772
        %v3461 = vunpack.c.l.b16 %v2773
        %v3462 = vunpack.c.l.b16 %v2774
        %v3463 = vunpack.c.l.b16 %v2775
        %v3464 = vunpack.c.l.b16 %v2776
        %v3465 = vunpack.c.l.b16 %v2777
        %v3466 = vunpack.c.l.b16 %v2778
        %v3467 = vpack.c.b16 %v3292, %v3451
        %v3468 = vpack.c.b16 %v3295, %v3452
        %v3469 = vpack.c.b16 %v3298, %v3453
        %v3470 = vpack.c.b16 %v3301, %v3454
        %v3471 = vpack.c.b16 %v3304, %v3455
        %v3472 = vpack.c.b16 %v3307, %v3456
        %v3473 = vpack.c.b16 %v3310, %v3457
        %v3474 = vpack.c.b16 %v3313, %v3458
        %v3475 = vpack.c.b16 %v3316, %v3459
        %v3476 = vpack.c.b16 %v3319, %v3460
        %v3477 = vpack.c.b16 %v3322, %v3461
        %v3478 = vpack.c.b16 %v3325, %v3462
        %v3479 = vpack.c.b16 %v3328, %v3463
        %v3480 = vpack.c.b16 %v3331, %v3464
        %v3481 = vpack.c.b16 %v3334, %v3465
        %v3482 = vpack.c.b16 %v3337, %v3466
        %v3484 = vshrl.u32 %v3467, 16
        %v3486 = vshll.u32 %v3467, 16
        %v3488 = vrot.slane %v3486, 1
        %v3489 = vor.u32 %v3484, %v3488
        %v3491 = vshll.u32 %v3340, 16
        %v3493 = vrot.slane %v3491, 1
        %v3494 = vsel %vm1164, %v3489, %v3493
        %v3495 = vshrl.u32 %v3340, 16
        %v3498 = vshrl.u32 %v3468, 16
        %v3500 = vshll.u32 %v3468, 16
        %v3502 = vrot.slane %v3500, 1
        %v3503 = vor.u32 %v3498, %v3502
        %v3505 = vshll.u32 %v3342, 16
        %v3507 = vrot.slane %v3505, 1
        %v3508 = vsel %vm1164, %v3503, %v3507
        %v3509 = vshrl.u32 %v3342, 16
        %v3512 = vshrl.u32 %v3469, 16
        %v3514 = vshll.u32 %v3469, 16
        %v3516 = vrot.slane %v3514, 1
        %v3517 = vor.u32 %v3512, %v3516
        %v3519 = vshll.u32 %v3344, 16
        %v3521 = vrot.slane %v3519, 1
        %v3522 = vsel %vm1164, %v3517, %v3521
        %v3523 = vshrl.u32 %v3344, 16
        %v3526 = vshrl.u32 %v3470, 16
        %v3528 = vshll.u32 %v3470, 16
        %v3530 = vrot.slane %v3528, 1
        %v3531 = vor.u32 %v3526, %v3530
        %v3533 = vshll.u32 %v3346, 16
        %v3535 = vrot.slane %v3533, 1
        %v3536 = vsel %vm1164, %v3531, %v3535
        %v3537 = vshrl.u32 %v3346, 16
        %v3540 = vshrl.u32 %v3471, 16
        %v3542 = vshll.u32 %v3471, 16
        %v3544 = vrot.slane %v3542, 1
        %v3545 = vor.u32 %v3540, %v3544
        %v3547 = vshll.u32 %v3348, 16
        %v3549 = vrot.slane %v3547, 1
        %v3550 = vsel %vm1164, %v3545, %v3549
        %v3551 = vshrl.u32 %v3348, 16
        %v3554 = vshrl.u32 %v3472, 16
        %v3556 = vshll.u32 %v3472, 16
        %v3558 = vrot.slane %v3556, 1
        %v3559 = vor.u32 %v3554, %v3558
        %v3561 = vshll.u32 %v3350, 16
        %v3563 = vrot.slane %v3561, 1
        %v3564 = vsel %vm1164, %v3559, %v3563
        %v3565 = vshrl.u32 %v3350, 16
        %v3568 = vshrl.u32 %v3473, 16
        %v3570 = vshll.u32 %v3473, 16
        %v3572 = vrot.slane %v3570, 1
        %v3573 = vor.u32 %v3568, %v3572
        %v3575 = vshll.u32 %v3352, 16
        %v3577 = vrot.slane %v3575, 1
        %v3578 = vsel %vm1164, %v3573, %v3577
        %v3579 = vshrl.u32 %v3352, 16
        %v3582 = vshrl.u32 %v3474, 16
        %v3584 = vshll.u32 %v3474, 16
        %v3586 = vrot.slane %v3584, 1
        %v3587 = vor.u32 %v3582, %v3586
        %v3589 = vshll.u32 %v3354, 16
        %v3591 = vrot.slane %v3589, 1
        %v3592 = vsel %vm1164, %v3587, %v3591
        %v3593 = vshrl.u32 %v3354, 16
        %v3596 = vshrl.u32 %v3475, 16
        %v3598 = vshll.u32 %v3475, 16
        %v3600 = vrot.slane %v3598, 1
        %v3601 = vor.u32 %v3596, %v3600
        %v3603 = vshll.u32 %v3356, 16
        %v3605 = vrot.slane %v3603, 1
        %v3606 = vsel %vm1164, %v3601, %v3605
        %v3607 = vshrl.u32 %v3356, 16
        %v3610 = vshrl.u32 %v3476, 16
        %v3612 = vshll.u32 %v3476, 16
        %v3614 = vrot.slane %v3612, 1
        %v3615 = vor.u32 %v3610, %v3614
        %v3617 = vshll.u32 %v3358, 16
        %v3619 = vrot.slane %v3617, 1
        %v3620 = vsel %vm1164, %v3615, %v3619
        %v3621 = vshrl.u32 %v3358, 16
        %v3624 = vshrl.u32 %v3477, 16
        %v3626 = vshll.u32 %v3477, 16
        %v3628 = vrot.slane %v3626, 1
        %v3629 = vor.u32 %v3624, %v3628
        %v3631 = vshll.u32 %v3360, 16
        %v3633 = vrot.slane %v3631, 1
        %v3634 = vsel %vm1164, %v3629, %v3633
        %v3635 = vshrl.u32 %v3360, 16
        %v3638 = vshrl.u32 %v3478, 16
        %v3640 = vshll.u32 %v3478, 16
        %v3642 = vrot.slane %v3640, 1
        %v3643 = vor.u32 %v3638, %v3642
        %v3645 = vshll.u32 %v3362, 16
        %v3647 = vrot.slane %v3645, 1
        %v3648 = vsel %vm1164, %v3643, %v3647
        %v3649 = vshrl.u32 %v3362, 16
        %v3652 = vshrl.u32 %v3479, 16
        %v3654 = vshll.u32 %v3479, 16
        %v3656 = vrot.slane %v3654, 1
        %v3657 = vor.u32 %v3652, %v3656
        %v3659 = vshll.u32 %v3364, 16
        %v3661 = vrot.slane %v3659, 1
        %v3662 = vsel %vm1164, %v3657, %v3661
        %v3663 = vshrl.u32 %v3364, 16
        %v3666 = vshrl.u32 %v3480, 16
        %v3668 = vshll.u32 %v3480, 16
        %v3670 = vrot.slane %v3668, 1
        %v3671 = vor.u32 %v3666, %v3670
        %v3673 = vshll.u32 %v3366, 16
        %v3675 = vrot.slane %v3673, 1
        %v3676 = vsel %vm1164, %v3671, %v3675
        %v3677 = vshrl.u32 %v3366, 16
        %v3680 = vshrl.u32 %v3481, 16
        %v3682 = vshll.u32 %v3481, 16
        %v3684 = vrot.slane %v3682, 1
        %v3685 = vor.u32 %v3680, %v3684
        %v3687 = vshll.u32 %v3368, 16
        %v3689 = vrot.slane %v3687, 1
        %v3690 = vsel %vm1164, %v3685, %v3689
        %v3691 = vshrl.u32 %v3368, 16
        %v3694 = vshrl.u32 %v3482, 16
        %v3696 = vshll.u32 %v3482, 16
        %v3698 = vrot.slane %v3696, 1
        %v3699 = vor.u32 %v3694, %v3698
        %v3701 = vshll.u32 %v3370, 16
        %v3703 = vrot.slane %v3701, 1
        %v3704 = vsel %vm1164, %v3699, %v3703
        %v3705 = vshrl.u32 %v3370, 16
        %3707 = vrot.lane.b32.xlu0 %v3494, 12
        %v3708 = vpop.permute.xlu0 %3707
        %3709 = vrot.lane.b32.xlu0 %v3495, 12
        %v3710 = vpop.permute.xlu0 %3709
        %3711 = vrot.lane.b32.xlu0 %v3508, 12
        %v3712 = vpop.permute.xlu0 %3711
        %3713 = vrot.lane.b32.xlu0 %v3509, 12
        %v3714 = vpop.permute.xlu0 %3713
        %3715 = vrot.lane.b32.xlu0 %v3522, 12
        %v3716 = vpop.permute.xlu0 %3715
        %3717 = vrot.lane.b32.xlu0 %v3523, 12
        %v3718 = vpop.permute.xlu0 %3717
        %3719 = vrot.lane.b32.xlu0 %v3536, 12
        %v3720 = vpop.permute.xlu0 %3719
        %3721 = vrot.lane.b32.xlu0 %v3537, 12
        %v3722 = vpop.permute.xlu0 %3721
        %3723 = vrot.lane.b32.xlu0 %v3550, 12
        %v3724 = vpop.permute.xlu0 %3723
        %3725 = vrot.lane.b32.xlu0 %v3551, 12
        %v3726 = vpop.permute.xlu0 %3725
        %3727 = vrot.lane.b32.xlu0 %v3564, 12
        %v3728 = vpop.permute.xlu0 %3727
        %3729 = vrot.lane.b32.xlu0 %v3565, 12
        %v3730 = vpop.permute.xlu0 %3729
        %3731 = vrot.lane.b32.xlu0 %v3578, 12
        %v3732 = vpop.permute.xlu0 %3731
        %3733 = vrot.lane.b32.xlu0 %v3579, 12
        %v3734 = vpop.permute.xlu0 %3733
        %3735 = vrot.lane.b32.xlu0 %v3592, 12
        %v3736 = vpop.permute.xlu0 %3735
        %3737 = vrot.lane.b32.xlu0 %v3593, 12
        %v3738 = vpop.permute.xlu0 %3737
        %3739 = vrot.lane.b32.xlu0 %v3606, 12
        %v3740 = vpop.permute.xlu0 %3739
        %3741 = vrot.lane.b32.xlu0 %v3607, 12
        %v3742 = vpop.permute.xlu0 %3741
        %3743 = vrot.lane.b32.xlu0 %v3620, 12
        %v3744 = vpop.permute.xlu0 %3743
        %3745 = vrot.lane.b32.xlu0 %v3621, 12
        %v3746 = vpop.permute.xlu0 %3745
        %3747 = vrot.lane.b32.xlu0 %v3634, 12
        %v3748 = vpop.permute.xlu0 %3747
        %3749 = vrot.lane.b32.xlu0 %v3635, 12
        %v3750 = vpop.permute.xlu0 %3749
        %3751 = vrot.lane.b32.xlu0 %v3648, 12
        %v3752 = vpop.permute.xlu0 %3751
        %3753 = vrot.lane.b32.xlu0 %v3649, 12
        %v3754 = vpop.permute.xlu0 %3753
        %3755 = vrot.lane.b32.xlu0 %v3662, 12
        %v3756 = vpop.permute.xlu0 %3755
        %3757 = vrot.lane.b32.xlu0 %v3663, 12
        %v3758 = vpop.permute.xlu0 %3757
        %3759 = vrot.lane.b32.xlu0 %v3676, 12
        %v3760 = vpop.permute.xlu0 %3759
        %3761 = vrot.lane.b32.xlu0 %v3677, 12
        %v3762 = vpop.permute.xlu0 %3761
        %3763 = vrot.lane.b32.xlu0 %v3690, 12
        %v3764 = vpop.permute.xlu0 %3763
        %3765 = vrot.lane.b32.xlu0 %v3691, 12
        %v3766 = vpop.permute.xlu0 %3765
        %3767 = vrot.lane.b32.xlu0 %v3704, 12
        %v3768 = vpop.permute.xlu0 %3767
        %3769 = vrot.lane.b32.xlu0 %v3705, 12
        %v3770 = vpop.permute.xlu0 %3769
        %v3773 = vsel %vm1773, %v2875, %v3180
        %v3775 = vsel %vm1773, %v2876, %v3182
        %v3778 = vsel %vm1773, %v2877, %v3184
        %v3780 = vsel %vm1773, %v2878, %v3186
        %v3783 = vsel %vm1773, %v2879, %v3188
        %v3785 = vsel %vm1773, %v2880, %v3190
        %v3788 = vsel %vm1773, %v2881, %v3192
        %v3790 = vsel %vm1773, %v2882, %v3194
        %v3793 = vsel %vm1773, %v2883, %v3196
        %v3795 = vsel %vm1773, %v2884, %v3198
        %v3798 = vsel %vm1773, %v2885, %v3200
        %v3800 = vsel %vm1773, %v2886, %v3202
        %v3803 = vsel %vm1773, %v2887, %v3204
        %v3805 = vsel %vm1773, %v2888, %v3206
        %v3808 = vsel %vm1773, %v2889, %v3208
        %v3810 = vsel %vm1773, %v2890, %v3210
        %v3813 = vsel %vm1773, %v2891, %v3212
        %v3815 = vsel %vm1773, %v2892, %v3214
        %v3818 = vsel %vm1773, %v2893, %v3216
        %v3820 = vsel %vm1773, %v2894, %v3218
        %v3823 = vsel %vm1773, %v2895, %v3220
        %v3825 = vsel %vm1773, %v2896, %v3222
        %v3828 = vsel %vm1773, %v2897, %v3224
        %v3830 = vsel %vm1773, %v2898, %v3226
        %v3833 = vsel %vm1773, %v2899, %v3228
        %v3835 = vsel %vm1773, %v2900, %v3230
        %v3838 = vsel %vm1773, %v2901, %v3232
        %v3840 = vsel %vm1773, %v2902, %v3234
        %v3843 = vsel %vm1773, %v2903, %v3236
        %v3845 = vsel %vm1773, %v2904, %v3238
        %v3848 = vsel %vm1773, %v2905, %v3240
        %v3850 = vsel %vm1773, %v2906, %v3242
        %v3852 = vsel %vm1806, %v3773, %v3372
        %v3854 = vsel %vm1806, %v3775, %v3374
        %v3856 = vsel %vm1806, %v3778, %v3376
        %v3858 = vsel %vm1806, %v3780, %v3378
        %v3860 = vsel %vm1806, %v3783, %v3380
        %v3862 = vsel %vm1806, %v3785, %v3382
        %v3864 = vsel %vm1806, %v3788, %v3384
        %v3866 = vsel %vm1806, %v3790, %v3386
        %v3868 = vsel %vm1806, %v3793, %v3388
        %v3870 = vsel %vm1806, %v3795, %v3390
        %v3872 = vsel %vm1806, %v3798, %v3392
        %v3874 = vsel %vm1806, %v3800, %v3394
        %v3876 = vsel %vm1806, %v3803, %v3396
        %v3878 = vsel %vm1806, %v3805, %v3398
        %v3880 = vsel %vm1806, %v3808, %v3400
        %v3882 = vsel %vm1806, %v3810, %v3402
        %v3884 = vsel %vm1806, %v3813, %v3404
        %v3886 = vsel %vm1806, %v3815, %v3406
        %v3888 = vsel %vm1806, %v3818, %v3408
        %v3890 = vsel %vm1806, %v3820, %v3410
        %v3892 = vsel %vm1806, %v3823, %v3412
        %v3894 = vsel %vm1806, %v3825, %v3414
        %v3896 = vsel %vm1806, %v3828, %v3416
        %v3898 = vsel %vm1806, %v3830, %v3418
        %v3900 = vsel %vm1806, %v3833, %v3420
        %v3902 = vsel %vm1806, %v3835, %v3422
        %v3904 = vsel %vm1806, %v3838, %v3424
        %v3906 = vsel %vm1806, %v3840, %v3426
        %v3908 = vsel %vm1806, %v3843, %v3428
        %v3910 = vsel %vm1806, %v3845, %v3430
        %v3912 = vsel %vm1806, %v3848, %v3432
        %v3914 = vsel %vm1806, %v3850, %v3434
        %v3916 = vsel %vm1839, %v3852, %v3708
        %v3918 = vsel %vm1839, %v3854, %v3710
        %v3920 = vsel %vm1839, %v3856, %v3712
        %v3922 = vsel %vm1839, %v3858, %v3714
        %v3924 = vsel %vm1839, %v3860, %v3716
        %v3926 = vsel %vm1839, %v3862, %v3718
        %v3928 = vsel %vm1839, %v3864, %v3720
        %v3930 = vsel %vm1839, %v3866, %v3722
        %v3932 = vsel %vm1839, %v3868, %v3724
        %v3934 = vsel %vm1839, %v3870, %v3726
        %v3936 = vsel %vm1839, %v3872, %v3728
        %v3938 = vsel %vm1839, %v3874, %v3730
        %v3940 = vsel %vm1839, %v3876, %v3732
        %v3942 = vsel %vm1839, %v3878, %v3734
        %v3944 = vsel %vm1839, %v3880, %v3736
        %v3946 = vsel %vm1839, %v3882, %v3738
        %v3948 = vsel %vm1839, %v3884, %v3740
        %v3950 = vsel %vm1839, %v3886, %v3742
        %v3952 = vsel %vm1839, %v3888, %v3744
        %v3954 = vsel %vm1839, %v3890, %v3746
        %v3956 = vsel %vm1839, %v3892, %v3748
        %v3958 = vsel %vm1839, %v3894, %v3750
        %v3960 = vsel %vm1839, %v3896, %v3752
        %v3962 = vsel %vm1839, %v3898, %v3754
        %v3964 = vsel %vm1839, %v3900, %v3756
        %v3966 = vsel %vm1839, %v3902, %v3758
        %v3968 = vsel %vm1839, %v3904, %v3760
        %v3970 = vsel %vm1839, %v3906, %v3762
        %v3972 = vsel %vm1839, %v3908, %v3764
        %v3974 = vsel %vm1839, %v3910, %v3766
        %v3976 = vsel %vm1839, %v3912, %v3768
        %v3978 = vsel %vm1839, %v3914, %v3770
        %v3979 = vshrl.u32 %v3916, 16
        %v3981 = vshll.u32 %v3916, 16
        %v3983 = vrot.slane %v3981, 1
        %v3984 = vor.u32 %v3979, %v3983
        %v3985 = vshll.u32 %v3918, 16
        %v3987 = vrot.slane %v3985, 1
        %v3988 = vsel %vm1164, %v3984, %v3987
        %v3989 = vshrl.u32 %v3920, 16
        %v3991 = vshll.u32 %v3920, 16
        %v3993 = vrot.slane %v3991, 1
        %v3994 = vor.u32 %v3989, %v3993
        %v3995 = vshll.u32 %v3922, 16
        %v3997 = vrot.slane %v3995, 1
        %v3998 = vsel %vm1164, %v3994, %v3997
        %v3999 = vshrl.u32 %v3924, 16
        %v4001 = vshll.u32 %v3924, 16
        %v4003 = vrot.slane %v4001, 1
        %v4004 = vor.u32 %v3999, %v4003
        %v4005 = vshll.u32 %v3926, 16
        %v4007 = vrot.slane %v4005, 1
        %v4008 = vsel %vm1164, %v4004, %v4007
        %v4009 = vshrl.u32 %v3928, 16
        %v4011 = vshll.u32 %v3928, 16
        %v4013 = vrot.slane %v4011, 1
        %v4014 = vor.u32 %v4009, %v4013
        %v4015 = vshll.u32 %v3930, 16
        %v4017 = vrot.slane %v4015, 1
        %v4018 = vsel %vm1164, %v4014, %v4017
        %v4019 = vshrl.u32 %v3932, 16
        %v4021 = vshll.u32 %v3932, 16
        %v4023 = vrot.slane %v4021, 1
        %v4024 = vor.u32 %v4019, %v4023
        %v4025 = vshll.u32 %v3934, 16
        %v4027 = vrot.slane %v4025, 1
        %v4028 = vsel %vm1164, %v4024, %v4027
        %v4029 = vshrl.u32 %v3936, 16
        %v4031 = vshll.u32 %v3936, 16
        %v4033 = vrot.slane %v4031, 1
        %v4034 = vor.u32 %v4029, %v4033
        %v4035 = vshll.u32 %v3938, 16
        %v4037 = vrot.slane %v4035, 1
        %v4038 = vsel %vm1164, %v4034, %v4037
        %v4039 = vshrl.u32 %v3940, 16
        %v4041 = vshll.u32 %v3940, 16
        %v4043 = vrot.slane %v4041, 1
        %v4044 = vor.u32 %v4039, %v4043
        %v4045 = vshll.u32 %v3942, 16
        %v4047 = vrot.slane %v4045, 1
        %v4048 = vsel %vm1164, %v4044, %v4047
        %v4049 = vshrl.u32 %v3944, 16
        %v4051 = vshll.u32 %v3944, 16
        %v4053 = vrot.slane %v4051, 1
        %v4054 = vor.u32 %v4049, %v4053
        %v4055 = vshll.u32 %v3946, 16
        %v4057 = vrot.slane %v4055, 1
        %v4058 = vsel %vm1164, %v4054, %v4057
        %v4059 = vshrl.u32 %v3948, 16
        %v4061 = vshll.u32 %v3948, 16
        %v4063 = vrot.slane %v4061, 1
        %v4064 = vor.u32 %v4059, %v4063
        %v4065 = vshll.u32 %v3950, 16
        %v4067 = vrot.slane %v4065, 1
        %v4068 = vsel %vm1164, %v4064, %v4067
        %v4069 = vshrl.u32 %v3952, 16
        %v4071 = vshll.u32 %v3952, 16
        %v4073 = vrot.slane %v4071, 1
        %v4074 = vor.u32 %v4069, %v4073
        %v4075 = vshll.u32 %v3954, 16
        %v4077 = vrot.slane %v4075, 1
        %v4078 = vsel %vm1164, %v4074, %v4077
        %v4079 = vshrl.u32 %v3956, 16
        %v4081 = vshll.u32 %v3956, 16
        %v4083 = vrot.slane %v4081, 1
        %v4084 = vor.u32 %v4079, %v4083
        %v4085 = vshll.u32 %v3958, 16
        %v4087 = vrot.slane %v4085, 1
        %v4088 = vsel %vm1164, %v4084, %v4087
        %v4089 = vshrl.u32 %v3960, 16
        %v4091 = vshll.u32 %v3960, 16
        %v4093 = vrot.slane %v4091, 1
        %v4094 = vor.u32 %v4089, %v4093
        %v4095 = vshll.u32 %v3962, 16
        %v4097 = vrot.slane %v4095, 1
        %v4098 = vsel %vm1164, %v4094, %v4097
        %v4099 = vshrl.u32 %v3964, 16
        %v4101 = vshll.u32 %v3964, 16
        %v4103 = vrot.slane %v4101, 1
        %v4104 = vor.u32 %v4099, %v4103
        %v4105 = vshll.u32 %v3966, 16
        %v4107 = vrot.slane %v4105, 1
        %v4108 = vsel %vm1164, %v4104, %v4107
        %v4109 = vshrl.u32 %v3968, 16
        %v4111 = vshll.u32 %v3968, 16
        %v4113 = vrot.slane %v4111, 1
        %v4114 = vor.u32 %v4109, %v4113
        %v4115 = vshll.u32 %v3970, 16
        %v4117 = vrot.slane %v4115, 1
        %v4118 = vsel %vm1164, %v4114, %v4117
        %v4119 = vshrl.u32 %v3972, 16
        %v4121 = vshll.u32 %v3972, 16
        %v4123 = vrot.slane %v4121, 1
        %v4124 = vor.u32 %v4119, %v4123
        %v4125 = vshll.u32 %v3974, 16
        %v4127 = vrot.slane %v4125, 1
        %v4128 = vsel %vm1164, %v4124, %v4127
        %v4129 = vshrl.u32 %v3976, 16
        %v4131 = vshll.u32 %v3976, 16
        %v4133 = vrot.slane %v4131, 1
        %v4134 = vor.u32 %v4129, %v4133
        %v4135 = vshll.u32 %v3978, 16
        %v4137 = vrot.slane %v4135, 1
        %v4138 = vsel %vm1164, %v4134, %v4137
        %s4139 = scalar_lea.vmem %s306, 8
        %v4140 = vld [vmem:[%s4139] sm:$0xf]
        %v4141 = vld [vmem:[%s4139 + $0x4] sm:$0xf]
        %v4142 = vld [vmem:[%s2] sm:$0x1]
        %v4144 = vlaneseq
        %v4145 = vshrl.u32 %v4144, 7
        %v4146 = vsub.s32 0, %v4145
        %v4147 = vrot.slane %v4142, %v4146
        %v4151 = vunpack.c.l.b16 %v4140
        %v4152 = vunpack.c.l.b16 %v4141
        %v4153 = vpack.c.b16 %v4152, %v4151
        %v4156 = vsel %vm1887, %v3988, 0
        %v4159 = vsel %vm1887, %v3998, 0
        %v4162 = vsel %vm1887, %v4008, 0
        %v4165 = vsel %vm1887, %v4018, 0
        %v4168 = vsel %vm1887, %v4028, 0
        %v4171 = vsel %vm1887, %v4038, 0
        %v4174 = vsel %vm1887, %v4048, 0
        %v4177 = vsel %vm1887, %v4058, 0
        %v4180 = vsel %vm1887, %v4068, 0
        %v4183 = vsel %vm1887, %v4078, 0
        %v4186 = vsel %vm1887, %v4088, 0
        %v4189 = vsel %vm1887, %v4098, 0
        %v4192 = vsel %vm1887, %v4108, 0
        %v4195 = vsel %vm1887, %v4118, 0
        %v4198 = vsel %vm1887, %v4128, 0
        %v4201 = vsel %vm1887, %v4138, 0
        %4203 = vmatprep.subr.bf16.mxu0 0
        %4204 = vmatpush1.bf16.msra.mxu0 0
        %4205 = vmatprep.subr.bf16.mxu0 0
        %4206 = vmatpush1.bf16.msra.mxu0 0
        %4207 = vmatprep.subr.bf16.mxu0 0
        %4208 = vmatpush1.bf16.msra.mxu0 0
        %4209 = vmatprep.subr.bf16.mxu0 0
        %4210 = vmatpush1.bf16.msra.mxu0 0
        %4211 = vmatprep.subr.bf16.mxu0 0
        %4212 = vmatpush1.bf16.msra.mxu0 0
        %4213 = vmatprep.subr.bf16.mxu0 0
        %4214 = vmatpush1.bf16.msra.mxu0 0
        %4215 = vmatprep.subr.bf16.mxu0 0
        %4216 = vmatpush1.bf16.msra.mxu0 0
        %4217 = vmatprep.subr.bf16.mxu0 0
        %4218 = vmatpush1.bf16.msra.mxu0 %v4153
        %4219 = vmatprep.subr.bf16.mxu0 0
        %4220 = vmatpush2.bf16.msra.mxu0 0
        %4221 = vmatprep.subr.bf16.mxu0 0
        %4222 = vmatpush2.bf16.msra.mxu0 0
        %4223 = vmatprep.subr.bf16.mxu0 0
        %4224 = vmatpush2.bf16.msra.mxu0 0
        %4225 = vmatprep.subr.bf16.mxu0 0
        %4226 = vmatpush2.bf16.msra.mxu0 0
        %4227 = vmatprep.subr.bf16.mxu0 0
        %4228 = vmatpush2.bf16.msra.mxu0 0
        %4229 = vmatprep.subr.bf16.mxu0 0
        %4230 = vmatpush2.bf16.msra.mxu0 0
        %4231 = vmatprep.subr.bf16.mxu0 0
        %4232 = vmatpush2.bf16.msra.mxu0 0
        %4233 = vmatprep.subr.bf16.mxu0 0
        %4234 = vmatpush2.bf16.msra.mxu0 0
        %4235 = vmatprep.mubr.bf16.mxu0 0
        %4236 = vmatmul.mubr.bf16.gmra.mxu0 %v4156
        %v4237 = vpop.f32.mrf.mxu0
        %v4238 = vadd.f32 %v4147, %v4237
        %v4239 = vpop.f32.mrf.mxu0
        %v4240 = vpop.f32.mrf.mxu0
        %v4241 = vadd.f32 %v4147, %v4240
        %v4242 = vpop.f32.mrf.mxu0
        %4243 = vmatprep.mubr.bf16.mxu0 0
        %4244 = vmatmul.mubr.bf16.gmra.mxu0 %v4159
        %v4245 = vpop.f32.mrf.mxu0
        %v4246 = vadd.f32 %v4147, %v4245
        %v4247 = vpop.f32.mrf.mxu0
        %v4248 = vpop.f32.mrf.mxu0
        %v4249 = vadd.f32 %v4147, %v4248
        %v4250 = vpop.f32.mrf.mxu0
        %4251 = vmatprep.mubr.bf16.mxu0 0
        %4252 = vmatmul.mubr.bf16.gmra.mxu0 %v4162
        %v4253 = vpop.f32.mrf.mxu0
        %v4254 = vadd.f32 %v4147, %v4253
        %v4255 = vpop.f32.mrf.mxu0
        %v4256 = vpop.f32.mrf.mxu0
        %v4257 = vadd.f32 %v4147, %v4256
        %v4258 = vpop.f32.mrf.mxu0
        %4259 = vmatprep.mubr.bf16.mxu0 0
        %4260 = vmatmul.mubr.bf16.gmra.mxu0 %v4165
        %v4261 = vpop.f32.mrf.mxu0
        %v4262 = vadd.f32 %v4147, %v4261
        %v4263 = vpop.f32.mrf.mxu0
        %v4264 = vpop.f32.mrf.mxu0
        %v4265 = vadd.f32 %v4147, %v4264
        %v4266 = vpop.f32.mrf.mxu0
        %4267 = vmatprep.mubr.bf16.mxu0 0
        %4268 = vmatmul.mubr.bf16.gmra.mxu0 %v4168
        %v4269 = vpop.f32.mrf.mxu0
        %v4270 = vadd.f32 %v4147, %v4269
        %v4271 = vpop.f32.mrf.mxu0
        %v4272 = vpop.f32.mrf.mxu0
        %v4273 = vadd.f32 %v4147, %v4272
        %v4274 = vpop.f32.mrf.mxu0
        %4275 = vmatprep.mubr.bf16.mxu0 0
        %4276 = vmatmul.mubr.bf16.gmra.mxu0 %v4171
        %v4277 = vpop.f32.mrf.mxu0
        %v4278 = vadd.f32 %v4147, %v4277
        %v4279 = vpop.f32.mrf.mxu0
        %v4280 = vpop.f32.mrf.mxu0
        %v4281 = vadd.f32 %v4147, %v4280
        %v4282 = vpop.f32.mrf.mxu0
        %4283 = vmatprep.mubr.bf16.mxu0 0
        %4284 = vmatmul.mubr.bf16.gmra.mxu0 %v4174
        %v4285 = vpop.f32.mrf.mxu0
        %v4286 = vadd.f32 %v4147, %v4285
        %v4287 = vpop.f32.mrf.mxu0
        %v4288 = vpop.f32.mrf.mxu0
        %v4289 = vadd.f32 %v4147, %v4288
        %v4290 = vpop.f32.mrf.mxu0
        %4291 = vmatprep.mubr.bf16.mxu0 0
        %4292 = vmatmul.mubr.bf16.gmra.mxu0 %v4177
        %v4293 = vpop.f32.mrf.mxu0
        %v4294 = vadd.f32 %v4147, %v4293
        %v4295 = vpop.f32.mrf.mxu0
        %v4296 = vpop.f32.mrf.mxu0
        %v4297 = vadd.f32 %v4147, %v4296
        %v4298 = vpop.f32.mrf.mxu0
        %4299 = vmatprep.mubr.bf16.mxu0 0
        %4300 = vmatmul.mubr.bf16.gmra.mxu0 %v4180
        %v4301 = vpop.f32.mrf.mxu0
        %v4302 = vadd.f32 %v4147, %v4301
        %v4303 = vpop.f32.mrf.mxu0
        %v4304 = vpop.f32.mrf.mxu0
        %v4305 = vadd.f32 %v4147, %v4304
        %v4306 = vpop.f32.mrf.mxu0
        %4307 = vmatprep.mubr.bf16.mxu0 0
        %4308 = vmatmul.mubr.bf16.gmra.mxu0 %v4183
        %v4309 = vpop.f32.mrf.mxu0
        %v4310 = vadd.f32 %v4147, %v4309
        %v4311 = vpop.f32.mrf.mxu0
        %v4312 = vpop.f32.mrf.mxu0
        %v4313 = vadd.f32 %v4147, %v4312
        %v4314 = vpop.f32.mrf.mxu0
        %4315 = vmatprep.mubr.bf16.mxu0 0
        %4316 = vmatmul.mubr.bf16.gmra.mxu0 %v4186
        %v4317 = vpop.f32.mrf.mxu0
        %v4318 = vadd.f32 %v4147, %v4317
        %v4319 = vpop.f32.mrf.mxu0
        %v4320 = vpop.f32.mrf.mxu0
        %v4321 = vadd.f32 %v4147, %v4320
        %v4322 = vpop.f32.mrf.mxu0
        %4323 = vmatprep.mubr.bf16.mxu0 0
        %4324 = vmatmul.mubr.bf16.gmra.mxu0 %v4189
        %v4325 = vpop.f32.mrf.mxu0
        %v4326 = vadd.f32 %v4147, %v4325
        %v4327 = vpop.f32.mrf.mxu0
        %v4328 = vpop.f32.mrf.mxu0
        %v4329 = vadd.f32 %v4147, %v4328
        %v4330 = vpop.f32.mrf.mxu0
        %4331 = vmatprep.mubr.bf16.mxu0 0
        %4332 = vmatmul.mubr.bf16.gmra.mxu0 %v4192
        %v4333 = vpop.f32.mrf.mxu0
        %v4334 = vadd.f32 %v4147, %v4333
        %v4335 = vpop.f32.mrf.mxu0
        %v4336 = vpop.f32.mrf.mxu0
        %v4337 = vadd.f32 %v4147, %v4336
        %v4338 = vpop.f32.mrf.mxu0
        %4339 = vmatprep.mubr.bf16.mxu0 0
        %4340 = vmatmul.mubr.bf16.gmra.mxu0 %v4195
        %v4341 = vpop.f32.mrf.mxu0
        %v4342 = vadd.f32 %v4147, %v4341
        %v4343 = vpop.f32.mrf.mxu0
        %v4344 = vpop.f32.mrf.mxu0
        %v4345 = vadd.f32 %v4147, %v4344
        %v4346 = vpop.f32.mrf.mxu0
        %4347 = vmatprep.mubr.bf16.mxu0 0
        %4348 = vmatmul.mubr.bf16.gmra.mxu0 %v4198
        %v4349 = vpop.f32.mrf.mxu0
        %v4350 = vadd.f32 %v4147, %v4349
        %v4351 = vpop.f32.mrf.mxu0
        %v4352 = vpop.f32.mrf.mxu0
        %v4353 = vadd.f32 %v4147, %v4352
        %v4354 = vpop.f32.mrf.mxu0
        %4355 = vmatprep.mubr.bf16.mxu0 0
        %4356 = vmatmul.mubr.bf16.gmra.mxu0 %v4201
        %v4357 = vpop.f32.mrf.mxu0
        %v4358 = vadd.f32 %v4147, %v4357
        %v4359 = vpop.f32.mrf.mxu0
        %v4360 = vpop.f32.mrf.mxu0
        %v4361 = vadd.f32 %v4147, %v4360
        %v4362 = vpop.f32.mrf.mxu0
        %4363 = vdwg.mxu0
        %v4364 = vpack.c.bf16 %v4241, %v4238
        %v4365 = vpack.c.bf16 %v4249, %v4246
        %v4366 = vpack.c.bf16 %v4257, %v4254
        %v4367 = vpack.c.bf16 %v4265, %v4262
        %v4368 = vpack.c.bf16 %v4273, %v4270
        %v4369 = vpack.c.bf16 %v4281, %v4278
        %v4370 = vpack.c.bf16 %v4289, %v4286
        %v4371 = vpack.c.bf16 %v4297, %v4294
        %v4372 = vpack.c.bf16 %v4305, %v4302
        %v4373 = vpack.c.bf16 %v4313, %v4310
        %v4374 = vpack.c.bf16 %v4321, %v4318
        %v4375 = vpack.c.bf16 %v4329, %v4326
        %v4376 = vpack.c.bf16 %v4337, %v4334
        %v4377 = vpack.c.bf16 %v4345, %v4342
        %v4378 = vpack.c.bf16 %v4353, %v4350
        %v4379 = vpack.c.bf16 %v4361, %v4358
        %v4380 = vld [vmem:[%s3] sm:$0x3]
        %v4381 = vld [vmem:[%s4] sm:$0x1]
        %v4383 = vlaneseq
        %v4384 = vshrl.u32 %v4383, 7
        %v4385 = vsub.s32 0, %v4384
        %v4386 = vrot.slane %v4381, %v4385
        %v4389 = vsel %vm1773, %v4364, 0
        %v4392 = vsel %vm1773, %v4365, 0
        %v4395 = vsel %vm1773, %v4366, 0
        %v4398 = vsel %vm1773, %v4367, 0
        %v4401 = vsel %vm1773, %v4368, 0
        %v4404 = vsel %vm1773, %v4369, 0
        %v4407 = vsel %vm1773, %v4370, 0
        %v4410 = vsel %vm1773, %v4371, 0
        %v4413 = vsel %vm1773, %v4372, 0
        %v4416 = vsel %vm1773, %v4373, 0
        %v4419 = vsel %vm1773, %v4374, 0
        %v4422 = vsel %vm1773, %v4375, 0
        %v4425 = vsel %vm1773, %v4376, 0
        %v4428 = vsel %vm1773, %v4377, 0
        %v4431 = vsel %vm1773, %v4378, 0
        %v4434 = vsel %vm1773, %v4379, 0
        %v4437 = vsel %vm2153, %v4380, 0
        %4439 = vmatprep.subr.bf16.mxu0 0
        %4440 = vmatpush1.bf16.msra.mxu0 0
        %4441 = vmatprep.subr.bf16.mxu0 0
        %4442 = vmatpush1.bf16.msra.mxu0 0
        %4443 = vmatprep.subr.bf16.mxu0 0
        %4444 = vmatpush1.bf16.msra.mxu0 0
        %4445 = vmatprep.subr.bf16.mxu0 0
        %4446 = vmatpush1.bf16.msra.mxu0 0
        %4447 = vmatprep.subr.bf16.mxu0 0
        %4448 = vmatpush1.bf16.msra.mxu0 0
        %4449 = vmatprep.subr.bf16.mxu0 0
        %4450 = vmatpush1.bf16.msra.mxu0 0
        %4451 = vmatprep.subr.bf16.mxu0 0
        %4452 = vmatpush1.bf16.msra.mxu0 0
        %4453 = vmatprep.subr.bf16.mxu0 0
        %4454 = vmatpush1.bf16.msra.mxu0 %v4437
        %4455 = vmatprep.subr.bf16.mxu0 0
        %4456 = vmatpush2.bf16.msra.mxu0 0
        %4457 = vmatprep.subr.bf16.mxu0 0
        %4458 = vmatpush2.bf16.msra.mxu0 0
        %4459 = vmatprep.subr.bf16.mxu0 0
        %4460 = vmatpush2.bf16.msra.mxu0 0
        %4461 = vmatprep.subr.bf16.mxu0 0
        %4462 = vmatpush2.bf16.msra.mxu0 0
        %4463 = vmatprep.subr.bf16.mxu0 0
        %4464 = vmatpush2.bf16.msra.mxu0 0
        %4465 = vmatprep.subr.bf16.mxu0 0
        %4466 = vmatpush2.bf16.msra.mxu0 0
        %4467 = vmatprep.subr.bf16.mxu0 0
        %4468 = vmatpush2.bf16.msra.mxu0 0
        %4469 = vmatprep.subr.bf16.mxu0 0
        %4470 = vmatpush2.bf16.msra.mxu0 0
        %4471 = vmatprep.mubr.bf16.mxu0 0
        %4472 = vmatmul.mubr.bf16.gmra.mxu0 %v4389
        %v4473 = vpop.f32.mrf.mxu0
        %v4474 = vadd.f32 %v4386, %v4473
        %v4475 = vpop.f32.mrf.mxu0
        %v4476 = vpop.f32.mrf.mxu0
        %v4477 = vadd.f32 %v4386, %v4476
        %v4478 = vpop.f32.mrf.mxu0
        %4479 = vmatprep.mubr.bf16.mxu0 0
        %4480 = vmatmul.mubr.bf16.gmra.mxu0 %v4392
        %v4481 = vpop.f32.mrf.mxu0
        %v4482 = vadd.f32 %v4386, %v4481
        %v4483 = vpop.f32.mrf.mxu0
        %v4484 = vpop.f32.mrf.mxu0
        %v4485 = vadd.f32 %v4386, %v4484
        %v4486 = vpop.f32.mrf.mxu0
        %4487 = vmatprep.mubr.bf16.mxu0 0
        %4488 = vmatmul.mubr.bf16.gmra.mxu0 %v4395
        %v4489 = vpop.f32.mrf.mxu0
        %v4490 = vadd.f32 %v4386, %v4489
        %v4491 = vpop.f32.mrf.mxu0
        %v4492 = vpop.f32.mrf.mxu0
        %v4493 = vadd.f32 %v4386, %v4492
        %v4494 = vpop.f32.mrf.mxu0
        %4495 = vmatprep.mubr.bf16.mxu0 0
        %4496 = vmatmul.mubr.bf16.gmra.mxu0 %v4398
        %v4497 = vpop.f32.mrf.mxu0
        %v4498 = vadd.f32 %v4386, %v4497
        %v4499 = vpop.f32.mrf.mxu0
        %v4500 = vpop.f32.mrf.mxu0
        %v4501 = vadd.f32 %v4386, %v4500
        %v4502 = vpop.f32.mrf.mxu0
        %4503 = vmatprep.mubr.bf16.mxu0 0
        %4504 = vmatmul.mubr.bf16.gmra.mxu0 %v4401
        %v4505 = vpop.f32.mrf.mxu0
        %v4506 = vadd.f32 %v4386, %v4505
        %v4507 = vpop.f32.mrf.mxu0
        %v4508 = vpop.f32.mrf.mxu0
        %v4509 = vadd.f32 %v4386, %v4508
        %v4510 = vpop.f32.mrf.mxu0
        %4511 = vmatprep.mubr.bf16.mxu0 0
        %4512 = vmatmul.mubr.bf16.gmra.mxu0 %v4404
        %v4513 = vpop.f32.mrf.mxu0
        %v4514 = vadd.f32 %v4386, %v4513
        %v4515 = vpop.f32.mrf.mxu0
        %v4516 = vpop.f32.mrf.mxu0
        %v4517 = vadd.f32 %v4386, %v4516
        %v4518 = vpop.f32.mrf.mxu0
        %4519 = vmatprep.mubr.bf16.mxu0 0
        %4520 = vmatmul.mubr.bf16.gmra.mxu0 %v4407
        %v4521 = vpop.f32.mrf.mxu0
        %v4522 = vadd.f32 %v4386, %v4521
        %v4523 = vpop.f32.mrf.mxu0
        %v4524 = vpop.f32.mrf.mxu0
        %v4525 = vadd.f32 %v4386, %v4524
        %v4526 = vpop.f32.mrf.mxu0
        %4527 = vmatprep.mubr.bf16.mxu0 0
        %4528 = vmatmul.mubr.bf16.gmra.mxu0 %v4410
        %v4529 = vpop.f32.mrf.mxu0
        %v4530 = vadd.f32 %v4386, %v4529
        %v4531 = vpop.f32.mrf.mxu0
        %v4532 = vpop.f32.mrf.mxu0
        %v4533 = vadd.f32 %v4386, %v4532
        %v4534 = vpop.f32.mrf.mxu0
        %4535 = vmatprep.mubr.bf16.mxu0 0
        %4536 = vmatmul.mubr.bf16.gmra.mxu0 %v4413
        %v4537 = vpop.f32.mrf.mxu0
        %v4538 = vadd.f32 %v4386, %v4537
        %v4539 = vpop.f32.mrf.mxu0
        %v4540 = vpop.f32.mrf.mxu0
        %v4541 = vadd.f32 %v4386, %v4540
        %v4542 = vpop.f32.mrf.mxu0
        %4543 = vmatprep.mubr.bf16.mxu0 0
        %4544 = vmatmul.mubr.bf16.gmra.mxu0 %v4416
        %v4545 = vpop.f32.mrf.mxu0
        %v4546 = vadd.f32 %v4386, %v4545
        %v4547 = vpop.f32.mrf.mxu0
        %v4548 = vpop.f32.mrf.mxu0
        %v4549 = vadd.f32 %v4386, %v4548
        %v4550 = vpop.f32.mrf.mxu0
        %4551 = vmatprep.mubr.bf16.mxu0 0
        %4552 = vmatmul.mubr.bf16.gmra.mxu0 %v4419
        %v4553 = vpop.f32.mrf.mxu0
        %v4554 = vadd.f32 %v4386, %v4553
        %v4555 = vpop.f32.mrf.mxu0
        %v4556 = vpop.f32.mrf.mxu0
        %v4557 = vadd.f32 %v4386, %v4556
        %v4558 = vpop.f32.mrf.mxu0
        %4559 = vmatprep.mubr.bf16.mxu0 0
        %4560 = vmatmul.mubr.bf16.gmra.mxu0 %v4422
        %v4561 = vpop.f32.mrf.mxu0
        %v4562 = vadd.f32 %v4386, %v4561
        %v4563 = vpop.f32.mrf.mxu0
        %v4564 = vpop.f32.mrf.mxu0
        %v4565 = vadd.f32 %v4386, %v4564
        %v4566 = vpop.f32.mrf.mxu0
        %4567 = vmatprep.mubr.bf16.mxu0 0
        %4568 = vmatmul.mubr.bf16.gmra.mxu0 %v4425
        %v4569 = vpop.f32.mrf.mxu0
        %v4570 = vadd.f32 %v4386, %v4569
        %v4571 = vpop.f32.mrf.mxu0
        %v4572 = vpop.f32.mrf.mxu0
        %v4573 = vadd.f32 %v4386, %v4572
        %v4574 = vpop.f32.mrf.mxu0
        %4575 = vmatprep.mubr.bf16.mxu0 0
        %4576 = vmatmul.mubr.bf16.gmra.mxu0 %v4428
        %v4577 = vpop.f32.mrf.mxu0
        %v4578 = vadd.f32 %v4386, %v4577
        %v4579 = vpop.f32.mrf.mxu0
        %v4580 = vpop.f32.mrf.mxu0
        %v4581 = vadd.f32 %v4386, %v4580
        %v4582 = vpop.f32.mrf.mxu0
        %4583 = vmatprep.mubr.bf16.mxu0 0
        %4584 = vmatmul.mubr.bf16.gmra.mxu0 %v4431
        %v4585 = vpop.f32.mrf.mxu0
        %v4586 = vadd.f32 %v4386, %v4585
        %v4587 = vpop.f32.mrf.mxu0
        %v4588 = vpop.f32.mrf.mxu0
        %v4589 = vadd.f32 %v4386, %v4588
        %v4590 = vpop.f32.mrf.mxu0
        %4591 = vmatprep.mubr.bf16.mxu0 0
        %4592 = vmatmul.mubr.bf16.gmra.mxu0 %v4434
        %v4593 = vpop.f32.mrf.mxu0
        %v4594 = vadd.f32 %v4386, %v4593
        %v4595 = vpop.f32.mrf.mxu0
        %v4596 = vpop.f32.mrf.mxu0
        %v4597 = vadd.f32 %v4386, %v4596
        %v4598 = vpop.f32.mrf.mxu0
        %4599 = vdwg.mxu0
        %v4600 = vmax.f32 %v4474, 0.0
        %v4601 = vmax.f32 %v4477, 0.0
        %v4602 = vmax.f32 %v4482, 0.0
        %v4603 = vmax.f32 %v4485, 0.0
        %v4604 = vmax.f32 %v4490, 0.0
        %v4605 = vmax.f32 %v4493, 0.0
        %v4606 = vmax.f32 %v4498, 0.0
        %v4607 = vmax.f32 %v4501, 0.0
        %v4608 = vmax.f32 %v4506, 0.0
        %v4609 = vmax.f32 %v4509, 0.0
        %v4610 = vmax.f32 %v4514, 0.0
        %v4611 = vmax.f32 %v4517, 0.0
        %v4612 = vmax.f32 %v4522, 0.0
        %v4613 = vmax.f32 %v4525, 0.0
        %v4614 = vmax.f32 %v4530, 0.0
        %v4615 = vmax.f32 %v4533, 0.0
        %v4616 = vmax.f32 %v4538, 0.0
        %v4617 = vmax.f32 %v4541, 0.0
        %v4618 = vmax.f32 %v4546, 0.0
        %v4619 = vmax.f32 %v4549, 0.0
        %v4620 = vmax.f32 %v4554, 0.0
        %v4621 = vmax.f32 %v4557, 0.0
        %v4622 = vmax.f32 %v4562, 0.0
        %v4623 = vmax.f32 %v4565, 0.0
        %v4624 = vmax.f32 %v4570, 0.0
        %v4625 = vmax.f32 %v4573, 0.0
        %v4626 = vmax.f32 %v4578, 0.0
        %v4627 = vmax.f32 %v4581, 0.0
        %v4628 = vmax.f32 %v4586, 0.0
        %v4629 = vmax.f32 %v4589, 0.0
        %v4630 = vmax.f32 %v4594, 0.0
        %v4631 = vmax.f32 %v4597, 0.0
        %v4632 = vpack.c.bf16 %v4601, %v4600
        %v4633 = vpack.c.bf16 %v4603, %v4602
        %v4634 = vpack.c.bf16 %v4605, %v4604
        %v4635 = vpack.c.bf16 %v4607, %v4606
        %v4636 = vpack.c.bf16 %v4609, %v4608
        %v4637 = vpack.c.bf16 %v4611, %v4610
        %v4638 = vpack.c.bf16 %v4613, %v4612
        %v4639 = vpack.c.bf16 %v4615, %v4614
        %v4640 = vpack.c.bf16 %v4617, %v4616
        %v4641 = vpack.c.bf16 %v4619, %v4618
        %v4642 = vpack.c.bf16 %v4621, %v4620
        %v4643 = vpack.c.bf16 %v4623, %v4622
        %v4644 = vpack.c.bf16 %v4625, %v4624
        %v4645 = vpack.c.bf16 %v4627, %v4626
        %v4646 = vpack.c.bf16 %v4629, %v4628
        %v4647 = vpack.c.bf16 %v4631, %v4630
        %v4648 = vld [vmem:[%s5] sm:$0xf]
        %v4649 = vld [vmem:[%s6] sm:$0x1]
        %v4651 = vlaneseq
        %v4652 = vshrl.u32 %v4651, 7
        %v4653 = vsub.s32 0, %v4652
        %v4654 = vrot.slane %v4649, %v4653
        %v4657 = vsel %vm1806, %v4632, 0
        %v4660 = vsel %vm1806, %v4633, 0
        %v4663 = vsel %vm1806, %v4634, 0
        %v4666 = vsel %vm1806, %v4635, 0
        %v4669 = vsel %vm1806, %v4636, 0
        %v4672 = vsel %vm1806, %v4637, 0
        %v4675 = vsel %vm1806, %v4638, 0
        %v4678 = vsel %vm1806, %v4639, 0
        %v4681 = vsel %vm1806, %v4640, 0
        %v4684 = vsel %vm1806, %v4641, 0
        %v4687 = vsel %vm1806, %v4642, 0
        %v4690 = vsel %vm1806, %v4643, 0
        %v4693 = vsel %vm1806, %v4644, 0
        %v4696 = vsel %vm1806, %v4645, 0
        %v4699 = vsel %vm1806, %v4646, 0
        %v4702 = vsel %vm1806, %v4647, 0
        %v4705 = vsel %vm2422, %v4648, 0
        %4707 = vmatprep.subr.bf16.mxu0 0
        %4708 = vmatpush1.bf16.msra.mxu0 0
        %4709 = vmatprep.subr.bf16.mxu0 0
        %4710 = vmatpush1.bf16.msra.mxu0 0
        %4711 = vmatprep.subr.bf16.mxu0 0
        %4712 = vmatpush1.bf16.msra.mxu0 0
        %4713 = vmatprep.subr.bf16.mxu0 0
        %4714 = vmatpush1.bf16.msra.mxu0 0
        %4715 = vmatprep.subr.bf16.mxu0 0
        %4716 = vmatpush1.bf16.msra.mxu0 0
        %4717 = vmatprep.subr.bf16.mxu0 0
        %4718 = vmatpush1.bf16.msra.mxu0 0
        %4719 = vmatprep.subr.bf16.mxu0 0
        %4720 = vmatpush1.bf16.msra.mxu0 0
        %4721 = vmatprep.subr.bf16.mxu0 0
        %4722 = vmatpush1.bf16.msra.mxu0 %v4705
        %4723 = vmatprep.subr.bf16.mxu0 0
        %4724 = vmatpush2.bf16.msra.mxu0 0
        %4725 = vmatprep.subr.bf16.mxu0 0
        %4726 = vmatpush2.bf16.msra.mxu0 0
        %4727 = vmatprep.subr.bf16.mxu0 0
        %4728 = vmatpush2.bf16.msra.mxu0 0
        %4729 = vmatprep.subr.bf16.mxu0 0
        %4730 = vmatpush2.bf16.msra.mxu0 0
        %4731 = vmatprep.subr.bf16.mxu0 0
        %4732 = vmatpush2.bf16.msra.mxu0 0
        %4733 = vmatprep.subr.bf16.mxu0 0
        %4734 = vmatpush2.bf16.msra.mxu0 0
        %4735 = vmatprep.subr.bf16.mxu0 0
        %4736 = vmatpush2.bf16.msra.mxu0 0
        %4737 = vmatprep.subr.bf16.mxu0 0
        %4738 = vmatpush2.bf16.msra.mxu0 0
        %4739 = vmatprep.mubr.bf16.mxu0 0
        %4740 = vmatmul.mubr.bf16.gmra.mxu0 %v4657
        %v4741 = vpop.f32.mrf.mxu0
        %v4742 = vadd.f32 %v4654, %v4741
        %v4743 = vpop.f32.mrf.mxu0
        %v4744 = vpop.f32.mrf.mxu0
        %v4745 = vadd.f32 %v4654, %v4744
        %v4746 = vpop.f32.mrf.mxu0
        %4747 = vmatprep.mubr.bf16.mxu0 0
        %4748 = vmatmul.mubr.bf16.gmra.mxu0 %v4660
        %v4749 = vpop.f32.mrf.mxu0
        %v4750 = vadd.f32 %v4654, %v4749
        %v4751 = vpop.f32.mrf.mxu0
        %v4752 = vpop.f32.mrf.mxu0
        %v4753 = vadd.f32 %v4654, %v4752
        %v4754 = vpop.f32.mrf.mxu0
        %4755 = vmatprep.mubr.bf16.mxu0 0
        %4756 = vmatmul.mubr.bf16.gmra.mxu0 %v4663
        %v4757 = vpop.f32.mrf.mxu0
        %v4758 = vadd.f32 %v4654, %v4757
        %v4759 = vpop.f32.mrf.mxu0
        %v4760 = vpop.f32.mrf.mxu0
        %v4761 = vadd.f32 %v4654, %v4760
        %v4762 = vpop.f32.mrf.mxu0
        %4763 = vmatprep.mubr.bf16.mxu0 0
        %4764 = vmatmul.mubr.bf16.gmra.mxu0 %v4666
        %v4765 = vpop.f32.mrf.mxu0
        %v4766 = vadd.f32 %v4654, %v4765
        %v4767 = vpop.f32.mrf.mxu0
        %v4768 = vpop.f32.mrf.mxu0
        %v4769 = vadd.f32 %v4654, %v4768
        %v4770 = vpop.f32.mrf.mxu0
        %4771 = vmatprep.mubr.bf16.mxu0 0
        %4772 = vmatmul.mubr.bf16.gmra.mxu0 %v4669
        %v4773 = vpop.f32.mrf.mxu0
        %v4774 = vadd.f32 %v4654, %v4773
        %v4775 = vpop.f32.mrf.mxu0
        %v4776 = vpop.f32.mrf.mxu0
        %v4777 = vadd.f32 %v4654, %v4776
        %v4778 = vpop.f32.mrf.mxu0
        %4779 = vmatprep.mubr.bf16.mxu0 0
        %4780 = vmatmul.mubr.bf16.gmra.mxu0 %v4672
        %v4781 = vpop.f32.mrf.mxu0
        %v4782 = vadd.f32 %v4654, %v4781
        %v4783 = vpop.f32.mrf.mxu0
        %v4784 = vpop.f32.mrf.mxu0
        %v4785 = vadd.f32 %v4654, %v4784
        %v4786 = vpop.f32.mrf.mxu0
        %4787 = vmatprep.mubr.bf16.mxu0 0
        %4788 = vmatmul.mubr.bf16.gmra.mxu0 %v4675
        %v4789 = vpop.f32.mrf.mxu0
        %v4790 = vadd.f32 %v4654, %v4789
        %v4791 = vpop.f32.mrf.mxu0
        %v4792 = vpop.f32.mrf.mxu0
        %v4793 = vadd.f32 %v4654, %v4792
        %v4794 = vpop.f32.mrf.mxu0
        %4795 = vmatprep.mubr.bf16.mxu0 0
        %4796 = vmatmul.mubr.bf16.gmra.mxu0 %v4678
        %v4797 = vpop.f32.mrf.mxu0
        %v4798 = vadd.f32 %v4654, %v4797
        %v4799 = vpop.f32.mrf.mxu0
        %v4800 = vpop.f32.mrf.mxu0
        %v4801 = vadd.f32 %v4654, %v4800
        %v4802 = vpop.f32.mrf.mxu0
        %4803 = vmatprep.mubr.bf16.mxu0 0
        %4804 = vmatmul.mubr.bf16.gmra.mxu0 %v4681
        %v4805 = vpop.f32.mrf.mxu0
        %v4806 = vadd.f32 %v4654, %v4805
        %v4807 = vpop.f32.mrf.mxu0
        %v4808 = vpop.f32.mrf.mxu0
        %v4809 = vadd.f32 %v4654, %v4808
        %v4810 = vpop.f32.mrf.mxu0
        %4811 = vmatprep.mubr.bf16.mxu0 0
        %4812 = vmatmul.mubr.bf16.gmra.mxu0 %v4684
        %v4813 = vpop.f32.mrf.mxu0
        %v4814 = vadd.f32 %v4654, %v4813
        %v4815 = vpop.f32.mrf.mxu0
        %v4816 = vpop.f32.mrf.mxu0
        %v4817 = vadd.f32 %v4654, %v4816
        %v4818 = vpop.f32.mrf.mxu0
        %4819 = vmatprep.mubr.bf16.mxu0 0
        %4820 = vmatmul.mubr.bf16.gmra.mxu0 %v4687
        %v4821 = vpop.f32.mrf.mxu0
        %v4822 = vadd.f32 %v4654, %v4821
        %v4823 = vpop.f32.mrf.mxu0
        %v4824 = vpop.f32.mrf.mxu0
        %v4825 = vadd.f32 %v4654, %v4824
        %v4826 = vpop.f32.mrf.mxu0
        %4827 = vmatprep.mubr.bf16.mxu0 0
        %4828 = vmatmul.mubr.bf16.gmra.mxu0 %v4690
        %v4829 = vpop.f32.mrf.mxu0
        %v4830 = vadd.f32 %v4654, %v4829
        %v4831 = vpop.f32.mrf.mxu0
        %v4832 = vpop.f32.mrf.mxu0
        %v4833 = vadd.f32 %v4654, %v4832
        %v4834 = vpop.f32.mrf.mxu0
        %4835 = vmatprep.mubr.bf16.mxu0 0
        %4836 = vmatmul.mubr.bf16.gmra.mxu0 %v4693
        %v4837 = vpop.f32.mrf.mxu0
        %v4838 = vadd.f32 %v4654, %v4837
        %v4839 = vpop.f32.mrf.mxu0
        %v4840 = vpop.f32.mrf.mxu0
        %v4841 = vadd.f32 %v4654, %v4840
        %v4842 = vpop.f32.mrf.mxu0
        %4843 = vmatprep.mubr.bf16.mxu0 0
        %4844 = vmatmul.mubr.bf16.gmra.mxu0 %v4696
        %v4845 = vpop.f32.mrf.mxu0
        %v4846 = vadd.f32 %v4654, %v4845
        %v4847 = vpop.f32.mrf.mxu0
        %v4848 = vpop.f32.mrf.mxu0
        %v4849 = vadd.f32 %v4654, %v4848
        %v4850 = vpop.f32.mrf.mxu0
        %4851 = vmatprep.mubr.bf16.mxu0 0
        %4852 = vmatmul.mubr.bf16.gmra.mxu0 %v4699
        %v4853 = vpop.f32.mrf.mxu0
        %v4854 = vadd.f32 %v4654, %v4853
        %v4855 = vpop.f32.mrf.mxu0
        %v4856 = vpop.f32.mrf.mxu0
        %v4857 = vadd.f32 %v4654, %v4856
        %v4858 = vpop.f32.mrf.mxu0
        %4859 = vmatprep.mubr.bf16.mxu0 0
        %4860 = vmatmul.mubr.bf16.gmra.mxu0 %v4702
        %v4861 = vpop.f32.mrf.mxu0
        %v4862 = vadd.f32 %v4654, %v4861
        %v4863 = vpop.f32.mrf.mxu0
        %v4864 = vpop.f32.mrf.mxu0
        %v4865 = vadd.f32 %v4654, %v4864
        %v4866 = vpop.f32.mrf.mxu0
        %4867 = vdwg.mxu0
        %v4868 = vadd.f32 %v4238, %v4742
        %v4869 = vadd.f32 %v4241, %v4745
        %v4870 = vadd.f32 %v4246, %v4750
        %v4871 = vadd.f32 %v4249, %v4753
        %v4872 = vadd.f32 %v4254, %v4758
        %v4873 = vadd.f32 %v4257, %v4761
        %v4874 = vadd.f32 %v4262, %v4766
        %v4875 = vadd.f32 %v4265, %v4769
        %v4876 = vadd.f32 %v4270, %v4774
        %v4877 = vadd.f32 %v4273, %v4777
        %v4878 = vadd.f32 %v4278, %v4782
        %v4879 = vadd.f32 %v4281, %v4785
        %v4880 = vadd.f32 %v4286, %v4790
        %v4881 = vadd.f32 %v4289, %v4793
        %v4882 = vadd.f32 %v4294, %v4798
        %v4883 = vadd.f32 %v4297, %v4801
        %v4884 = vadd.f32 %v4302, %v4806
        %v4885 = vadd.f32 %v4305, %v4809
        %v4886 = vadd.f32 %v4310, %v4814
        %v4887 = vadd.f32 %v4313, %v4817
        %v4888 = vadd.f32 %v4318, %v4822
        %v4889 = vadd.f32 %v4321, %v4825
        %v4890 = vadd.f32 %v4326, %v4830
        %v4891 = vadd.f32 %v4329, %v4833
        %v4892 = vadd.f32 %v4334, %v4838
        %v4893 = vadd.f32 %v4337, %v4841
        %v4894 = vadd.f32 %v4342, %v4846
        %v4895 = vadd.f32 %v4345, %v4849
        %v4896 = vadd.f32 %v4350, %v4854
        %v4897 = vadd.f32 %v4353, %v4857
        %v4898 = vadd.f32 %v4358, %v4862
        %v4899 = vadd.f32 %v4361, %v4865
        %4932 = vrot.lane.b32.xlu0 %v4868, 4
        %v4933 = vpop.permute.xlu0 %4932
        %4934 = vrot.lane.b32.xlu0 %v4869, 4
        %v4935 = vpop.permute.xlu0 %4934
        %4936 = vrot.lane.b32.xlu0 %v4870, 4
        %v4937 = vpop.permute.xlu0 %4936
        %4938 = vrot.lane.b32.xlu0 %v4871, 4
        %v4939 = vpop.permute.xlu0 %4938
        %4940 = vrot.lane.b32.xlu0 %v4872, 4
        %v4941 = vpop.permute.xlu0 %4940
        %4942 = vrot.lane.b32.xlu0 %v4873, 4
        %v4943 = vpop.permute.xlu0 %4942
        %4944 = vrot.lane.b32.xlu0 %v4874, 4
        %v4945 = vpop.permute.xlu0 %4944
        %4946 = vrot.lane.b32.xlu0 %v4875, 4
        %v4947 = vpop.permute.xlu0 %4946
        %4948 = vrot.lane.b32.xlu0 %v4876, 4
        %v4949 = vpop.permute.xlu0 %4948
        %4950 = vrot.lane.b32.xlu0 %v4877, 4
        %v4951 = vpop.permute.xlu0 %4950
        %4952 = vrot.lane.b32.xlu0 %v4878, 4
        %v4953 = vpop.permute.xlu0 %4952
        %4954 = vrot.lane.b32.xlu0 %v4879, 4
        %v4955 = vpop.permute.xlu0 %4954
        %4956 = vrot.lane.b32.xlu0 %v4880, 4
        %v4957 = vpop.permute.xlu0 %4956
        %4958 = vrot.lane.b32.xlu0 %v4881, 4
        %v4959 = vpop.permute.xlu0 %4958
        %4960 = vrot.lane.b32.xlu0 %v4882, 4
        %v4961 = vpop.permute.xlu0 %4960
        %4962 = vrot.lane.b32.xlu0 %v4883, 4
        %v4963 = vpop.permute.xlu0 %4962
        %4964 = vrot.lane.b32.xlu0 %v4884, 4
        %v4965 = vpop.permute.xlu0 %4964
        %4966 = vrot.lane.b32.xlu0 %v4885, 4
        %v4967 = vpop.permute.xlu0 %4966
        %4968 = vrot.lane.b32.xlu0 %v4886, 4
        %v4969 = vpop.permute.xlu0 %4968
        %4970 = vrot.lane.b32.xlu0 %v4887, 4
        %v4971 = vpop.permute.xlu0 %4970
        %4972 = vrot.lane.b32.xlu0 %v4888, 4
        %v4973 = vpop.permute.xlu0 %4972
        %4974 = vrot.lane.b32.xlu0 %v4889, 4
        %v4975 = vpop.permute.xlu0 %4974
        %4976 = vrot.lane.b32.xlu0 %v4890, 4
        %v4977 = vpop.permute.xlu0 %4976
        %4978 = vrot.lane.b32.xlu0 %v4891, 4
        %v4979 = vpop.permute.xlu0 %4978
        %4980 = vrot.lane.b32.xlu0 %v4892, 4
        %v4981 = vpop.permute.xlu0 %4980
        %4982 = vrot.lane.b32.xlu0 %v4893, 4
        %v4983 = vpop.permute.xlu0 %4982
        %4984 = vrot.lane.b32.xlu0 %v4894, 4
        %v4985 = vpop.permute.xlu0 %4984
        %4986 = vrot.lane.b32.xlu0 %v4895, 4
        %v4987 = vpop.permute.xlu0 %4986
        %4988 = vrot.lane.b32.xlu0 %v4896, 4
        %v4989 = vpop.permute.xlu0 %4988
        %4990 = vrot.lane.b32.xlu0 %v4897, 4
        %v4991 = vpop.permute.xlu0 %4990
        %4992 = vrot.lane.b32.xlu0 %v4898, 4
        %v4993 = vpop.permute.xlu0 %4992
        %4994 = vrot.lane.b32.xlu0 %v4899, 4
        %v4995 = vpop.permute.xlu0 %4994
        %vm5028 = vcmask 64544
        %5029 = vst.msk [vmem:[%s296] sm:$0xff] %vm5028, %v4933
        %5030 = vst.msk [vmem:[%s296 + $0x8] sm:$0xff] %vm5028, %v4935
        %5031 = vst.msk [vmem:[%s296 + $0x10] sm:$0xff] %vm5028, %v4937
        %5032 = vst.msk [vmem:[%s296 + $0x18] sm:$0xff] %vm5028, %v4939
        %5033 = vst.msk [vmem:[%s296 + $0x20] sm:$0xff] %vm5028, %v4941
        %5034 = vst.msk [vmem:[%s296 + $0x28] sm:$0xff] %vm5028, %v4943
        %5035 = vst.msk [vmem:[%s296 + $0x30] sm:$0xff] %vm5028, %v4945
        %5036 = vst.msk [vmem:[%s296 + $0x38] sm:$0xff] %vm5028, %v4947
        %5037 = vst.msk [vmem:[%s296 + $0x40] sm:$0xff] %vm5028, %v4949
        %5038 = vst.msk [vmem:[%s296 + $0x48] sm:$0xff] %vm5028, %v4951
        %5039 = vst.msk [vmem:[%s296 + $0x50] sm:$0xff] %vm5028, %v4953
        %5040 = vst.msk [vmem:[%s296 + $0x58] sm:$0xff] %vm5028, %v4955
        %5041 = vst.msk [vmem:[%s296 + $0x60] sm:$0xff] %vm5028, %v4957
        %5042 = vst.msk [vmem:[%s296 + $0x68] sm:$0xff] %vm5028, %v4959
        %5043 = vst.msk [vmem:[%s296 + $0x70] sm:$0xff] %vm5028, %v4961
        %5044 = vst.msk [vmem:[%s296 + $0x78] sm:$0xff] %vm5028, %v4963
        %5045 = vst.msk [vmem:[%s296 + $0x80] sm:$0xff] %vm5028, %v4965
        %5046 = vst.msk [vmem:[%s296 + $0x88] sm:$0xff] %vm5028, %v4967
        %5047 = vst.msk [vmem:[%s296 + $0x90] sm:$0xff] %vm5028, %v4969
        %5048 = vst.msk [vmem:[%s296 + $0x98] sm:$0xff] %vm5028, %v4971
        %5049 = vst.msk [vmem:[%s296 + $0xa0] sm:$0xff] %vm5028, %v4973
        %5050 = vst.msk [vmem:[%s296 + $0xa8] sm:$0xff] %vm5028, %v4975
        %5051 = vst.msk [vmem:[%s296 + $0xb0] sm:$0xff] %vm5028, %v4977
        %5052 = vst.msk [vmem:[%s296 + $0xb8] sm:$0xff] %vm5028, %v4979
        %5053 = vst.msk [vmem:[%s296 + $0xc0] sm:$0xff] %vm5028, %v4981
        %5054 = vst.msk [vmem:[%s296 + $0xc8] sm:$0xff] %vm5028, %v4983
        %5055 = vst.msk [vmem:[%s296 + $0xd0] sm:$0xff] %vm5028, %v4985
        %5056 = vst.msk [vmem:[%s296 + $0xd8] sm:$0xff] %vm5028, %v4987
        %5057 = vst.msk [vmem:[%s296 + $0xe0] sm:$0xff] %vm5028, %v4989
        %5058 = vst.msk [vmem:[%s296 + $0xe8] sm:$0xff] %vm5028, %v4991
        %5059 = vst.msk [vmem:[%s296 + $0xf0] sm:$0xff] %vm5028, %v4993
        %5060 = vst.msk [vmem:[%s296 + $0xf8] sm:$0xff] %vm5028, %v4995
        %s5061 = sand.u32 %s197, 1
        %s5062 = sand.u32 %s197, 1
        %s5063 = smul.addr %s5062, 256
        %s5064 = scalar_lea.vmem [#allocation3], %s5063
        // Predicated region
        $region49: #{tpu_custom_call.1} parent=47 // pred_check
          %p5065 = pneg %p207
        $region50: #{tpu_custom_call.1} parent=47 // pred_check_branch
          %5067 = sbr.rel (%p5065) target = $region52
        $region51: #{tpu_custom_call.1} parent=47 // pred_region
          %s5068 = smul.addr %s23, 2
          %s5069 = smul.addr %s22, 64
          %s5070 = sadd.s32 %s5068, %s5069
          %s5071 = smul.addr %s5070, 8
          %s5072 = scalar_lea.vmem %s7, %s5071
          // Predicated region
          $region53: #{tpu_custom_call.1} parent=51 // pred_check
            _
          $region54: #{tpu_custom_call.1} parent=51 // pred_check_branch
            %5074 = sbr.rel (0) target = $region56
          $region55: #{tpu_custom_call.1} parent=51 // pred_region
            // Predicated region
            $region57: #{tpu_custom_call.1} parent=55 // pred_check
              _
            $region58: #{tpu_custom_call.1} parent=55 // pred_check_branch
              %5076 = sbr.rel (0) target = $region60
            $region59: #{tpu_custom_call.1} parent=55 // pred_region
              // Predicated region
              $region72: #{tpu_custom_call.1} parent=59 // pred_check
                _
              $region73: #{tpu_custom_call.1} parent=59 // pred_check_branch
                %5154 = sbr.rel (0) target = $region75
              $region74: #{tpu_custom_call.1} parent=59 // pred_region
                loop: start=0, step=1, limit=1
                $region76: #{tpu_custom_call.1} parent=74 // loop_pre_header
                  _
                $region77: #{tpu_custom_call.1} parent=74 // loop_header
                  %s5156 = sphi 0, %s5160
                  %p5157 = scmp.ge.s32.totalorder %s5156, 1
                  %s5161 = sphi %s5064, %s5064
                  %s5162 = sphi %s5072, %s5072
                $region78: #{tpu_custom_call.1} parent=74 // loop_header_branch
                  %5159 = sbr.rel (%p5157) target = $region82
                $region79: #{tpu_custom_call.1} parent=74 // loop_body
                  %v5163 = vld [vmem:[%s5161] sm:$0xff]
                  %5164 = vst [vmem:[%s5162] sm:$0xff] %v5163
                  %v5165 = vld [vmem:[%s5161 + $0x8] sm:$0xff]
                  %5166 = vst [vmem:[%s5162 + $0x8] sm:$0xff] %v5165
                  %v5167 = vld [vmem:[%s5161 + $0x10] sm:$0xff]
                  %5168 = vst [vmem:[%s5162 + $0x20] sm:$0xff] %v5167
                  %v5169 = vld [vmem:[%s5161 + $0x18] sm:$0xff]
                  %5170 = vst [vmem:[%s5162 + $0x28] sm:$0xff] %v5169
                  %v5171 = vld [vmem:[%s5161 + $0x20] sm:$0xff]
                  %5172 = vst [vmem:[%s5162 + $0x40] sm:$0xff] %v5171
                  %v5173 = vld [vmem:[%s5161 + $0x28] sm:$0xff]
                  %5174 = vst [vmem:[%s5162 + $0x48] sm:$0xff] %v5173
                  %v5175 = vld [vmem:[%s5161 + $0x30] sm:$0xff]
                  %5176 = vst [vmem:[%s5162 + $0x60] sm:$0xff] %v5175
                  %v5177 = vld [vmem:[%s5161 + $0x38] sm:$0xff]
                  %5178 = vst [vmem:[%s5162 + $0x68] sm:$0xff] %v5177
                  %v5179 = vld [vmem:[%s5161 + $0x40] sm:$0xff]
                  %5180 = vst [vmem:[%s5162 + $0x80] sm:$0xff] %v5179
                  %v5181 = vld [vmem:[%s5161 + $0x48] sm:$0xff]
                  %5182 = vst [vmem:[%s5162 + $0x88] sm:$0xff] %v5181
                  %v5183 = vld [vmem:[%s5161 + $0x50] sm:$0xff]
                  %5184 = vst [vmem:[%s5162 + $0xa0] sm:$0xff] %v5183
                  %v5185 = vld [vmem:[%s5161 + $0x58] sm:$0xff]
                  %5186 = vst [vmem:[%s5162 + $0xa8] sm:$0xff] %v5185
                  %v5187 = vld [vmem:[%s5161 + $0x60] sm:$0xff]
                  %5188 = vst [vmem:[%s5162 + $0xc0] sm:$0xff] %v5187
                  %v5189 = vld [vmem:[%s5161 + $0x68] sm:$0xff]
                  %5190 = vst [vmem:[%s5162 + $0xc8] sm:$0xff] %v5189
                  %v5191 = vld [vmem:[%s5161 + $0x70] sm:$0xff]
                  %5192 = vst [vmem:[%s5162 + $0xe0] sm:$0xff] %v5191
                  %v5193 = vld [vmem:[%s5161 + $0x78] sm:$0xff]
                  %5194 = vst [vmem:[%s5162 + $0xe8] sm:$0xff] %v5193
                  %v5195 = vld [vmem:[%s5161 + $0x80] sm:$0xff]
                  %5196 = vst [vmem:[%s5162 + $0x100] sm:$0xff] %v5195
                  %v5197 = vld [vmem:[%s5161 + $0x88] sm:$0xff]
                  %5198 = vst [vmem:[%s5162 + $0x108] sm:$0xff] %v5197
                  %v5199 = vld [vmem:[%s5161 + $0x90] sm:$0xff]
                  %5200 = vst [vmem:[%s5162 + $0x120] sm:$0xff] %v5199
                  %v5201 = vld [vmem:[%s5161 + $0x98] sm:$0xff]
                  %5202 = vst [vmem:[%s5162 + $0x128] sm:$0xff] %v5201
                  %v5203 = vld [vmem:[%s5161 + $0xa0] sm:$0xff]
                  %5204 = vst [vmem:[%s5162 + $0x140] sm:$0xff] %v5203
                  %v5205 = vld [vmem:[%s5161 + $0xa8] sm:$0xff]
                  %5206 = vst [vmem:[%s5162 + $0x148] sm:$0xff] %v5205
                  %v5207 = vld [vmem:[%s5161 + $0xb0] sm:$0xff]
                  %5208 = vst [vmem:[%s5162 + $0x160] sm:$0xff] %v5207
                  %v5209 = vld [vmem:[%s5161 + $0xb8] sm:$0xff]
                  %5210 = vst [vmem:[%s5162 + $0x168] sm:$0xff] %v5209
                  %v5211 = vld [vmem:[%s5161 + $0xc0] sm:$0xff]
                  %5212 = vst [vmem:[%s5162 + $0x180] sm:$0xff] %v5211
                  %v5213 = vld [vmem:[%s5161 + $0xc8] sm:$0xff]
                  %5214 = vst [vmem:[%s5162 + $0x188] sm:$0xff] %v5213
                  %v5215 = vld [vmem:[%s5161 + $0xd0] sm:$0xff]
                  %5216 = vst [vmem:[%s5162 + $0x1a0] sm:$0xff] %v5215
                  %v5217 = vld [vmem:[%s5161 + $0xd8] sm:$0xff]
                  %5218 = vst [vmem:[%s5162 + $0x1a8] sm:$0xff] %v5217
                  %v5219 = vld [vmem:[%s5161 + $0xe0] sm:$0xff]
                  %5220 = vst [vmem:[%s5162 + $0x1c0] sm:$0xff] %v5219
                  %v5221 = vld [vmem:[%s5161 + $0xe8] sm:$0xff]
                  %5222 = vst [vmem:[%s5162 + $0x1c8] sm:$0xff] %v5221
                  %v5223 = vld [vmem:[%s5161 + $0xf0] sm:$0xff]
                  %5224 = vst [vmem:[%s5162 + $0x1e0] sm:$0xff] %v5223
                  %v5225 = vld [vmem:[%s5161 + $0xf8] sm:$0xff]
                  %5226 = vst [vmem:[%s5162 + $0x1e8] sm:$0xff] %v5225
                $region80: #{tpu_custom_call.1} parent=74 // loop_footer
                  %s5160 = sadd.s32 1, %s5156
                $region81: #{tpu_custom_call.1} parent=74 // loop_footer_branch
                  %5155 = sbr.rel target = $region77
                $region82: #{tpu_custom_call.1} parent=74 // loop_exit
                  _
              $region75: #{tpu_custom_call.1} parent=59 // pred_fallthru
                _
              // Predicated region
              $region83: #{tpu_custom_call.1} parent=59 // pred_check
                _
              $region84: #{tpu_custom_call.1} parent=59 // pred_check_branch
                %5228 = sbr.rel target = $region86
              $region85: #{tpu_custom_call.1} parent=59 // pred_region
                _
              $region86: #{tpu_custom_call.1} parent=59 // pred_fallthru
                _
            $region60: #{tpu_custom_call.1} parent=55 // pred_fallthru
              _
            // Predicated region
            $region61: #{tpu_custom_call.1} parent=55 // pred_check
              _
            $region62: #{tpu_custom_call.1} parent=55 // pred_check_branch
              %5078 = sbr.rel target = $region64
            $region63: #{tpu_custom_call.1} parent=55 // pred_region
              %s5080 = ssub.s32 256, 1
              loop: start=0, step=1, limit=1
              $region65: #{tpu_custom_call.1} parent=63 // loop_pre_header
                _
              $region66: #{tpu_custom_call.1} parent=63 // loop_header
                %s5082 = sphi 0, %s5086
                %p5083 = scmp.ge.s32.totalorder %s5082, 1
                %s5087 = sphi %s5064, %s5064
                %s5088 = sphi %s5072, %s5072
              $region67: #{tpu_custom_call.1} parent=63 // loop_header_branch
                %5085 = sbr.rel (%p5083) target = $region71
              $region68: #{tpu_custom_call.1} parent=63 // loop_body
                %v5089 = vld [vmem:[%s5087] sm:%s5080]
                %5090 = vst [vmem:[%s5088] sm:%s5080] %v5089
                %v5091 = vld [vmem:[%s5087 + $0x8] sm:%s5080]
                %5092 = vst [vmem:[%s5088 + $0x8] sm:%s5080] %v5091
                %v5093 = vld [vmem:[%s5087 + $0x10] sm:%s5080]
                %5094 = vst [vmem:[%s5088 + $0x20] sm:%s5080] %v5093
                %v5095 = vld [vmem:[%s5087 + $0x18] sm:%s5080]
                %5096 = vst [vmem:[%s5088 + $0x28] sm:%s5080] %v5095
                %v5097 = vld [vmem:[%s5087 + $0x20] sm:%s5080]
                %5098 = vst [vmem:[%s5088 + $0x40] sm:%s5080] %v5097
                %v5099 = vld [vmem:[%s5087 + $0x28] sm:%s5080]
                %5100 = vst [vmem:[%s5088 + $0x48] sm:%s5080] %v5099
                %v5101 = vld [vmem:[%s5087 + $0x30] sm:%s5080]
                %5102 = vst [vmem:[%s5088 + $0x60] sm:%s5080] %v5101
                %v5103 = vld [vmem:[%s5087 + $0x38] sm:%s5080]
                %5104 = vst [vmem:[%s5088 + $0x68] sm:%s5080] %v5103
                %v5105 = vld [vmem:[%s5087 + $0x40] sm:%s5080]
                %5106 = vst [vmem:[%s5088 + $0x80] sm:%s5080] %v5105
                %v5107 = vld [vmem:[%s5087 + $0x48] sm:%s5080]
                %5108 = vst [vmem:[%s5088 + $0x88] sm:%s5080] %v5107
                %v5109 = vld [vmem:[%s5087 + $0x50] sm:%s5080]
                %5110 = vst [vmem:[%s5088 + $0xa0] sm:%s5080] %v5109
                %v5111 = vld [vmem:[%s5087 + $0x58] sm:%s5080]
                %5112 = vst [vmem:[%s5088 + $0xa8] sm:%s5080] %v5111
                %v5113 = vld [vmem:[%s5087 + $0x60] sm:%s5080]
                %5114 = vst [vmem:[%s5088 + $0xc0] sm:%s5080] %v5113
                %v5115 = vld [vmem:[%s5087 + $0x68] sm:%s5080]
                %5116 = vst [vmem:[%s5088 + $0xc8] sm:%s5080] %v5115
                %v5117 = vld [vmem:[%s5087 + $0x70] sm:%s5080]
                %5118 = vst [vmem:[%s5088 + $0xe0] sm:%s5080] %v5117
                %v5119 = vld [vmem:[%s5087 + $0x78] sm:%s5080]
                %5120 = vst [vmem:[%s5088 + $0xe8] sm:%s5080] %v5119
                %v5121 = vld [vmem:[%s5087 + $0x80] sm:%s5080]
                %5122 = vst [vmem:[%s5088 + $0x100] sm:%s5080] %v5121
                %v5123 = vld [vmem:[%s5087 + $0x88] sm:%s5080]
                %5124 = vst [vmem:[%s5088 + $0x108] sm:%s5080] %v5123
                %v5125 = vld [vmem:[%s5087 + $0x90] sm:%s5080]
                %5126 = vst [vmem:[%s5088 + $0x120] sm:%s5080] %v5125
                %v5127 = vld [vmem:[%s5087 + $0x98] sm:%s5080]
                %5128 = vst [vmem:[%s5088 + $0x128] sm:%s5080] %v5127
                %v5129 = vld [vmem:[%s5087 + $0xa0] sm:%s5080]
                %5130 = vst [vmem:[%s5088 + $0x140] sm:%s5080] %v5129
                %v5131 = vld [vmem:[%s5087 + $0xa8] sm:%s5080]
                %5132 = vst [vmem:[%s5088 + $0x148] sm:%s5080] %v5131
                %v5133 = vld [vmem:[%s5087 + $0xb0] sm:%s5080]
                %5134 = vst [vmem:[%s5088 + $0x160] sm:%s5080] %v5133
                %v5135 = vld [vmem:[%s5087 + $0xb8] sm:%s5080]
                %5136 = vst [vmem:[%s5088 + $0x168] sm:%s5080] %v5135
                %v5137 = vld [vmem:[%s5087 + $0xc0] sm:%s5080]
                %5138 = vst [vmem:[%s5088 + $0x180] sm:%s5080] %v5137
                %v5139 = vld [vmem:[%s5087 + $0xc8] sm:%s5080]
                %5140 = vst [vmem:[%s5088 + $0x188] sm:%s5080] %v5139
                %v5141 = vld [vmem:[%s5087 + $0xd0] sm:%s5080]
                %5142 = vst [vmem:[%s5088 + $0x1a0] sm:%s5080] %v5141
                %v5143 = vld [vmem:[%s5087 + $0xd8] sm:%s5080]
                %5144 = vst [vmem:[%s5088 + $0x1a8] sm:%s5080] %v5143
                %v5145 = vld [vmem:[%s5087 + $0xe0] sm:%s5080]
                %5146 = vst [vmem:[%s5088 + $0x1c0] sm:%s5080] %v5145
                %v5147 = vld [vmem:[%s5087 + $0xe8] sm:%s5080]
                %5148 = vst [vmem:[%s5088 + $0x1c8] sm:%s5080] %v5147
                %v5149 = vld [vmem:[%s5087 + $0xf0] sm:%s5080]
                %5150 = vst [vmem:[%s5088 + $0x1e0] sm:%s5080] %v5149
                %v5151 = vld [vmem:[%s5087 + $0xf8] sm:%s5080]
                %5152 = vst [vmem:[%s5088 + $0x1e8] sm:%s5080] %v5151
              $region69: #{tpu_custom_call.1} parent=63 // loop_footer
                %s5086 = sadd.s32 1, %s5082
              $region70: #{tpu_custom_call.1} parent=63 // loop_footer_branch
                %5081 = sbr.rel target = $region66
              $region71: #{tpu_custom_call.1} parent=63 // loop_exit
                _
            $region64: #{tpu_custom_call.1} parent=55 // pred_fallthru
              _
          $region56: #{tpu_custom_call.1} parent=51 // pred_fallthru
            _
          %5229 = vnop
        $region52: #{tpu_custom_call.1} parent=47 // pred_fallthru
          _
      $region48: #{tpu_custom_call.1} parent=5 // pred_fallthru
        _
      %p5230 = scmp.le.s32.totalorder 2, %s13
      // Predicated region
      $region87: #{tpu_custom_call.1} parent=5 // pred_check
        %p5231 = pneg %p5230
      $region88: #{tpu_custom_call.1} parent=5 // pred_check_branch
        %5233 = sbr.rel (%p5231) target = $region90
      $region89: #{tpu_custom_call.1} parent=5 // pred_region
        %s5234 = ssub.s32 %s13, 2
        // Predicated region
        $region91: #{tpu_custom_call.1} parent=89 // pred_check
          %p5235 = pneg %p213
        $region92: #{tpu_custom_call.1} parent=89 // pred_check_branch
          %5237 = sbr.rel (%p5235) target = $region94
        $region93: #{tpu_custom_call.1} parent=89 // pred_region
          %s5238 = sand.u32 %s198, 1
          %s5239 = sand.u32 %s198, 1
          %s5240 = smul.addr %s5239, 256
          %s5241 = scalar_lea.vmem [#allocation3], %s5240
        $region94: #{tpu_custom_call.1} parent=89 // pred_fallthru
          _
      $region90: #{tpu_custom_call.1} parent=5 // pred_fallthru
        _
    $region6: #{tpu_custom_call.1} parent=1 // loop_footer
      %s17 = sadd.s32 1, %s13
    $region7: #{tpu_custom_call.1} parent=1 // loop_footer_branch
      %12 = sbr.rel target = $region3
    $region8: #{tpu_custom_call.1} parent=1 // loop_exit
      _

</llo_original>
